<compile_context>
chip_gen: v7x
topology: tpu7x:2x2x1
jax: 0.10.0
libtpu: 0.0.40
codegen_flags: <defaults>
</compile_context>

<pallas_src>
import functools

import jax
import jax.numpy as jnp
from jax.experimental import pallas as pl
from jax.experimental.pallas import tpu as pltpu


# ----------------------------------------------------------------------------
# Small helpers
# ----------------------------------------------------------------------------
def _round_up(x, m):
    return ((x + m - 1) // m) * m


def _is_multi_tensorcore():
    # Only v7x has 2 TensorCores per chip; only there does splitting the
    # "parallel" grid axis buy anything.
    try:
        return "v7" in jax.devices()[0].device_kind.lower()
    except Exception:  # non-TPU backend / early init failure -> be conservative
        return False


_MULTI_TC = _is_multi_tensorcore()
# v5e/v6e: 128 MiB VMEM, single TC -> prefer one big tile.  v7x: 64 MiB VMEM.
_MAX_TILE_M = 512 if _MULTI_TC else 1024


def _pick_tile_m(mp, max_tile, prefer_split):
    """mp is a multiple of 128. Return a 128-multiple tile that divides mp."""
    cap = max(128, (min(max_tile, mp) // 128) * 128)
    if prefer_split:
        t = cap
        while t >= 128:
            if mp % t == 0 and mp // t >= 2:
                return t
            t -= 128
    t = cap
    while t >= 128:
        if mp % t == 0:
            return t
        t -= 128
    return 128


def _plan_m(m, max_tile_m):
    """Return (padded M, tile_m).  Small M -> single full-extent block padded
    only to the sublane granule (legal since block_shape == full array dims),
    avoiding 4x zero-row MXU work / stores."""
    if m <= 128:
        mp = _round_up(m, 16)
        return mp, mp
    mp = _round_up(m, 128)
    return mp, _pick_tile_m(mp, max_tile_m, _MULTI_TC)


def _pad2(x, rows, cols):
    if rows == 0 and cols == 0:
        return x
    return jnp.pad(x, ((0, rows), (0, cols)))


def _vmem_limit(*byte_counts):
    """Budget actual double-buffered tile bytes (+ headroom), capped for v7x."""
    need = 2 * sum(int(b) for b in byte_counts) + (4 << 20)
    return int(min(max(need, 32 << 20), 64 << 20))


# ----------------------------------------------------------------------------
# Pallas kernels
# ----------------------------------------------------------------------------
def _mm_bias_kernel(a_ref, w_ref, b_ref, o_ref, *, relu):
    # bf16 x bf16 -> f32 accumulate on the MXU; f32 bias + ReLU epilogue (VPU),
    # single cast at the store (bf16 for intermediate layers).
    acc = jnp.dot(a_ref[...], w_ref[...], preferred_element_type=jnp.float32)
    y = acc + b_ref[...]
    if relu:
        y = jnp.maximum(y, 0.0)
    o_ref[...] = y.astype(o_ref.dtype)


def _mm_bias_x2_kernel(a_ref, w1_ref, b1_ref, w2_ref, b2_ref, o_ref):
    # Fused (conv3x3+BN+ReLU) -> (conv1x1+BN+ReLU); intermediate never leaves
    # VMEM/registers.  Padded intermediate channels are exactly zero (zero
    # weight columns, zero bias, ReLU(0)=0), so the second matmul is exact.
    h = jnp.dot(a_ref[...], w1_ref[...], preferred_element_type=jnp.float32)
    h = jnp.maximum(h + b1_ref[...], 0.0)
    y = jnp.dot(h.astype(w2_ref.dtype), w2_ref[...],
                preferred_element_type=jnp.float32)
    y = jnp.maximum(y + b2_ref[...], 0.0)
    o_ref[...] = y.astype(o_ref.dtype)


# ----------------------------------------------------------------------------
# pallas_call wrappers
# ----------------------------------------------------------------------------
def _matmul_bias_act(a, w, bias, *, relu, out_dtype, max_tile_m):
    """a:(M,K), w:(K,Cp) bf16 with Cp a multiple of 128, bias:(1,Cp) f32.
    Returns (M, Cp) in out_dtype; padded output channels are retained so the
    next layer can consume the tensor without a slice/re-pad."""
    M, K = a.shape
    kw_, cp = w.shape
    assert K == kw_
    kp = _round_up(K, 128)
    mp, tile_m = _plan_m(M, max_tile_m)

    a_p = _pad2(a.astype(jnp.bfloat16), mp - M, kp - K)
    w_p = _pad2(w, kp - K, 0)
    grid = (mp // tile_m,)

    out = pl.pallas_call(
        functools.partial(_mm_bias_kernel, relu=relu),
        out_shape=jax.ShapeDtypeStruct((mp, cp), out_dtype),
        grid_spec=pltpu.PrefetchScalarGridSpec(
            num_scalar_prefetch=0,
            grid=grid,
            in_specs=[
                pl.BlockSpec((tile_m, kp), lambda i: (i, 0)),
                pl.BlockSpec((kp, cp), lambda i: (0, 0)),
                pl.BlockSpec((1, cp), lambda i: (0, 0)),
            ],
            out_specs=pl.BlockSpec((tile_m, cp), lambda i: (i, 0)),
        ),
        compiler_params=pltpu.CompilerParams(
            dimension_semantics=("parallel",),
            vmem_limit_bytes=_vmem_limit(
                tile_m * kp * 2, kp * cp * 2, cp * 4,
                tile_m * cp * jnp.dtype(out_dtype).itemsize)),
    )(a_p, w_p, bias)
    return out if mp == M else out[:M]


def _matmul_bias_relu_x2(a, w1, b1, w2, b2, *, out_dtype, max_tile_m=256):
    """relu(relu(a @ w1 + b1) @ w2 + b2) fused in one pallas_call.
    tile_m capped (default 256) so the f32 intermediate + second accumulator
    stay in vregs on all generations (same 64x4KiB vreg file everywhere)."""
    M, k1 = a.shape
    k1w, c1p = w1.shape
    c1w, c2p = w2.shape
    assert k1 == k1w and c1w == c1p
    k1p = _round_up(k1, 128)
    mp, tile_m = _plan_m(M, max_tile_m)

    a_p = _pad2(a.astype(jnp.bfloat16), mp - M, k1p - k1)
    w1_p = _pad2(w1, k1p - k1, 0)
    grid = (mp // tile_m,)

    out = pl.pallas_call(
        _mm_bias_x2_kernel,
        out_shape=jax.ShapeDtypeStruct((mp, c2p), out_dtype),
        grid_spec=pltpu.PrefetchScalarGridSpec(
            num_scalar_prefetch=0,
            grid=grid,
            in_specs=[
                pl.BlockSpec((tile_m, k1p), lambda i: (i, 0)),
                pl.BlockSpec((k1p, c1p), lambda i: (0, 0)),
                pl.BlockSpec((1, c1p), lambda i: (0, 0)),
                pl.BlockSpec((c1p, c2p), lambda i: (0, 0)),
                pl.BlockSpec((1, c2p), lambda i: (0, 0)),
            ],
            out_specs=pl.BlockSpec((tile_m, c2p), lambda i: (i, 0)),
        ),
        compiler_params=pltpu.CompilerParams(
            dimension_semantics=("parallel",),
            vmem_limit_bytes=_vmem_limit(
                tile_m * k1p * 2, k1p * c1p * 2, c1p * 4,
                c1p * c2p * 2, c2p * 4,
                tile_m * c2p * jnp.dtype(out_dtype).itemsize)),
    )(a_p, w1_p, b1, w2, b2)
    return out if mp == M else out[:M]


# ----------------------------------------------------------------------------
# Conv2d (+ folded eval-mode BN + ReLU) glue
# ----------------------------------------------------------------------------
def _prep_weight(w_hwio, bn, conv_bias, cin_x, eps=1e-5):
    """Fold eval-mode BN into the conv weight, pad Cin to the (possibly
    zero-padded) activation channel count and Cout to a lane multiple, and
    flatten to a bf16 (kh*kw*cin_x, cout_p) matmul operand + f32 bias row."""
    kh, kw, cin, cout = w_hwio.shape
    scale = bn["gamma"] / jnp.sqrt(bn["var"] + eps)            # (cout,)
    w_f = w_hwio.astype(jnp.float32) * scale                   # broadcast Cout
    bias = bn["beta"] - bn["mean"] * scale
    if conv_bias is not None:
        bias = bias + conv_bias * scale
    cout_p = _round_up(cout, 128)
    w_f = jnp.pad(w_f, ((0, 0), (0, 0), (0, cin_x - cin), (0, cout_p - cout)))
    w_mat = w_f.reshape(kh * kw * cin_x, cout_p).astype(jnp.bfloat16)
    b_row = jnp.pad(bias.astype(jnp.float32),
                    (0, cout_p - cout)).reshape(1, cout_p)
    return w_mat, b_row


def _im2col(x_nhwc, kh, kw, stride, pad):
    """Patch gather; channel-block ordering (kh,kw,C) matches HWIO reshape."""
    # TODO(synk): for production resolutions, gather patches inside the Pallas
    # kernel (halo'd input blocks via index_map / manual DMA) instead of
    # materializing the kh*kw-inflated patch array in HBM through XLA.
    N, H, W, C = x_nhwc.shape
    xp = jnp.pad(x_nhwc, ((0, 0), (pad, pad), (pad, pad), (0, 0)))
    OH = (H + 2 * pad - kh) // stride + 1
    OW = (W + 2 * pad - kw) // stride + 1
    cols = []
    for i in range(kh):
        for j in range(kw):
            cols.append(xp[:, i:i + (OH - 1) * stride + 1:stride,
                           j:j + (OW - 1) * stride + 1:stride, :])
    patches = jnp.concatenate(cols, axis=-1)            # (N, OH, OW, kh*kw*C)
    return patches.reshape(N * OH * OW, kh * kw * C), (N, OH, OW)


def conv_bn_relu(x_nhwc, params, stride, pad, *, out_dtype=jnp.bfloat16,
                 relu=True, max_tile_m=_MAX_TILE_M, eps=1e-5):
    """x_nhwc: bf16 NHWC (channels may already be zero-padded past the real
    Cin).  Returns (N, OH, OW, Cout padded to a multiple of 128) in out_dtype."""
    w = params["w"]
    kh, kw, _, _ = w.shape
    cin_x = x_nhwc.shape[-1]
    w_mat, bias = _prep_weight(w, params["bn"], params.get("b"), cin_x, eps)
    if kh == 1 and kw == 1 and stride == 1 and pad == 0:
        # 1x1 conv: no patch gather, just a channel matmul.
        N, H, W_, _ = x_nhwc.shape
        a = x_nhwc.reshape(N * H * W_, cin_x)
        out = _matmul_bias_act(a, w_mat, bias, relu=relu, out_dtype=out_dtype,
                               max_tile_m=max_tile_m)
        return out.reshape(N, H, W_, -1)
    patches, (N, OH, OW) = _im2col(x_nhwc, kh, kw, stride, pad)
    out = _matmul_bias_act(patches, w_mat, bias, relu=relu,
                           out_dtype=out_dtype, max_tile_m=max_tile_m)
    return out.reshape(N, OH, OW, -1)


# ----------------------------------------------------------------------------
# Parameter init (conv weight ~ N(0, 0.001), BN gamma=1 beta=0, running stats
# mean=0 var=1, has_bias=False — matches the reference configuration).
# ----------------------------------------------------------------------------
def _init_conv_bn(key, cin, cout, k):
    w = jax.random.normal(key, (k, k, cin, cout), jnp.float32) * 0.001
    return {"w": w,
            "bn": {"gamma": jnp.ones((cout,), jnp.float32),
                   "beta": jnp.zeros((cout,), jnp.float32),
                   "mean": jnp.zeros((cout,), jnp.float32),
                   "var": jnp.ones((cout,), jnp.float32)}}


# ----------------------------------------------------------------------------
# SpatialPath port
# ----------------------------------------------------------------------------
class SpatialPathPallas:
    """Pallas port of SpatialPath: 7x7/s2 -> 3x3/s2 -> 3x3/s2 -> 1x1, each
    ConvBnRelu (has_bn=True, has_relu=True, has_bias=False).  Intermediate
    layers keep bf16, 128-padded channel outputs flowing between layers; the
    last two layers run in one fused Pallas kernel."""

    def __init__(self, key, in_planes, out_planes):
        inner = 64
        ks = jax.random.split(key, 4)
        self.conv_7x7 = _init_conv_bn(ks[0], in_planes, inner, 7)
        self.conv_3x3_1 = _init_conv_bn(ks[1], inner, inner, 3)
        self.conv_3x3_2 = _init_conv_bn(ks[2], inner, inner, 3)
        self.conv_1x1 = _init_conv_bn(ks[3], inner, out_planes, 1)
        self.out_planes = out_planes

    def __call__(self, x_nchw):
        x = jnp.transpose(x_nchw, (0, 2, 3, 1)).astype(jnp.bfloat16)  # NHWC
        # Padded-channel bf16 intermediates feed the next layer directly
        # (zero channels x zero weight rows -> exact): no slice / re-pad /
        # re-cast HBM copies at layer boundaries.
        x = conv_bn_relu(x, self.conv_7x7, stride=2, pad=3)
        x = conv_bn_relu(x, self.conv_3x3_1, stride=2, pad=1)

        # Fused conv_3x3_2 (+BN+ReLU) + conv_1x1 (+BN+ReLU): one pallas_call,
        # f32 output only at the very end (what the caller consumes).
        cin_x = x.shape[-1]
        w3, b3 = _prep_weight(self.conv_3x3_2["w"], self.conv_3x3_2["bn"],
                              self.conv_3x3_2.get("b"), cin_x)
        c1p = w3.shape[1]
        w1, b1 = _prep_weight(self.conv_1x1["w"], self.conv_1x1["bn"],
                              self.conv_1x1.get("b"), c1p)
        patches, (N, OH, OW) = _im2col(x, 3, 3, 2, 1)
        out = _matmul_bias_relu_x2(patches, w3, b3, w1, b1,
                                   out_dtype=jnp.float32, max_tile_m=256)
        out = out.reshape(N, OH, OW, -1)[..., :self.out_planes]
        return jnp.transpose(out, (0, 3, 1, 2))          # NHWC -> NCHW


# ----------------------------------------------------------------------------
if __name__ == "__main__":
    key = jax.random.PRNGKey(0)
    k_data, k_model = jax.random.split(key)

    # PyTorch-style NCHW input, small shape: batch=2, 3 channels, 32x32.
    data = jax.random.normal(k_data, (2, 3, 32, 32), jnp.float32)

    model = SpatialPathPallas(k_model, in_planes=3, out_planes=128)
    fwd = jax.jit(model.__call__)

    out = fwd(data)                      # (2, 128, 4, 4), stride-8 features
    jax.block_until_ready(out)

    assert out.shape == (2, 128, 4, 4), out.shape
    print("KERNEL_OK")
</pallas_src>

<mosaic_0001>
module attributes {stable_mosaic.version = 11 : i64} {
  func.func @_mm_bias_kernel(%arg0: i32, %arg1: memref<512x256xbf16, #tpu.memory_space<vmem>>, %arg2: memref<256x128xbf16, #tpu.memory_space<vmem>>, %arg3: memref<1x128xf32, #tpu.memory_space<vmem>>, %arg4: memref<512x128xbf16, #tpu.memory_space<vmem>>) attributes {dimension_semantics = [#tpu.dimension_semantics<parallel>], iteration_bounds = array<i64: 1>, scalar_prefetch = 0 : i64, scratch_operands = 0 : i64, tpu.core_type = #tpu.core_type<tc>, window_params = [{transform_indices = @transform_0, window_bounds = array<i64: 512, 256>}, {pipeline_mode = #tpu.pipeline_mode<synchronous>, transform_indices = @transform_1, window_bounds = array<i64: 256, 128>}, {pipeline_mode = #tpu.pipeline_mode<synchronous>, transform_indices = @transform_2, window_bounds = array<i64: 1, 128>}, {transform_indices = @transform_3, window_bounds = array<i64: 512, 128>}]} {
    %c0 = arith.constant 0 : index
    %c0_0 = arith.constant 0 : index
    %0 = vector.load %arg1[%c0, %c0_0] : memref<512x256xbf16, #tpu.memory_space<vmem>>, vector<512x256xbf16>
    %c0_1 = arith.constant 0 : index
    %c0_2 = arith.constant 0 : index
    %1 = vector.load %arg2[%c0_1, %c0_2] : memref<256x128xbf16, #tpu.memory_space<vmem>>, vector<256x128xbf16>
    %cst = arith.constant dense<0.000000e+00> : vector<512x128xf32>
    %2 = tpu.matmul %0, %1, %cst {dimension_numbers = #tpu.dot_dimension_numbers<[1], [0], [0], [1], [0, 0, 1, 1], [], []>} : vector<512x256xbf16>, vector<256x128xbf16>, vector<512x128xf32> -> vector<512x128xf32>
    %c0_3 = arith.constant 0 : index
    %c0_4 = arith.constant 0 : index
    %3 = vector.load %arg3[%c0_3, %c0_4] : memref<1x128xf32, #tpu.memory_space<vmem>>, vector<1x128xf32>
    %4 = vector.broadcast %3 : vector<1x128xf32> to vector<512x128xf32>
    %5 = arith.addf %2, %4 : vector<512x128xf32>
    %cst_5 = arith.constant 0.000000e+00 : f32
    %6 = vector.broadcast %cst_5 : f32 to vector<512x128xf32>
    %7 = arith.maximumf %5, %6 : vector<512x128xf32>
    %8 = arith.truncf %7 : vector<512x128xf32> to vector<512x128xbf16>
    %c0_6 = arith.constant 0 : index
    %c0_7 = arith.constant 0 : index
    %9 = vector.load %arg4[%c0_6, %c0_7] : memref<512x128xbf16, #tpu.memory_space<vmem>>, vector<512x128xbf16>
    tpu.vector_store %arg4[%c0_6, %c0_7], %8 {strides = array<i32>} : memref<512x128xbf16, #tpu.memory_space<vmem>>, vector<512x128xbf16>,
    return
  }
  func.func @transform_0(%arg0: i32) -> (i32, i32) {
    %c0_i32 = arith.constant 0 : i32
    %c0_i32_0 = arith.constant 0 : i32
    return %arg0, %c0_i32 : i32, i32
  }
  func.func @transform_1(%arg0: i32) -> (i32, i32) {
    %c0_i32 = arith.constant 0 : i32
    %c0_i32_0 = arith.constant 0 : i32
    %c0_i32_1 = arith.constant 0 : i32
    return %c0_i32, %c0_i32_0 : i32, i32
  }
  func.func @transform_2(%arg0: i32) -> (i32, i32) {
    %c0_i32 = arith.constant 0 : i32
    %c0_i32_0 = arith.constant 0 : i32
    %c0_i32_1 = arith.constant 0 : i32
    return %c0_i32, %c0_i32_0 : i32, i32
  }
  func.func @transform_3(%arg0: i32) -> (i32, i32) {
    %c0_i32 = arith.constant 0 : i32
    %c0_i32_0 = arith.constant 0 : i32
    return %arg0, %c0_i32 : i32, i32
  }
}

module attributes {stable_mosaic.version = 11 : i64} {
  func.func @_mm_bias_kernel(%arg0: i32, %arg1: memref<128x1152xbf16, #tpu.memory_space<vmem>>, %arg2: memref<1152x128xbf16, #tpu.memory_space<vmem>>, %arg3: memref<1x128xf32, #tpu.memory_space<vmem>>, %arg4: memref<128x128xbf16, #tpu.memory_space<vmem>>) attributes {dimension_semantics = [#tpu.dimension_semantics<parallel>], iteration_bounds = array<i64: 1>, scalar_prefetch = 0 : i64, scratch_operands = 0 : i64, tpu.core_type = #tpu.core_type<tc>, window_params = [{transform_indices = @transform_0, window_bounds = array<i64: 128, 1152>}, {pipeline_mode = #tpu.pipeline_mode<synchronous>, transform_indices = @transform_1, window_bounds = array<i64: 1152, 128>}, {pipeline_mode = #tpu.pipeline_mode<synchronous>, transform_indices = @transform_2, window_bounds = array<i64: 1, 128>}, {transform_indices = @transform_3, window_bounds = array<i64: 128, 128>}]} {
    %c0 = arith.constant 0 : index
    %c0_0 = arith.constant 0 : index
    %0 = vector.load %arg1[%c0, %c0_0] : memref<128x1152xbf16, #tpu.memory_space<vmem>>, vector<128x1152xbf16>
    %c0_1 = arith.constant 0 : index
    %c0_2 = arith.constant 0 : index
    %1 = vector.load %arg2[%c0_1, %c0_2] : memref<1152x128xbf16, #tpu.memory_space<vmem>>, vector<1152x128xbf16>
    %cst = arith.constant dense<0.000000e+00> : vector<128x128xf32>
    %2 = tpu.matmul %0, %1, %cst {dimension_numbers = #tpu.dot_dimension_numbers<[1], [0], [0], [1], [0, 0, 1, 1], [], []>} : vector<128x1152xbf16>, vector<1152x128xbf16>, vector<128x128xf32> -> vector<128x128xf32>
    %c0_3 = arith.constant 0 : index
    %c0_4 = arith.constant 0 : index
    %3 = vector.load %arg3[%c0_3, %c0_4] : memref<1x128xf32, #tpu.memory_space<vmem>>, vector<1x128xf32>
    %4 = vector.broadcast %3 : vector<1x128xf32> to vector<128x128xf32>
    %5 = arith.addf %2, %4 : vector<128x128xf32>
    %cst_5 = arith.constant 0.000000e+00 : f32
    %6 = vector.broadcast %cst_5 : f32 to vector<128x128xf32>
    %7 = arith.maximumf %5, %6 : vector<128x128xf32>
    %8 = arith.truncf %7 : vector<128x128xf32> to vector<128x128xbf16>
    %c0_6 = arith.constant 0 : index
    %c0_7 = arith.constant 0 : index
    %9 = vector.load %arg4[%c0_6, %c0_7] : memref<128x128xbf16, #tpu.memory_space<vmem>>, vector<128x128xbf16>
    tpu.vector_store %arg4[%c0_6, %c0_7], %8 {strides = array<i32>} : memref<128x128xbf16, #tpu.memory_space<vmem>>, vector<128x128xbf16>,
    return
  }
  func.func @transform_0(%arg0: i32) -> (i32, i32) {
    %c0_i32 = arith.constant 0 : i32
    %c0_i32_0 = arith.constant 0 : i32
    return %arg0, %c0_i32 : i32, i32
  }
  func.func @transform_1(%arg0: i32) -> (i32, i32) {
    %c0_i32 = arith.constant 0 : i32
    %c0_i32_0 = arith.constant 0 : i32
    %c0_i32_1 = arith.constant 0 : i32
    return %c0_i32, %c0_i32_0 : i32, i32
  }
  func.func @transform_2(%arg0: i32) -> (i32, i32) {
    %c0_i32 = arith.constant 0 : i32
    %c0_i32_0 = arith.constant 0 : i32
    %c0_i32_1 = arith.constant 0 : i32
    return %c0_i32, %c0_i32_0 : i32, i32
  }
  func.func @transform_3(%arg0: i32) -> (i32, i32) {
    %c0_i32 = arith.constant 0 : i32
    %c0_i32_0 = arith.constant 0 : i32
    return %arg0, %c0_i32 : i32, i32
  }
}

module attributes {stable_mosaic.version = 11 : i64} {
  func.func @_mm_bias_x2_kernel(%arg0: i32, %arg1: memref<32x1152xbf16, #tpu.memory_space<vmem>>, %arg2: memref<1152x128xbf16, #tpu.memory_space<vmem>>, %arg3: memref<1x128xf32, #tpu.memory_space<vmem>>, %arg4: memref<128x128xbf16, #tpu.memory_space<vmem>>, %arg5: memref<1x128xf32, #tpu.memory_space<vmem>>, %arg6: memref<32x128xf32, #tpu.memory_space<vmem>>) attributes {dimension_semantics = [#tpu.dimension_semantics<parallel>], iteration_bounds = array<i64: 1>, scalar_prefetch = 0 : i64, scratch_operands = 0 : i64, tpu.core_type = #tpu.core_type<tc>, window_params = [{transform_indices = @transform_0, window_bounds = array<i64: 32, 1152>}, {pipeline_mode = #tpu.pipeline_mode<synchronous>, transform_indices = @transform_1, window_bounds = array<i64: 1152, 128>}, {pipeline_mode = #tpu.pipeline_mode<synchronous>, transform_indices = @transform_2, window_bounds = array<i64: 1, 128>}, {pipeline_mode = #tpu.pipeline_mode<synchronous>, transform_indices = @transform_3, window_bounds = array<i64: 128, 128>}, {pipeline_mode = #tpu.pipeline_mode<synchronous>, transform_indices = @transform_4, window_bounds = array<i64: 1, 128>}, {transform_indices = @transform_5, window_bounds = array<i64: 32, 128>}]} {
    %c0 = arith.constant 0 : index
    %c0_0 = arith.constant 0 : index
    %0 = vector.load %arg1[%c0, %c0_0] : memref<32x1152xbf16, #tpu.memory_space<vmem>>, vector<32x1152xbf16>
    %c0_1 = arith.constant 0 : index
    %c0_2 = arith.constant 0 : index
    %1 = vector.load %arg2[%c0_1, %c0_2] : memref<1152x128xbf16, #tpu.memory_space<vmem>>, vector<1152x128xbf16>
    %cst = arith.constant dense<0.000000e+00> : vector<32x128xf32>
    %2 = tpu.matmul %0, %1, %cst {dimension_numbers = #tpu.dot_dimension_numbers<[1], [0], [0], [1], [0, 0, 1, 1], [], []>} : vector<32x1152xbf16>, vector<1152x128xbf16>, vector<32x128xf32> -> vector<32x128xf32>
    %c0_3 = arith.constant 0 : index
    %c0_4 = arith.constant 0 : index
    %3 = vector.load %arg3[%c0_3, %c0_4] : memref<1x128xf32, #tpu.memory_space<vmem>>, vector<1x128xf32>
    %4 = vector.broadcast %3 : vector<1x128xf32> to vector<32x128xf32>
    %5 = arith.addf %2, %4 : vector<32x128xf32>
    %cst_5 = arith.constant 0.000000e+00 : f32
    %6 = vector.broadcast %cst_5 : f32 to vector<32x128xf32>
    %7 = arith.maximumf %5, %6 : vector<32x128xf32>
    %8 = arith.truncf %7 : vector<32x128xf32> to vector<32x128xbf16>
    %c0_6 = arith.constant 0 : index
    %c0_7 = arith.constant 0 : index
    %9 = vector.load %arg4[%c0_6, %c0_7] : memref<128x128xbf16, #tpu.memory_space<vmem>>, vector<128x128xbf16>
    %cst_8 = arith.constant dense<0.000000e+00> : vector<32x128xf32>
    %10 = tpu.matmul %8, %9, %cst_8 {dimension_numbers = #tpu.dot_dimension_numbers<[1], [0], [0], [1], [0, 0, 1, 1], [], []>} : vector<32x128xbf16>, vector<128x128xbf16>, vector<32x128xf32> -> vector<32x128xf32>
    %c0_9 = arith.constant 0 : index
    %c0_10 = arith.constant 0 : index
    %11 = vector.load %arg5[%c0_9, %c0_10] : memref<1x128xf32, #tpu.memory_space<vmem>>, vector<1x128xf32>
    %12 = vector.broadcast %11 : vector<1x128xf32> to vector<32x128xf32>
    %13 = arith.addf %10, %12 : vector<32x128xf32>
    %cst_11 = arith.constant 0.000000e+00 : f32
    %14 = vector.broadcast %cst_11 : f32 to vector<32x128xf32>
    %15 = arith.maximumf %13, %14 : vector<32x128xf32>
    %c0_12 = arith.constant 0 : index
    %c0_13 = arith.constant 0 : index
    %16 = vector.load %arg6[%c0_12, %c0_13] : memref<32x128xf32, #tpu.memory_space<vmem>>, vector<32x128xf32>
    tpu.vector_store %arg6[%c0_12, %c0_13], %15 {strides = array<i32>} : memref<32x128xf32, #tpu.memory_space<vmem>>, vector<32x128xf32>,
    return
  }
  func.func @transform_0(%arg0: i32) -> (i32, i32) {
    %c0_i32 = arith.constant 0 : i32
    %c0_i32_0 = arith.constant 0 : i32
    return %arg0, %c0_i32 : i32, i32
  }
  func.func @transform_1(%arg0: i32) -> (i32, i32) {
    %c0_i32 = arith.constant 0 : i32
    %c0_i32_0 = arith.constant 0 : i32
    %c0_i32_1 = arith.constant 0 : i32
    return %c0_i32, %c0_i32_0 : i32, i32
  }
  func.func @transform_2(%arg0: i32) -> (i32, i32) {
    %c0_i32 = arith.constant 0 : i32
    %c0_i32_0 = arith.constant 0 : i32
    %c0_i32_1 = arith.constant 0 : i32
    return %c0_i32, %c0_i32_0 : i32, i32
  }
  func.func @transform_3(%arg0: i32) -> (i32, i32) {
    %c0_i32 = arith.constant 0 : i32
    %c0_i32_0 = arith.constant 0 : i32
    %c0_i32_1 = arith.constant 0 : i32
    return %c0_i32, %c0_i32_0 : i32, i32
  }
  func.func @transform_4(%arg0: i32) -> (i32, i32) {
    %c0_i32 = arith.constant 0 : i32
    %c0_i32_0 = arith.constant 0 : i32
    %c0_i32_1 = arith.constant 0 : i32
    return %c0_i32, %c0_i32_0 : i32, i32
  }
  func.func @transform_5(%arg0: i32) -> (i32, i32) {
    %c0_i32 = arith.constant 0 : i32
    %c0_i32_0 = arith.constant 0 : i32
    return %arg0, %c0_i32 : i32, i32
  }
}

</mosaic_0001>

<llo_original>
// kernel: a_call__.3
$region0: #{a_call__.3}
  #allocation0 [shape = 'u32[]', space=smem, size = 0x4, offset = 0x4, fixed_abs, tag = 'smem constant byte address 0x4 - core index']
  #allocation1 [shape = 'u32[144,128]{1,0:T(1,128)}', space=vmem, size = 0x12000, scoped, tag = 'internal scratch']
  %s0 = inlined_call_operand.vmem [shape: bf16[512,256], index: 0, kind: input, shape index: {}]
  %s1 = inlined_call_operand.vmem [shape: bf16[256,128], index: 1, kind: input, shape index: {}]
  %s2 = inlined_call_operand.vmem [shape: f32[1,128], index: 2, kind: input, shape index: {}]
  %s3 = inlined_call_operand.vmem [shape: bf16[512,128], index: 3, kind: output, shape index: {}]
  %s4 = sld [smem:[#allocation0]]
  $region22: #{a_call__.3} parent=0
    _
  %s6 = ssub.s32 1, %s4
  %s7 = scalar_select 0, %s6, %s4
  // Predicated region
  $region2: #{a_call__.3} parent=0 // pred_check
    _
  $region3: #{a_call__.3} parent=0 // pred_check_branch
    %9 = sbr.rel (0) target = $region5
  $region4: #{a_call__.3} parent=0 // pred_region
    _
  $region5: #{a_call__.3} parent=0 // pred_fallthru
    _
  // Predicated region
  $region6: #{a_call__.3} parent=0 // pred_check
    _
  $region7: #{a_call__.3} parent=0 // pred_check_branch
    %11 = sbr.rel (0) target = $region9
  $region8: #{a_call__.3} parent=0 // pred_region
    _
  $region9: #{a_call__.3} parent=0 // pred_fallthru
    _
  // Predicated region
  $region10: #{a_call__.3} parent=0 // pred_check
    _
  $region11: #{a_call__.3} parent=0 // pred_check_branch
    %13 = sbr.rel (0) target = $region13
  $region12: #{a_call__.3} parent=0 // pred_region
    _
  $region13: #{a_call__.3} parent=0 // pred_fallthru
    _
  %v15 = vld [vmem:[%s0] sm:$0xff]
  %v16 = vld [vmem:[%s0 + $0x8] sm:$0xff]
  %v17 = vld [vmem:[%s0 + $0x10] sm:$0xff]
  %v18 = vld [vmem:[%s0 + $0x18] sm:$0xff]
  %v19 = vld [vmem:[%s0 + $0x20] sm:$0xff]
  %v20 = vld [vmem:[%s0 + $0x28] sm:$0xff]
  %v21 = vld [vmem:[%s0 + $0x30] sm:$0xff]
  %v22 = vld [vmem:[%s0 + $0x38] sm:$0xff]
  %v23 = vld [vmem:[%s0 + $0x40] sm:$0xff]
  %v24 = vld [vmem:[%s0 + $0x48] sm:$0xff]
  %v25 = vld [vmem:[%s0 + $0x50] sm:$0xff]
  %v26 = vld [vmem:[%s0 + $0x58] sm:$0xff]
  %v27 = vld [vmem:[%s0 + $0x60] sm:$0xff]
  %v28 = vld [vmem:[%s0 + $0x68] sm:$0xff]
  %v29 = vld [vmem:[%s0 + $0x70] sm:$0xff]
  %v30 = vld [vmem:[%s0 + $0x78] sm:$0xff]
  %v31 = vld [vmem:[%s0 + $0x80] sm:$0xff]
  %v32 = vld [vmem:[%s0 + $0x88] sm:$0xff]
  %v33 = vld [vmem:[%s0 + $0x90] sm:$0xff]
  %v34 = vld [vmem:[%s0 + $0x98] sm:$0xff]
  %v35 = vld [vmem:[%s0 + $0xa0] sm:$0xff]
  %v36 = vld [vmem:[%s0 + $0xa8] sm:$0xff]
  %v37 = vld [vmem:[%s0 + $0xb0] sm:$0xff]
  %v38 = vld [vmem:[%s0 + $0xb8] sm:$0xff]
  %v39 = vld [vmem:[%s0 + $0xc0] sm:$0xff]
  %v40 = vld [vmem:[%s0 + $0xc8] sm:$0xff]
  %v41 = vld [vmem:[%s0 + $0xd0] sm:$0xff]
  %v42 = vld [vmem:[%s0 + $0xd8] sm:$0xff]
  %v43 = vld [vmem:[%s0 + $0xe0] sm:$0xff]
  %v44 = vld [vmem:[%s0 + $0xe8] sm:$0xff]
  %v45 = vld [vmem:[%s0 + $0xf0] sm:$0xff]
  %v46 = vld [vmem:[%s0 + $0xf8] sm:$0xff]
  %v47 = vld [vmem:[%s0 + $0x100] sm:$0xff]
  %v48 = vld [vmem:[%s0 + $0x108] sm:$0xff]
  %v49 = vld [vmem:[%s0 + $0x110] sm:$0xff]
  %v50 = vld [vmem:[%s0 + $0x118] sm:$0xff]
  %v51 = vld [vmem:[%s0 + $0x120] sm:$0xff]
  %v52 = vld [vmem:[%s0 + $0x128] sm:$0xff]
  %v53 = vld [vmem:[%s0 + $0x130] sm:$0xff]
  %v54 = vld [vmem:[%s0 + $0x138] sm:$0xff]
  %v55 = vld [vmem:[%s0 + $0x140] sm:$0xff]
  %v56 = vld [vmem:[%s0 + $0x148] sm:$0xff]
  %v57 = vld [vmem:[%s0 + $0x150] sm:$0xff]
  %v58 = vld [vmem:[%s0 + $0x158] sm:$0xff]
  %v59 = vld [vmem:[%s0 + $0x160] sm:$0xff]
  %v60 = vld [vmem:[%s0 + $0x168] sm:$0xff]
  %v61 = vld [vmem:[%s0 + $0x170] sm:$0xff]
  %v62 = vld [vmem:[%s0 + $0x178] sm:$0xff]
  %v63 = vld [vmem:[%s0 + $0x180] sm:$0xff]
  %v64 = vld [vmem:[%s0 + $0x188] sm:$0xff]
  %v65 = vld [vmem:[%s0 + $0x190] sm:$0xff]
  %v66 = vld [vmem:[%s0 + $0x198] sm:$0xff]
  %v67 = vld [vmem:[%s0 + $0x1a0] sm:$0xff]
  %v68 = vld [vmem:[%s0 + $0x1a8] sm:$0xff]
  %v69 = vld [vmem:[%s0 + $0x1b0] sm:$0xff]
  %v70 = vld [vmem:[%s0 + $0x1b8] sm:$0xff]
  %v71 = vld [vmem:[%s0 + $0x1c0] sm:$0xff]
  %v72 = vld [vmem:[%s0 + $0x1c8] sm:$0xff]
  %v73 = vld [vmem:[%s0 + $0x1d0] sm:$0xff]
  %v74 = vld [vmem:[%s0 + $0x1d8] sm:$0xff]
  %v75 = vld [vmem:[%s0 + $0x1e0] sm:$0xff]
  %v76 = vld [vmem:[%s0 + $0x1e8] sm:$0xff]
  %v77 = vld [vmem:[%s0 + $0x1f0] sm:$0xff]
  %v78 = vld [vmem:[%s0 + $0x1f8] sm:$0xff]
  %v79 = vld [vmem:[%s1] sm:$0xf]
  %v80 = vld [vmem:[%s1 + $0x4] sm:$0xf]
  %v81 = vld [vmem:[%s1 + $0x8] sm:$0xf]
  %v82 = vld [vmem:[%s1 + $0xc] sm:$0xf]
  %v83 = vld [vmem:[%s1 + $0x10] sm:$0xf]
  %v84 = vld [vmem:[%s1 + $0x14] sm:$0xf]
  %v85 = vld [vmem:[%s1 + $0x18] sm:$0xf]
  %v86 = vld [vmem:[%s1 + $0x1c] sm:$0xf]
  %v87 = vld [vmem:[%s1 + $0x20] sm:$0xf]
  %v88 = vld [vmem:[%s1 + $0x24] sm:$0xf]
  %v89 = vld [vmem:[%s1 + $0x28] sm:$0xf]
  %v90 = vld [vmem:[%s1 + $0x2c] sm:$0xf]
  %v91 = vld [vmem:[%s1 + $0x30] sm:$0xf]
  %v92 = vld [vmem:[%s1 + $0x34] sm:$0xf]
  %v93 = vld [vmem:[%s1 + $0x38] sm:$0xf]
  %v94 = vld [vmem:[%s1 + $0x3c] sm:$0xf]
  %v95 = vld [vmem:[%s1 + $0x40] sm:$0xf]
  %v96 = vld [vmem:[%s1 + $0x44] sm:$0xf]
  %v97 = vld [vmem:[%s1 + $0x48] sm:$0xf]
  %v98 = vld [vmem:[%s1 + $0x4c] sm:$0xf]
  %v99 = vld [vmem:[%s1 + $0x50] sm:$0xf]
  %v100 = vld [vmem:[%s1 + $0x54] sm:$0xf]
  %v101 = vld [vmem:[%s1 + $0x58] sm:$0xf]
  %v102 = vld [vmem:[%s1 + $0x5c] sm:$0xf]
  %v103 = vld [vmem:[%s1 + $0x60] sm:$0xf]
  %v104 = vld [vmem:[%s1 + $0x64] sm:$0xf]
  %v105 = vld [vmem:[%s1 + $0x68] sm:$0xf]
  %v106 = vld [vmem:[%s1 + $0x6c] sm:$0xf]
  %v107 = vld [vmem:[%s1 + $0x70] sm:$0xf]
  %v108 = vld [vmem:[%s1 + $0x74] sm:$0xf]
  %v109 = vld [vmem:[%s1 + $0x78] sm:$0xf]
  %v110 = vld [vmem:[%s1 + $0x7c] sm:$0xf]
  %v111 = vld [vmem:[%s2] sm:$0x1]
  %v113 = vlaneseq
  %v114 = vshrl.u32 %v113, 7
  %v115 = vsub.s32 0, %v114
  %v116 = vrot.slane %v111, %v115
  %v182 = vunpack.c.l.b16 %v15
  %v183 = vunpack.c.h.b16 %v15
  %v184 = vunpack.c.l.b16 %v16
  %v185 = vunpack.c.h.b16 %v16
  %v186 = vunpack.c.l.b16 %v17
  %v187 = vunpack.c.h.b16 %v17
  %v188 = vunpack.c.l.b16 %v18
  %v189 = vunpack.c.h.b16 %v18
  %v190 = vunpack.c.l.b16 %v19
  %v191 = vunpack.c.h.b16 %v19
  %v192 = vunpack.c.l.b16 %v20
  %v193 = vunpack.c.h.b16 %v20
  %v194 = vunpack.c.l.b16 %v21
  %v195 = vunpack.c.h.b16 %v21
  %v196 = vunpack.c.l.b16 %v22
  %v197 = vunpack.c.h.b16 %v22
  %v198 = vunpack.c.l.b16 %v23
  %v199 = vunpack.c.h.b16 %v23
  %v200 = vunpack.c.l.b16 %v24
  %v201 = vunpack.c.h.b16 %v24
  %v202 = vunpack.c.l.b16 %v25
  %v203 = vunpack.c.h.b16 %v25
  %v204 = vunpack.c.l.b16 %v26
  %v205 = vunpack.c.h.b16 %v26
  %v206 = vunpack.c.l.b16 %v27
  %v207 = vunpack.c.h.b16 %v27
  %v208 = vunpack.c.l.b16 %v28
  %v209 = vunpack.c.h.b16 %v28
  %v210 = vunpack.c.l.b16 %v29
  %v211 = vunpack.c.h.b16 %v29
  %v212 = vunpack.c.l.b16 %v30
  %v213 = vunpack.c.h.b16 %v30
  %v214 = vunpack.c.l.b16 %v31
  %v215 = vunpack.c.h.b16 %v31
  %v216 = vunpack.c.l.b16 %v32
  %v217 = vunpack.c.h.b16 %v32
  %v218 = vunpack.c.l.b16 %v33
  %v219 = vunpack.c.h.b16 %v33
  %v220 = vunpack.c.l.b16 %v34
  %v221 = vunpack.c.h.b16 %v34
  %v222 = vunpack.c.l.b16 %v35
  %v223 = vunpack.c.h.b16 %v35
  %v224 = vunpack.c.l.b16 %v36
  %v225 = vunpack.c.h.b16 %v36
  %v226 = vunpack.c.l.b16 %v37
  %v227 = vunpack.c.h.b16 %v37
  %v228 = vunpack.c.l.b16 %v38
  %v229 = vunpack.c.h.b16 %v38
  %v230 = vunpack.c.l.b16 %v39
  %v231 = vunpack.c.h.b16 %v39
  %v232 = vunpack.c.l.b16 %v40
  %v233 = vunpack.c.h.b16 %v40
  %v234 = vunpack.c.l.b16 %v41
  %v235 = vunpack.c.h.b16 %v41
  %v236 = vunpack.c.l.b16 %v42
  %v237 = vunpack.c.h.b16 %v42
  %v238 = vunpack.c.l.b16 %v43
  %v239 = vunpack.c.h.b16 %v43
  %v240 = vunpack.c.l.b16 %v44
  %v241 = vunpack.c.h.b16 %v44
  %v242 = vunpack.c.l.b16 %v45
  %v243 = vunpack.c.h.b16 %v45
  %v244 = vunpack.c.l.b16 %v46
  %v245 = vunpack.c.h.b16 %v46
  %v246 = vunpack.c.l.b16 %v47
  %v247 = vunpack.c.h.b16 %v47
  %v248 = vunpack.c.l.b16 %v48
  %v249 = vunpack.c.h.b16 %v48
  %v250 = vunpack.c.l.b16 %v49
  %v251 = vunpack.c.h.b16 %v49
  %v252 = vunpack.c.l.b16 %v50
  %v253 = vunpack.c.h.b16 %v50
  %v254 = vunpack.c.l.b16 %v51
  %v255 = vunpack.c.h.b16 %v51
  %v256 = vunpack.c.l.b16 %v52
  %v257 = vunpack.c.h.b16 %v52
  %v258 = vunpack.c.l.b16 %v53
  %v259 = vunpack.c.h.b16 %v53
  %v260 = vunpack.c.l.b16 %v54
  %v261 = vunpack.c.h.b16 %v54
  %v262 = vunpack.c.l.b16 %v55
  %v263 = vunpack.c.h.b16 %v55
  %v264 = vunpack.c.l.b16 %v56
  %v265 = vunpack.c.h.b16 %v56
  %v266 = vunpack.c.l.b16 %v57
  %v267 = vunpack.c.h.b16 %v57
  %v268 = vunpack.c.l.b16 %v58
  %v269 = vunpack.c.h.b16 %v58
  %v270 = vunpack.c.l.b16 %v59
  %v271 = vunpack.c.h.b16 %v59
  %v272 = vunpack.c.l.b16 %v60
  %v273 = vunpack.c.h.b16 %v60
  %v274 = vunpack.c.l.b16 %v61
  %v275 = vunpack.c.h.b16 %v61
  %v276 = vunpack.c.l.b16 %v62
  %v277 = vunpack.c.h.b16 %v62
  %v278 = vunpack.c.l.b16 %v63
  %v279 = vunpack.c.h.b16 %v63
  %v280 = vunpack.c.l.b16 %v64
  %v281 = vunpack.c.h.b16 %v64
  %v282 = vunpack.c.l.b16 %v65
  %v283 = vunpack.c.h.b16 %v65
  %v284 = vunpack.c.l.b16 %v66
  %v285 = vunpack.c.h.b16 %v66
  %v286 = vunpack.c.l.b16 %v67
  %v287 = vunpack.c.h.b16 %v67
  %v288 = vunpack.c.l.b16 %v68
  %v289 = vunpack.c.h.b16 %v68
  %v290 = vunpack.c.l.b16 %v69
  %v291 = vunpack.c.h.b16 %v69
  %v292 = vunpack.c.l.b16 %v70
  %v293 = vunpack.c.h.b16 %v70
  %v294 = vunpack.c.l.b16 %v71
  %v295 = vunpack.c.h.b16 %v71
  %v296 = vunpack.c.l.b16 %v72
  %v297 = vunpack.c.h.b16 %v72
  %v298 = vunpack.c.l.b16 %v73
  %v299 = vunpack.c.h.b16 %v73
  %v300 = vunpack.c.l.b16 %v74
  %v301 = vunpack.c.h.b16 %v74
  %v302 = vunpack.c.l.b16 %v75
  %v303 = vunpack.c.h.b16 %v75
  %v304 = vunpack.c.l.b16 %v76
  %v305 = vunpack.c.h.b16 %v76
  %v306 = vunpack.c.l.b16 %v77
  %v307 = vunpack.c.h.b16 %v77
  %v308 = vunpack.c.l.b16 %v78
  %v309 = vunpack.c.h.b16 %v78
  %v310 = vpack.c.b16 %v184, %v182
  %v311 = vpack.c.b16 %v185, %v183
  %v312 = vpack.c.b16 %v188, %v186
  %v313 = vpack.c.b16 %v189, %v187
  %v314 = vpack.c.b16 %v192, %v190
  %v315 = vpack.c.b16 %v193, %v191
  %v316 = vpack.c.b16 %v196, %v194
  %v317 = vpack.c.b16 %v197, %v195
  %v318 = vpack.c.b16 %v200, %v198
  %v319 = vpack.c.b16 %v201, %v199
  %v320 = vpack.c.b16 %v204, %v202
  %v321 = vpack.c.b16 %v205, %v203
  %v322 = vpack.c.b16 %v208, %v206
  %v323 = vpack.c.b16 %v209, %v207
  %v324 = vpack.c.b16 %v212, %v210
  %v325 = vpack.c.b16 %v213, %v211
  %v326 = vpack.c.b16 %v216, %v214
  %v327 = vpack.c.b16 %v217, %v215
  %v328 = vpack.c.b16 %v220, %v218
  %v329 = vpack.c.b16 %v221, %v219
  %v330 = vpack.c.b16 %v224, %v222
  %v331 = vpack.c.b16 %v225, %v223
  %v332 = vpack.c.b16 %v228, %v226
  %v333 = vpack.c.b16 %v229, %v227
  %v334 = vpack.c.b16 %v232, %v230
  %v335 = vpack.c.b16 %v233, %v231
  %v336 = vpack.c.b16 %v236, %v234
  %v337 = vpack.c.b16 %v237, %v235
  %v338 = vpack.c.b16 %v240, %v238
  %v339 = vpack.c.b16 %v241, %v239
  %v340 = vpack.c.b16 %v244, %v242
  %v341 = vpack.c.b16 %v245, %v243
  %v342 = vpack.c.b16 %v248, %v246
  %v343 = vpack.c.b16 %v249, %v247
  %v344 = vpack.c.b16 %v252, %v250
  %v345 = vpack.c.b16 %v253, %v251
  %v346 = vpack.c.b16 %v256, %v254
  %v347 = vpack.c.b16 %v257, %v255
  %v348 = vpack.c.b16 %v260, %v258
  %v349 = vpack.c.b16 %v261, %v259
  %v350 = vpack.c.b16 %v264, %v262
  %v351 = vpack.c.b16 %v265, %v263
  %v352 = vpack.c.b16 %v268, %v266
  %v353 = vpack.c.b16 %v269, %v267
  %v354 = vpack.c.b16 %v272, %v270
  %v355 = vpack.c.b16 %v273, %v271
  %v356 = vpack.c.b16 %v276, %v274
  %v357 = vpack.c.b16 %v277, %v275
  %v358 = vpack.c.b16 %v280, %v278
  %v359 = vpack.c.b16 %v281, %v279
  %v360 = vpack.c.b16 %v284, %v282
  %v361 = vpack.c.b16 %v285, %v283
  %v362 = vpack.c.b16 %v288, %v286
  %v363 = vpack.c.b16 %v289, %v287
  %v364 = vpack.c.b16 %v292, %v290
  %v365 = vpack.c.b16 %v293, %v291
  %v366 = vpack.c.b16 %v296, %v294
  %v367 = vpack.c.b16 %v297, %v295
  %v368 = vpack.c.b16 %v300, %v298
  %v369 = vpack.c.b16 %v301, %v299
  %v370 = vpack.c.b16 %v304, %v302
  %v371 = vpack.c.b16 %v305, %v303
  %v372 = vpack.c.b16 %v308, %v306
  %v373 = vpack.c.b16 %v309, %v307
  %v470 = vunpack.c.l.b16 %v79
  %v471 = vunpack.c.l.b16 %v80
  %v472 = vunpack.c.l.b16 %v81
  %v473 = vunpack.c.l.b16 %v82
  %v474 = vunpack.c.l.b16 %v83
  %v475 = vunpack.c.l.b16 %v84
  %v476 = vunpack.c.l.b16 %v85
  %v477 = vunpack.c.l.b16 %v86
  %v478 = vunpack.c.l.b16 %v87
  %v479 = vunpack.c.l.b16 %v88
  %v480 = vunpack.c.l.b16 %v89
  %v481 = vunpack.c.l.b16 %v90
  %v482 = vunpack.c.l.b16 %v91
  %v483 = vunpack.c.l.b16 %v92
  %v484 = vunpack.c.l.b16 %v93
  %v485 = vunpack.c.l.b16 %v94
  %v486 = vunpack.c.l.b16 %v95
  %v487 = vunpack.c.l.b16 %v96
  %v488 = vunpack.c.l.b16 %v97
  %v489 = vunpack.c.l.b16 %v98
  %v490 = vunpack.c.l.b16 %v99
  %v491 = vunpack.c.l.b16 %v100
  %v492 = vunpack.c.l.b16 %v101
  %v493 = vunpack.c.l.b16 %v102
  %v494 = vunpack.c.l.b16 %v103
  %v495 = vunpack.c.l.b16 %v104
  %v496 = vunpack.c.l.b16 %v105
  %v497 = vunpack.c.l.b16 %v106
  %v498 = vunpack.c.l.b16 %v107
  %v499 = vunpack.c.l.b16 %v108
  %v500 = vunpack.c.l.b16 %v109
  %v501 = vunpack.c.l.b16 %v110
  %v502 = vpack.c.b16 %v471, %v470
  %v503 = vpack.c.b16 %v473, %v472
  %v504 = vpack.c.b16 %v475, %v474
  %v505 = vpack.c.b16 %v477, %v476
  %v506 = vpack.c.b16 %v479, %v478
  %v507 = vpack.c.b16 %v481, %v480
  %v508 = vpack.c.b16 %v483, %v482
  %v509 = vpack.c.b16 %v485, %v484
  %v510 = vpack.c.b16 %v487, %v486
  %v511 = vpack.c.b16 %v489, %v488
  %v512 = vpack.c.b16 %v491, %v490
  %v513 = vpack.c.b16 %v493, %v492
  %v514 = vpack.c.b16 %v495, %v494
  %v515 = vpack.c.b16 %v497, %v496
  %v516 = vpack.c.b16 %v499, %v498
  %v517 = vpack.c.b16 %v501, %v500
  %534 = vmatprep.subr.bf16.mxu0 0
  %535 = vmatpush1.bf16.msra.mxu0 %v502
  %536 = vmatprep.subr.bf16.mxu0 0
  %537 = vmatpush1.bf16.msra.mxu0 %v503
  %538 = vmatprep.subr.bf16.mxu0 0
  %539 = vmatpush1.bf16.msra.mxu0 %v504
  %540 = vmatprep.subr.bf16.mxu0 0
  %541 = vmatpush1.bf16.msra.mxu0 %v505
  %542 = vmatprep.subr.bf16.mxu0 0
  %543 = vmatpush1.bf16.msra.mxu0 %v506
  %544 = vmatprep.subr.bf16.mxu0 0
  %545 = vmatpush1.bf16.msra.mxu0 %v507
  %546 = vmatprep.subr.bf16.mxu0 0
  %547 = vmatpush1.bf16.msra.mxu0 %v508
  %548 = vmatprep.subr.bf16.mxu0 0
  %549 = vmatpush1.bf16.msra.mxu0 %v509
  %550 = vmatprep.subr.bf16.mxu0 0
  %551 = vmatpush1.bf16.msra.mxu0 %v510
  %552 = vmatprep.subr.bf16.mxu0 0
  %553 = vmatpush1.bf16.msra.mxu0 %v511
  %554 = vmatprep.subr.bf16.mxu0 0
  %555 = vmatpush1.bf16.msra.mxu0 %v512
  %556 = vmatprep.subr.bf16.mxu0 0
  %557 = vmatpush1.bf16.msra.mxu0 %v513
  %558 = vmatprep.subr.bf16.mxu0 0
  %559 = vmatpush1.bf16.msra.mxu0 %v514
  %560 = vmatprep.subr.bf16.mxu0 0
  %561 = vmatpush1.bf16.msra.mxu0 %v515
  %562 = vmatprep.subr.bf16.mxu0 0
  %563 = vmatpush1.bf16.msra.mxu0 %v516
  %564 = vmatprep.subr.bf16.mxu0 0
  %565 = vmatpush1.bf16.msra.mxu0 %v517
  %566 = vmatprep.mubr.bf16.mxu0 %v311
  %567 = vmatmul.mubr.bf16.gmra.mrb[0].mxu0 %v310
  %v568 = vpop.f32.mrb[0].mxu0
  %v569 = vadd.f32 %v116, %v568
  %v570 = vpop.f32.mrb[0].mxu0
  %v571 = vpop.f32.mrb[0].mxu0
  %v572 = vadd.f32 %v116, %v571
  %v573 = vpop.f32.mrb[0].mxu0
  %574 = vmatprep.mubr.bf16.mxu0 %v313
  %575 = vmatmul.mubr.bf16.gmra.mrb[0].mxu0 %v312
  %v576 = vpop.f32.mrb[0].mxu0
  %v577 = vadd.f32 %v116, %v576
  %v578 = vpop.f32.mrb[0].mxu0
  %v579 = vpop.f32.mrb[0].mxu0
  %v580 = vadd.f32 %v116, %v579
  %v581 = vpop.f32.mrb[0].mxu0
  %582 = vmatprep.mubr.bf16.mxu0 %v315
  %583 = vmatmul.mubr.bf16.gmra.mrb[0].mxu0 %v314
  %v584 = vpop.f32.mrb[0].mxu0
  %v585 = vadd.f32 %v116, %v584
  %v586 = vpop.f32.mrb[0].mxu0
  %v587 = vpop.f32.mrb[0].mxu0
  %v588 = vadd.f32 %v116, %v587
  %v589 = vpop.f32.mrb[0].mxu0
  %590 = vmatprep.mubr.bf16.mxu0 %v317
  %591 = vmatmul.mubr.bf16.gmra.mrb[0].mxu0 %v316
  %v592 = vpop.f32.mrb[0].mxu0
  %v593 = vadd.f32 %v116, %v592
  %v594 = vpop.f32.mrb[0].mxu0
  %v595 = vpop.f32.mrb[0].mxu0
  %v596 = vadd.f32 %v116, %v595
  %v597 = vpop.f32.mrb[0].mxu0
  %598 = vmatprep.mubr.bf16.mxu0 %v319
  %599 = vmatmul.mubr.bf16.gmra.mrb[0].mxu0 %v318
  %v600 = vpop.f32.mrb[0].mxu0
  %v601 = vadd.f32 %v116, %v600
  %v602 = vpop.f32.mrb[0].mxu0
  %v603 = vpop.f32.mrb[0].mxu0
  %v604 = vadd.f32 %v116, %v603
  %v605 = vpop.f32.mrb[0].mxu0
  %606 = vmatprep.mubr.bf16.mxu0 %v321
  %607 = vmatmul.mubr.bf16.gmra.mrb[0].mxu0 %v320
  %v608 = vpop.f32.mrb[0].mxu0
  %v609 = vadd.f32 %v116, %v608
  %v610 = vpop.f32.mrb[0].mxu0
  %v611 = vpop.f32.mrb[0].mxu0
  %v612 = vadd.f32 %v116, %v611
  %v613 = vpop.f32.mrb[0].mxu0
  %614 = vmatprep.mubr.bf16.mxu0 %v323
  %615 = vmatmul.mubr.bf16.gmra.mrb[0].mxu0 %v322
  %v616 = vpop.f32.mrb[0].mxu0
  %v617 = vadd.f32 %v116, %v616
  %v618 = vpop.f32.mrb[0].mxu0
  %v619 = vpop.f32.mrb[0].mxu0
  %v620 = vadd.f32 %v116, %v619
  %v621 = vpop.f32.mrb[0].mxu0
  %622 = vmatprep.mubr.bf16.mxu0 %v325
  %623 = vmatmul.mubr.bf16.gmra.mrb[0].mxu0 %v324
  %v624 = vpop.f32.mrb[0].mxu0
  %v625 = vadd.f32 %v116, %v624
  %v626 = vpop.f32.mrb[0].mxu0
  %v627 = vpop.f32.mrb[0].mxu0
  %v628 = vadd.f32 %v116, %v627
  %v629 = vpop.f32.mrb[0].mxu0
  %630 = vmatprep.mubr.bf16.mxu0 %v327
  %631 = vmatmul.mubr.bf16.gmra.mrb[0].mxu0 %v326
  %v632 = vpop.f32.mrb[0].mxu0
  %v633 = vadd.f32 %v116, %v632
  %v634 = vpop.f32.mrb[0].mxu0
  %v635 = vpop.f32.mrb[0].mxu0
  %v636 = vadd.f32 %v116, %v635
  %v637 = vpop.f32.mrb[0].mxu0
  %638 = vmatprep.mubr.bf16.mxu0 %v329
  %639 = vmatmul.mubr.bf16.gmra.mrb[0].mxu0 %v328
  %v640 = vpop.f32.mrb[0].mxu0
  %v641 = vadd.f32 %v116, %v640
  %v642 = vpop.f32.mrb[0].mxu0
  %v643 = vpop.f32.mrb[0].mxu0
  %v644 = vadd.f32 %v116, %v643
  %v645 = vpop.f32.mrb[0].mxu0
  %646 = vmatprep.mubr.bf16.mxu0 %v331
  %647 = vmatmul.mubr.bf16.gmra.mrb[0].mxu0 %v330
  %v648 = vpop.f32.mrb[0].mxu0
  %v649 = vadd.f32 %v116, %v648
  %v650 = vpop.f32.mrb[0].mxu0
  %v651 = vpop.f32.mrb[0].mxu0
  %v652 = vadd.f32 %v116, %v651
  %v653 = vpop.f32.mrb[0].mxu0
  %654 = vmatprep.mubr.bf16.mxu0 %v333
  %655 = vmatmul.mubr.bf16.gmra.mrb[0].mxu0 %v332
  %v656 = vpop.f32.mrb[0].mxu0
  %v657 = vadd.f32 %v116, %v656
  %v658 = vpop.f32.mrb[0].mxu0
  %v659 = vpop.f32.mrb[0].mxu0
  %v660 = vadd.f32 %v116, %v659
  %v661 = vpop.f32.mrb[0].mxu0
  %662 = vmatprep.mubr.bf16.mxu0 %v335
  %663 = vmatmul.mubr.bf16.gmra.mrb[0].mxu0 %v334
  %v664 = vpop.f32.mrb[0].mxu0
  %v665 = vadd.f32 %v116, %v664
  %v666 = vpop.f32.mrb[0].mxu0
  %v667 = vpop.f32.mrb[0].mxu0
  %v668 = vadd.f32 %v116, %v667
  %v669 = vpop.f32.mrb[0].mxu0
  %670 = vmatprep.mubr.bf16.mxu0 %v337
  %671 = vmatmul.mubr.bf16.gmra.mrb[0].mxu0 %v336
  %v672 = vpop.f32.mrb[0].mxu0
  %v673 = vadd.f32 %v116, %v672
  %v674 = vpop.f32.mrb[0].mxu0
  %v675 = vpop.f32.mrb[0].mxu0
  %v676 = vadd.f32 %v116, %v675
  %v677 = vpop.f32.mrb[0].mxu0
  %678 = vmatprep.mubr.bf16.mxu0 %v339
  %679 = vmatmul.mubr.bf16.gmra.mrb[0].mxu0 %v338
  %v680 = vpop.f32.mrb[0].mxu0
  %v681 = vadd.f32 %v116, %v680
  %v682 = vpop.f32.mrb[0].mxu0
  %v683 = vpop.f32.mrb[0].mxu0
  %v684 = vadd.f32 %v116, %v683
  %v685 = vpop.f32.mrb[0].mxu0
  %686 = vmatprep.mubr.bf16.mxu0 %v341
  %687 = vmatmul.mubr.bf16.gmra.mrb[0].mxu0 %v340
  %v688 = vpop.f32.mrb[0].mxu0
  %v689 = vadd.f32 %v116, %v688
  %v690 = vpop.f32.mrb[0].mxu0
  %v691 = vpop.f32.mrb[0].mxu0
  %v692 = vadd.f32 %v116, %v691
  %v693 = vpop.f32.mrb[0].mxu0
  %694 = vmatprep.mubr.bf16.mxu0 %v343
  %695 = vmatmul.mubr.bf16.gmra.mrb[0].mxu0 %v342
  %v696 = vpop.f32.mrb[0].mxu0
  %v697 = vadd.f32 %v116, %v696
  %v698 = vpop.f32.mrb[0].mxu0
  %v699 = vpop.f32.mrb[0].mxu0
  %v700 = vadd.f32 %v116, %v699
  %v701 = vpop.f32.mrb[0].mxu0
  %702 = vmatprep.mubr.bf16.mxu0 %v345
  %703 = vmatmul.mubr.bf16.gmra.mrb[0].mxu0 %v344
  %v704 = vpop.f32.mrb[0].mxu0
  %v705 = vadd.f32 %v116, %v704
  %v706 = vpop.f32.mrb[0].mxu0
  %v707 = vpop.f32.mrb[0].mxu0
  %v708 = vadd.f32 %v116, %v707
  %v709 = vpop.f32.mrb[0].mxu0
  %710 = vmatprep.mubr.bf16.mxu0 %v347
  %711 = vmatmul.mubr.bf16.gmra.mrb[0].mxu0 %v346
  %v712 = vpop.f32.mrb[0].mxu0
  %v713 = vadd.f32 %v116, %v712
  %v714 = vpop.f32.mrb[0].mxu0
  %v715 = vpop.f32.mrb[0].mxu0
  %v716 = vadd.f32 %v116, %v715
  %v717 = vpop.f32.mrb[0].mxu0
  %718 = vmatprep.mubr.bf16.mxu0 %v349
  %719 = vmatmul.mubr.bf16.gmra.mrb[0].mxu0 %v348
  %v720 = vpop.f32.mrb[0].mxu0
  %v721 = vadd.f32 %v116, %v720
  %v722 = vpop.f32.mrb[0].mxu0
  %v723 = vpop.f32.mrb[0].mxu0
  %v724 = vadd.f32 %v116, %v723
  %v725 = vpop.f32.mrb[0].mxu0
  %726 = vmatprep.mubr.bf16.mxu0 %v351
  %727 = vmatmul.mubr.bf16.gmra.mrb[0].mxu0 %v350
  %v728 = vpop.f32.mrb[0].mxu0
  %v729 = vadd.f32 %v116, %v728
  %v730 = vpop.f32.mrb[0].mxu0
  %v731 = vpop.f32.mrb[0].mxu0
  %v732 = vadd.f32 %v116, %v731
  %v733 = vpop.f32.mrb[0].mxu0
  %734 = vmatprep.mubr.bf16.mxu0 %v353
  %735 = vmatmul.mubr.bf16.gmra.mrb[0].mxu0 %v352
  %v736 = vpop.f32.mrb[0].mxu0
  %v737 = vadd.f32 %v116, %v736
  %v738 = vpop.f32.mrb[0].mxu0
  %v739 = vpop.f32.mrb[0].mxu0
  %v740 = vadd.f32 %v116, %v739
  %v741 = vpop.f32.mrb[0].mxu0
  %742 = vmatprep.mubr.bf16.mxu0 %v355
  %743 = vmatmul.mubr.bf16.gmra.mrb[0].mxu0 %v354
  %v744 = vpop.f32.mrb[0].mxu0
  %v745 = vadd.f32 %v116, %v744
  %v746 = vpop.f32.mrb[0].mxu0
  %v747 = vpop.f32.mrb[0].mxu0
  %v748 = vadd.f32 %v116, %v747
  %v749 = vpop.f32.mrb[0].mxu0
  %750 = vmatprep.mubr.bf16.mxu0 %v357
  %751 = vmatmul.mubr.bf16.gmra.mrb[0].mxu0 %v356
  %v752 = vpop.f32.mrb[0].mxu0
  %v753 = vadd.f32 %v116, %v752
  %v754 = vpop.f32.mrb[0].mxu0
  %v755 = vpop.f32.mrb[0].mxu0
  %v756 = vadd.f32 %v116, %v755
  %v757 = vpop.f32.mrb[0].mxu0
  %758 = vmatprep.mubr.bf16.mxu0 %v359
  %759 = vmatmul.mubr.bf16.gmra.mrb[0].mxu0 %v358
  %v760 = vpop.f32.mrb[0].mxu0
  %v761 = vadd.f32 %v116, %v760
  %v762 = vpop.f32.mrb[0].mxu0
  %v763 = vpop.f32.mrb[0].mxu0
  %v764 = vadd.f32 %v116, %v763
  %v765 = vpop.f32.mrb[0].mxu0
  %766 = vmatprep.mubr.bf16.mxu0 %v361
  %767 = vmatmul.mubr.bf16.gmra.mrb[0].mxu0 %v360
  %v768 = vpop.f32.mrb[0].mxu0
  %v769 = vadd.f32 %v116, %v768
  %v770 = vpop.f32.mrb[0].mxu0
  %v771 = vpop.f32.mrb[0].mxu0
  %v772 = vadd.f32 %v116, %v771
  %v773 = vpop.f32.mrb[0].mxu0
  %774 = vmatprep.mubr.bf16.mxu0 %v363
  %775 = vmatmul.mubr.bf16.gmra.mrb[0].mxu0 %v362
  %v776 = vpop.f32.mrb[0].mxu0
  %v777 = vadd.f32 %v116, %v776
  %v778 = vpop.f32.mrb[0].mxu0
  %v779 = vpop.f32.mrb[0].mxu0
  %v780 = vadd.f32 %v116, %v779
  %v781 = vpop.f32.mrb[0].mxu0
  %782 = vmatprep.mubr.bf16.mxu0 %v365
  %783 = vmatmul.mubr.bf16.gmra.mrb[0].mxu0 %v364
  %v784 = vpop.f32.mrb[0].mxu0
  %v785 = vadd.f32 %v116, %v784
  %v786 = vpop.f32.mrb[0].mxu0
  %v787 = vpop.f32.mrb[0].mxu0
  %v788 = vadd.f32 %v116, %v787
  %v789 = vpop.f32.mrb[0].mxu0
  %790 = vmatprep.mubr.bf16.mxu0 %v367
  %791 = vmatmul.mubr.bf16.gmra.mrb[0].mxu0 %v366
  %v792 = vpop.f32.mrb[0].mxu0
  %v793 = vadd.f32 %v116, %v792
  %v794 = vpop.f32.mrb[0].mxu0
  %v795 = vpop.f32.mrb[0].mxu0
  %v796 = vadd.f32 %v116, %v795
  %v797 = vpop.f32.mrb[0].mxu0
  %798 = vmatprep.mubr.bf16.mxu0 %v369
  %799 = vmatmul.mubr.bf16.gmra.mrb[0].mxu0 %v368
  %v800 = vpop.f32.mrb[0].mxu0
  %v801 = vadd.f32 %v116, %v800
  %v802 = vpop.f32.mrb[0].mxu0
  %v803 = vpop.f32.mrb[0].mxu0
  %v804 = vadd.f32 %v116, %v803
  %v805 = vpop.f32.mrb[0].mxu0
  %806 = vmatprep.mubr.bf16.mxu0 %v371
  %807 = vmatmul.mubr.bf16.gmra.mrb[0].mxu0 %v370
  %v808 = vpop.f32.mrb[0].mxu0
  %v809 = vadd.f32 %v116, %v808
  %v810 = vpop.f32.mrb[0].mxu0
  %v811 = vpop.f32.mrb[0].mxu0
  %v812 = vadd.f32 %v116, %v811
  %v813 = vpop.f32.mrb[0].mxu0
  %814 = vmatprep.mubr.bf16.mxu0 %v373
  %815 = vmatmul.mubr.bf16.gmra.mrb[0].mxu0 %v372
  %v816 = vpop.f32.mrb[0].mxu0
  %v817 = vadd.f32 %v116, %v816
  %v818 = vpop.f32.mrb[0].mxu0
  %v819 = vpop.f32.mrb[0].mxu0
  %v820 = vadd.f32 %v116, %v819
  %v821 = vpop.f32.mrb[0].mxu0
  %822 = vdwg.mxu0
  %v823 = vmax.f32 %v569, 0.0
  %v824 = vmax.f32 %v572, 0.0
  %v825 = vmax.f32 %v577, 0.0
  %v826 = vmax.f32 %v580, 0.0
  %v827 = vmax.f32 %v585, 0.0
  %v828 = vmax.f32 %v588, 0.0
  %v829 = vmax.f32 %v593, 0.0
  %v830 = vmax.f32 %v596, 0.0
  %v831 = vmax.f32 %v601, 0.0
  %v832 = vmax.f32 %v604, 0.0
  %v833 = vmax.f32 %v609, 0.0
  %v834 = vmax.f32 %v612, 0.0
  %v835 = vmax.f32 %v617, 0.0
  %v836 = vmax.f32 %v620, 0.0
  %v837 = vmax.f32 %v625, 0.0
  %v838 = vmax.f32 %v628, 0.0
  %v839 = vmax.f32 %v633, 0.0
  %v840 = vmax.f32 %v636, 0.0
  %v841 = vmax.f32 %v641, 0.0
  %v842 = vmax.f32 %v644, 0.0
  %v843 = vmax.f32 %v649, 0.0
  %v844 = vmax.f32 %v652, 0.0
  %v845 = vmax.f32 %v657, 0.0
  %v846 = vmax.f32 %v660, 0.0
  %v847 = vmax.f32 %v665, 0.0
  %v848 = vmax.f32 %v668, 0.0
  %v849 = vmax.f32 %v673, 0.0
  %v850 = vmax.f32 %v676, 0.0
  %v851 = vmax.f32 %v681, 0.0
  %v852 = vmax.f32 %v684, 0.0
  %v853 = vmax.f32 %v689, 0.0
  %v854 = vmax.f32 %v692, 0.0
  %v855 = vmax.f32 %v697, 0.0
  %v856 = vmax.f32 %v700, 0.0
  %v857 = vmax.f32 %v705, 0.0
  %v858 = vmax.f32 %v708, 0.0
  %v859 = vmax.f32 %v713, 0.0
  %v860 = vmax.f32 %v716, 0.0
  %v861 = vmax.f32 %v721, 0.0
  %v862 = vmax.f32 %v724, 0.0
  %v863 = vmax.f32 %v729, 0.0
  %v864 = vmax.f32 %v732, 0.0
  %v865 = vmax.f32 %v737, 0.0
  %v866 = vmax.f32 %v740, 0.0
  %v867 = vmax.f32 %v745, 0.0
  %v868 = vmax.f32 %v748, 0.0
  %v869 = vmax.f32 %v753, 0.0
  %v870 = vmax.f32 %v756, 0.0
  %v871 = vmax.f32 %v761, 0.0
  %v872 = vmax.f32 %v764, 0.0
  %v873 = vmax.f32 %v769, 0.0
  %v874 = vmax.f32 %v772, 0.0
  %v875 = vmax.f32 %v777, 0.0
  %v876 = vmax.f32 %v780, 0.0
  %v877 = vmax.f32 %v785, 0.0
  %v878 = vmax.f32 %v788, 0.0
  %v879 = vmax.f32 %v793, 0.0
  %v880 = vmax.f32 %v796, 0.0
  %v881 = vmax.f32 %v801, 0.0
  %v882 = vmax.f32 %v804, 0.0
  %v883 = vmax.f32 %v809, 0.0
  %v884 = vmax.f32 %v812, 0.0
  %v885 = vmax.f32 %v817, 0.0
  %v886 = vmax.f32 %v820, 0.0
  %v887 = vpack.c.bf16 %v824, %v823
  %v888 = vpack.c.bf16 %v826, %v825
  %v889 = vpack.c.bf16 %v828, %v827
  %v890 = vpack.c.bf16 %v830, %v829
  %v891 = vpack.c.bf16 %v832, %v831
  %v892 = vpack.c.bf16 %v834, %v833
  %v893 = vpack.c.bf16 %v836, %v835
  %v894 = vpack.c.bf16 %v838, %v837
  %v895 = vpack.c.bf16 %v840, %v839
  %v896 = vpack.c.bf16 %v842, %v841
  %v897 = vpack.c.bf16 %v844, %v843
  %v898 = vpack.c.bf16 %v846, %v845
  %v899 = vpack.c.bf16 %v848, %v847
  %v900 = vpack.c.bf16 %v850, %v849
  %v901 = vpack.c.bf16 %v852, %v851
  %v902 = vpack.c.bf16 %v854, %v853
  %v903 = vpack.c.bf16 %v856, %v855
  %v904 = vpack.c.bf16 %v858, %v857
  %v905 = vpack.c.bf16 %v860, %v859
  %v906 = vpack.c.bf16 %v862, %v861
  %v907 = vpack.c.bf16 %v864, %v863
  %v908 = vpack.c.bf16 %v866, %v865
  %v909 = vpack.c.bf16 %v868, %v867
  %v910 = vpack.c.bf16 %v870, %v869
  %v911 = vpack.c.bf16 %v872, %v871
  %v912 = vpack.c.bf16 %v874, %v873
  %v913 = vpack.c.bf16 %v876, %v875
  %v914 = vpack.c.bf16 %v878, %v877
  %v915 = vpack.c.bf16 %v880, %v879
  %v916 = vpack.c.bf16 %v882, %v881
  %v917 = vpack.c.bf16 %v884, %v883
  %v918 = vpack.c.bf16 %v886, %v885
  %v951 = vunpack.c.l.b16 %v887
  %v952 = vunpack.c.h.b16 %v887
  %v953 = vunpack.c.l.b16 %v888
  %v954 = vunpack.c.h.b16 %v888
  %v955 = vunpack.c.l.b16 %v889
  %v956 = vunpack.c.h.b16 %v889
  %v957 = vunpack.c.l.b16 %v890
  %v958 = vunpack.c.h.b16 %v890
  %v959 = vunpack.c.l.b16 %v891
  %v960 = vunpack.c.h.b16 %v891
  %v961 = vunpack.c.l.b16 %v892
  %v962 = vunpack.c.h.b16 %v892
  %v963 = vunpack.c.l.b16 %v893
  %v964 = vunpack.c.h.b16 %v893
  %v965 = vunpack.c.l.b16 %v894
  %v966 = vunpack.c.h.b16 %v894
  %v967 = vunpack.c.l.b16 %v895
  %v968 = vunpack.c.h.b16 %v895
  %v969 = vunpack.c.l.b16 %v896
  %v970 = vunpack.c.h.b16 %v896
  %v971 = vunpack.c.l.b16 %v897
  %v972 = vunpack.c.h.b16 %v897
  %v973 = vunpack.c.l.b16 %v898
  %v974 = vunpack.c.h.b16 %v898
  %v975 = vunpack.c.l.b16 %v899
  %v976 = vunpack.c.h.b16 %v899
  %v977 = vunpack.c.l.b16 %v900
  %v978 = vunpack.c.h.b16 %v900
  %v979 = vunpack.c.l.b16 %v901
  %v980 = vunpack.c.h.b16 %v901
  %v981 = vunpack.c.l.b16 %v902
  %v982 = vunpack.c.h.b16 %v902
  %v983 = vunpack.c.l.b16 %v903
  %v984 = vunpack.c.h.b16 %v903
  %v985 = vunpack.c.l.b16 %v904
  %v986 = vunpack.c.h.b16 %v904
  %v987 = vunpack.c.l.b16 %v905
  %v988 = vunpack.c.h.b16 %v905
  %v989 = vunpack.c.l.b16 %v906
  %v990 = vunpack.c.h.b16 %v906
  %v991 = vunpack.c.l.b16 %v907
  %v992 = vunpack.c.h.b16 %v907
  %v993 = vunpack.c.l.b16 %v908
  %v994 = vunpack.c.h.b16 %v908
  %v995 = vunpack.c.l.b16 %v909
  %v996 = vunpack.c.h.b16 %v909
  %v997 = vunpack.c.l.b16 %v910
  %v998 = vunpack.c.h.b16 %v910
  %v999 = vunpack.c.l.b16 %v911
  %v1000 = vunpack.c.h.b16 %v911
  %v1001 = vunpack.c.l.b16 %v912
  %v1002 = vunpack.c.h.b16 %v912
  %v1003 = vunpack.c.l.b16 %v913
  %v1004 = vunpack.c.h.b16 %v913
  %v1005 = vunpack.c.l.b16 %v914
  %v1006 = vunpack.c.h.b16 %v914
  %v1007 = vunpack.c.l.b16 %v915
  %v1008 = vunpack.c.h.b16 %v915
  %v1009 = vunpack.c.l.b16 %v916
  %v1010 = vunpack.c.h.b16 %v916
  %v1011 = vunpack.c.l.b16 %v917
  %v1012 = vunpack.c.h.b16 %v917
  %v1013 = vunpack.c.l.b16 %v918
  %v1014 = vunpack.c.h.b16 %v918
  %v1015 = vpack.c.b16 %v951, %v951
  %v1016 = vpack.c.b16 %v952, %v952
  %v1017 = vpack.c.b16 %v953, %v953
  %v1018 = vpack.c.b16 %v954, %v954
  %v1019 = vpack.c.b16 %v955, %v955
  %v1020 = vpack.c.b16 %v956, %v956
  %v1021 = vpack.c.b16 %v957, %v957
  %v1022 = vpack.c.b16 %v958, %v958
  %v1023 = vpack.c.b16 %v959, %v959
  %v1024 = vpack.c.b16 %v960, %v960
  %v1025 = vpack.c.b16 %v961, %v961
  %v1026 = vpack.c.b16 %v962, %v962
  %v1027 = vpack.c.b16 %v963, %v963
  %v1028 = vpack.c.b16 %v964, %v964
  %v1029 = vpack.c.b16 %v965, %v965
  %v1030 = vpack.c.b16 %v966, %v966
  %v1031 = vpack.c.b16 %v967, %v967
  %v1032 = vpack.c.b16 %v968, %v968
  %v1033 = vpack.c.b16 %v969, %v969
  %v1034 = vpack.c.b16 %v970, %v970
  %v1035 = vpack.c.b16 %v971, %v971
  %v1036 = vpack.c.b16 %v972, %v972
  %v1037 = vpack.c.b16 %v973, %v973
  %v1038 = vpack.c.b16 %v974, %v974
  %v1039 = vpack.c.b16 %v975, %v975
  %v1040 = vpack.c.b16 %v976, %v976
  %v1041 = vpack.c.b16 %v977, %v977
  %v1042 = vpack.c.b16 %v978, %v978
  %v1043 = vpack.c.b16 %v979, %v979
  %v1044 = vpack.c.b16 %v980, %v980
  %v1045 = vpack.c.b16 %v981, %v981
  %v1046 = vpack.c.b16 %v982, %v982
  %v1047 = vpack.c.b16 %v983, %v983
  %v1048 = vpack.c.b16 %v984, %v984
  %v1049 = vpack.c.b16 %v985, %v985
  %v1050 = vpack.c.b16 %v986, %v986
  %v1051 = vpack.c.b16 %v987, %v987
  %v1052 = vpack.c.b16 %v988, %v988
  %v1053 = vpack.c.b16 %v989, %v989
  %v1054 = vpack.c.b16 %v990, %v990
  %v1055 = vpack.c.b16 %v991, %v991
  %v1056 = vpack.c.b16 %v992, %v992
  %v1057 = vpack.c.b16 %v993, %v993
  %v1058 = vpack.c.b16 %v994, %v994
  %v1059 = vpack.c.b16 %v995, %v995
  %v1060 = vpack.c.b16 %v996, %v996
  %v1061 = vpack.c.b16 %v997, %v997
  %v1062 = vpack.c.b16 %v998, %v998
  %v1063 = vpack.c.b16 %v999, %v999
  %v1064 = vpack.c.b16 %v1000, %v1000
  %v1065 = vpack.c.b16 %v1001, %v1001
  %v1066 = vpack.c.b16 %v1002, %v1002
  %v1067 = vpack.c.b16 %v1003, %v1003
  %v1068 = vpack.c.b16 %v1004, %v1004
  %v1069 = vpack.c.b16 %v1005, %v1005
  %v1070 = vpack.c.b16 %v1006, %v1006
  %v1071 = vpack.c.b16 %v1007, %v1007
  %v1072 = vpack.c.b16 %v1008, %v1008
  %v1073 = vpack.c.b16 %v1009, %v1009
  %v1074 = vpack.c.b16 %v1010, %v1010
  %v1075 = vpack.c.b16 %v1011, %v1011
  %v1076 = vpack.c.b16 %v1012, %v1012
  %v1077 = vpack.c.b16 %v1013, %v1013
  %v1078 = vpack.c.b16 %v1014, %v1014
  %1143 = vst [vmem:[%s3] sm:$0xf] %v1015
  %1144 = vst [vmem:[%s3 + $0x4] sm:$0xf] %v1016
  %1145 = vst [vmem:[%s3 + $0x8] sm:$0xf] %v1017
  %1146 = vst [vmem:[%s3 + $0xc] sm:$0xf] %v1018
  %1147 = vst [vmem:[%s3 + $0x10] sm:$0xf] %v1019
  %1148 = vst [vmem:[%s3 + $0x14] sm:$0xf] %v1020
  %1149 = vst [vmem:[%s3 + $0x18] sm:$0xf] %v1021
  %1150 = vst [vmem:[%s3 + $0x1c] sm:$0xf] %v1022
  %1151 = vst [vmem:[%s3 + $0x20] sm:$0xf] %v1023
  %1152 = vst [vmem:[%s3 + $0x24] sm:$0xf] %v1024
  %1153 = vst [vmem:[%s3 + $0x28] sm:$0xf] %v1025
  %1154 = vst [vmem:[%s3 + $0x2c] sm:$0xf] %v1026
  %1155 = vst [vmem:[%s3 + $0x30] sm:$0xf] %v1027
  %1156 = vst [vmem:[%s3 + $0x34] sm:$0xf] %v1028
  %1157 = vst [vmem:[%s3 + $0x38] sm:$0xf] %v1029
  %1158 = vst [vmem:[%s3 + $0x3c] sm:$0xf] %v1030
  %1159 = vst [vmem:[%s3 + $0x40] sm:$0xf] %v1031
  %1160 = vst [vmem:[%s3 + $0x44] sm:$0xf] %v1032
  %1161 = vst [vmem:[%s3 + $0x48] sm:$0xf] %v1033
  %1162 = vst [vmem:[%s3 + $0x4c] sm:$0xf] %v1034
  %1163 = vst [vmem:[%s3 + $0x50] sm:$0xf] %v1035
  %1164 = vst [vmem:[%s3 + $0x54] sm:$0xf] %v1036
  %1165 = vst [vmem:[%s3 + $0x58] sm:$0xf] %v1037
  %1166 = vst [vmem:[%s3 + $0x5c] sm:$0xf] %v1038
  %1167 = vst [vmem:[%s3 + $0x60] sm:$0xf] %v1039
  %1168 = vst [vmem:[%s3 + $0x64] sm:$0xf] %v1040
  %1169 = vst [vmem:[%s3 + $0x68] sm:$0xf] %v1041
  %1170 = vst [vmem:[%s3 + $0x6c] sm:$0xf] %v1042
  %1171 = vst [vmem:[%s3 + $0x70] sm:$0xf] %v1043
  %1172 = vst [vmem:[%s3 + $0x74] sm:$0xf] %v1044
  %1173 = vst [vmem:[%s3 + $0x78] sm:$0xf] %v1045
  %1174 = vst [vmem:[%s3 + $0x7c] sm:$0xf] %v1046
  %1175 = vst [vmem:[%s3 + $0x80] sm:$0xf] %v1047
  %1176 = vst [vmem:[%s3 + $0x84] sm:$0xf] %v1048
  %1177 = vst [vmem:[%s3 + $0x88] sm:$0xf] %v1049
  %1178 = vst [vmem:[%s3 + $0x8c] sm:$0xf] %v1050
  %1179 = vst [vmem:[%s3 + $0x90] sm:$0xf] %v1051
  %1180 = vst [vmem:[%s3 + $0x94] sm:$0xf] %v1052
  %1181 = vst [vmem:[%s3 + $0x98] sm:$0xf] %v1053
  %1182 = vst [vmem:[%s3 + $0x9c] sm:$0xf] %v1054
  %1183 = vst [vmem:[%s3 + $0xa0] sm:$0xf] %v1055
  %1184 = vst [vmem:[%s3 + $0xa4] sm:$0xf] %v1056
  %1185 = vst [vmem:[%s3 + $0xa8] sm:$0xf] %v1057
  %1186 = vst [vmem:[%s3 + $0xac] sm:$0xf] %v1058
  %1187 = vst [vmem:[%s3 + $0xb0] sm:$0xf] %v1059
  %1188 = vst [vmem:[%s3 + $0xb4] sm:$0xf] %v1060
  %1189 = vst [vmem:[%s3 + $0xb8] sm:$0xf] %v1061
  %1190 = vst [vmem:[%s3 + $0xbc] sm:$0xf] %v1062
  %1191 = vst [vmem:[%s3 + $0xc0] sm:$0xf] %v1063
  %1192 = vst [vmem:[%s3 + $0xc4] sm:$0xf] %v1064
  %1193 = vst [vmem:[%s3 + $0xc8] sm:$0xf] %v1065
  %1194 = vst [vmem:[%s3 + $0xcc] sm:$0xf] %v1066
  %1195 = vst [vmem:[%s3 + $0xd0] sm:$0xf] %v1067
  %1196 = vst [vmem:[%s3 + $0xd4] sm:$0xf] %v1068
  %1197 = vst [vmem:[%s3 + $0xd8] sm:$0xf] %v1069
  %1198 = vst [vmem:[%s3 + $0xdc] sm:$0xf] %v1070
  %1199 = vst [vmem:[%s3 + $0xe0] sm:$0xf] %v1071
  %1200 = vst [vmem:[%s3 + $0xe4] sm:$0xf] %v1072
  %1201 = vst [vmem:[%s3 + $0xe8] sm:$0xf] %v1073
  %1202 = vst [vmem:[%s3 + $0xec] sm:$0xf] %v1074
  %1203 = vst [vmem:[%s3 + $0xf0] sm:$0xf] %v1075
  %1204 = vst [vmem:[%s3 + $0xf4] sm:$0xf] %v1076
  %1205 = vst [vmem:[%s3 + $0xf8] sm:$0xf] %v1077
  %1206 = vst [vmem:[%s3 + $0xfc] sm:$0xf] %v1078
  // Predicated region
  $region14: #{a_call__.3} parent=0 // pred_check
    _
  $region15: #{a_call__.3} parent=0 // pred_check_branch
    %1208 = sbr.rel (0) target = $region17
  $region16: #{a_call__.3} parent=0 // pred_region
    _
  $region17: #{a_call__.3} parent=0 // pred_fallthru
    _
  // Predicated region
  $region18: #{a_call__.3} parent=0 // pred_check
    _
  $region19: #{a_call__.3} parent=0 // pred_check_branch
    %1210 = sbr.rel (0) target = $region21
  $region20: #{a_call__.3} parent=0 // pred_region
    _
  $region21: #{a_call__.3} parent=0 // pred_fallthru
    _

// kernel: a_call__.4
$region0: #{a_call__.4}
  #allocation0 [shape = 'u32[]', space=smem, size = 0x4, offset = 0x4, fixed_abs, tag = 'smem constant byte address 0x4 - core index']
  #allocation1 [shape = 'u32[144,128]{1,0:T(1,128)}', space=vmem, size = 0x12000, scoped, tag = 'internal scratch']
  %s0 = inlined_call_operand.vmem [shape: bf16[128,1152], index: 0, kind: input, shape index: {}]
  %s1 = inlined_call_operand.vmem [shape: bf16[1152,128], index: 1, kind: input, shape index: {}]
  %s2 = inlined_call_operand.vmem [shape: f32[1,128], index: 2, kind: input, shape index: {}]
  %s3 = inlined_call_operand.vmem [shape: bf16[128,128], index: 3, kind: output, shape index: {}]
  %s4 = sld [smem:[#allocation0]]
  $region22: #{a_call__.4} parent=0
    _
  %s6 = ssub.s32 1, %s4
  %s7 = scalar_select 0, %s6, %s4
  // Predicated region
  $region2: #{a_call__.4} parent=0 // pred_check
    _
  $region3: #{a_call__.4} parent=0 // pred_check_branch
    %9 = sbr.rel (0) target = $region5
  $region4: #{a_call__.4} parent=0 // pred_region
    _
  $region5: #{a_call__.4} parent=0 // pred_fallthru
    _
  // Predicated region
  $region6: #{a_call__.4} parent=0 // pred_check
    _
  $region7: #{a_call__.4} parent=0 // pred_check_branch
    %11 = sbr.rel (0) target = $region9
  $region8: #{a_call__.4} parent=0 // pred_region
    _
  $region9: #{a_call__.4} parent=0 // pred_fallthru
    _
  // Predicated region
  $region10: #{a_call__.4} parent=0 // pred_check
    _
  $region11: #{a_call__.4} parent=0 // pred_check_branch
    %13 = sbr.rel (0) target = $region13
  $region12: #{a_call__.4} parent=0 // pred_region
    _
  $region13: #{a_call__.4} parent=0 // pred_fallthru
    _
  %v15 = vld [vmem:[%s0] sm:$0xff]
  %v16 = vld [vmem:[%s0 + $0x8] sm:$0xff]
  %v17 = vld [vmem:[%s0 + $0x10] sm:$0xff]
  %v18 = vld [vmem:[%s0 + $0x18] sm:$0xff]
  %v19 = vld [vmem:[%s0 + $0x20] sm:$0xf]
  %v20 = vld [vmem:[%s0 + $0x24] sm:$0xff]
  %v21 = vld [vmem:[%s0 + $0x2c] sm:$0xff]
  %v22 = vld [vmem:[%s0 + $0x34] sm:$0xff]
  %v23 = vld [vmem:[%s0 + $0x3c] sm:$0xff]
  %v24 = vld [vmem:[%s0 + $0x44] sm:$0xf]
  %v25 = vld [vmem:[%s0 + $0x48] sm:$0xff]
  %v26 = vld [vmem:[%s0 + $0x50] sm:$0xff]
  %v27 = vld [vmem:[%s0 + $0x58] sm:$0xff]
  %v28 = vld [vmem:[%s0 + $0x60] sm:$0xff]
  %v29 = vld [vmem:[%s0 + $0x68] sm:$0xf]
  %v30 = vld [vmem:[%s0 + $0x6c] sm:$0xff]
  %v31 = vld [vmem:[%s0 + $0x74] sm:$0xff]
  %v32 = vld [vmem:[%s0 + $0x7c] sm:$0xff]
  %v33 = vld [vmem:[%s0 + $0x84] sm:$0xff]
  %v34 = vld [vmem:[%s0 + $0x8c] sm:$0xf]
  %v35 = vld [vmem:[%s0 + $0x90] sm:$0xff]
  %v36 = vld [vmem:[%s0 + $0x98] sm:$0xff]
  %v37 = vld [vmem:[%s0 + $0xa0] sm:$0xff]
  %v38 = vld [vmem:[%s0 + $0xa8] sm:$0xff]
  %v39 = vld [vmem:[%s0 + $0xb0] sm:$0xf]
  %v40 = vld [vmem:[%s0 + $0xb4] sm:$0xff]
  %v41 = vld [vmem:[%s0 + $0xbc] sm:$0xff]
  %v42 = vld [vmem:[%s0 + $0xc4] sm:$0xff]
  %v43 = vld [vmem:[%s0 + $0xcc] sm:$0xff]
  %v44 = vld [vmem:[%s0 + $0xd4] sm:$0xf]
  %v45 = vld [vmem:[%s0 + $0xd8] sm:$0xff]
  %v46 = vld [vmem:[%s0 + $0xe0] sm:$0xff]
  %v47 = vld [vmem:[%s0 + $0xe8] sm:$0xff]
  %v48 = vld [vmem:[%s0 + $0xf0] sm:$0xff]
  %v49 = vld [vmem:[%s0 + $0xf8] sm:$0xf]
  %v50 = vld [vmem:[%s0 + $0xfc] sm:$0xff]
  %v51 = vld [vmem:[%s0 + $0x104] sm:$0xff]
  %v52 = vld [vmem:[%s0 + $0x10c] sm:$0xff]
  %v53 = vld [vmem:[%s0 + $0x114] sm:$0xff]
  %v54 = vld [vmem:[%s0 + $0x11c] sm:$0xf]
  %v55 = vld [vmem:[%s0 + $0x120] sm:$0xff]
  %v56 = vld [vmem:[%s0 + $0x128] sm:$0xff]
  %v57 = vld [vmem:[%s0 + $0x130] sm:$0xff]
  %v58 = vld [vmem:[%s0 + $0x138] sm:$0xff]
  %v59 = vld [vmem:[%s0 + $0x140] sm:$0xf]
  %v60 = vld [vmem:[%s0 + $0x144] sm:$0xff]
  %v61 = vld [vmem:[%s0 + $0x14c] sm:$0xff]
  %v62 = vld [vmem:[%s0 + $0x154] sm:$0xff]
  %v63 = vld [vmem:[%s0 + $0x15c] sm:$0xff]
  %v64 = vld [vmem:[%s0 + $0x164] sm:$0xf]
  %v65 = vld [vmem:[%s0 + $0x168] sm:$0xff]
  %v66 = vld [vmem:[%s0 + $0x170] sm:$0xff]
  %v67 = vld [vmem:[%s0 + $0x178] sm:$0xff]
  %v68 = vld [vmem:[%s0 + $0x180] sm:$0xff]
  %v69 = vld [vmem:[%s0 + $0x188] sm:$0xf]
  %v70 = vld [vmem:[%s0 + $0x18c] sm:$0xff]
  %v71 = vld [vmem:[%s0 + $0x194] sm:$0xff]
  %v72 = vld [vmem:[%s0 + $0x19c] sm:$0xff]
  %v73 = vld [vmem:[%s0 + $0x1a4] sm:$0xff]
  %v74 = vld [vmem:[%s0 + $0x1ac] sm:$0xf]
  %v75 = vld [vmem:[%s0 + $0x1b0] sm:$0xff]
  %v76 = vld [vmem:[%s0 + $0x1b8] sm:$0xff]
  %v77 = vld [vmem:[%s0 + $0x1c0] sm:$0xff]
  %v78 = vld [vmem:[%s0 + $0x1c8] sm:$0xff]
  %v79 = vld [vmem:[%s0 + $0x1d0] sm:$0xf]
  %v80 = vld [vmem:[%s0 + $0x1d4] sm:$0xff]
  %v81 = vld [vmem:[%s0 + $0x1dc] sm:$0xff]
  %v82 = vld [vmem:[%s0 + $0x1e4] sm:$0xff]
  %v83 = vld [vmem:[%s0 + $0x1ec] sm:$0xff]
  %v84 = vld [vmem:[%s0 + $0x1f4] sm:$0xf]
  %v85 = vld [vmem:[%s0 + $0x1f8] sm:$0xff]
  %v86 = vld [vmem:[%s0 + $0x200] sm:$0xff]
  %v87 = vld [vmem:[%s0 + $0x208] sm:$0xff]
  %v88 = vld [vmem:[%s0 + $0x210] sm:$0xff]
  %v89 = vld [vmem:[%s0 + $0x218] sm:$0xf]
  %v90 = vld [vmem:[%s0 + $0x21c] sm:$0xff]
  %v91 = vld [vmem:[%s0 + $0x224] sm:$0xff]
  %v92 = vld [vmem:[%s0 + $0x22c] sm:$0xff]
  %v93 = vld [vmem:[%s0 + $0x234] sm:$0xff]
  %v94 = vld [vmem:[%s0 + $0x23c] sm:$0xf]
  %v95 = vld [vmem:[%s1] sm:$0xf]
  %v96 = vld [vmem:[%s1 + $0x4] sm:$0xf]
  %v97 = vld [vmem:[%s1 + $0x8] sm:$0xf]
  %v98 = vld [vmem:[%s1 + $0xc] sm:$0xf]
  %v99 = vld [vmem:[%s1 + $0x10] sm:$0xf]
  %v100 = vld [vmem:[%s1 + $0x14] sm:$0xf]
  %v101 = vld [vmem:[%s1 + $0x18] sm:$0xf]
  %v102 = vld [vmem:[%s1 + $0x1c] sm:$0xf]
  %v103 = vld [vmem:[%s1 + $0x20] sm:$0xf]
  %v104 = vld [vmem:[%s1 + $0x24] sm:$0xf]
  %v105 = vld [vmem:[%s1 + $0x28] sm:$0xf]
  %v106 = vld [vmem:[%s1 + $0x2c] sm:$0xf]
  %v107 = vld [vmem:[%s1 + $0x30] sm:$0xf]
  %v108 = vld [vmem:[%s1 + $0x34] sm:$0xf]
  %v109 = vld [vmem:[%s1 + $0x38] sm:$0xf]
  %v110 = vld [vmem:[%s1 + $0x3c] sm:$0xf]
  %v111 = vld [vmem:[%s1 + $0x40] sm:$0xf]
  %v112 = vld [vmem:[%s1 + $0x44] sm:$0xf]
  %v113 = vld [vmem:[%s1 + $0x48] sm:$0xf]
  %v114 = vld [vmem:[%s1 + $0x4c] sm:$0xf]
  %v115 = vld [vmem:[%s1 + $0x50] sm:$0xf]
  %v116 = vld [vmem:[%s1 + $0x54] sm:$0xf]
  %v117 = vld [vmem:[%s1 + $0x58] sm:$0xf]
  %v118 = vld [vmem:[%s1 + $0x5c] sm:$0xf]
  %v119 = vld [vmem:[%s1 + $0x60] sm:$0xf]
  %v120 = vld [vmem:[%s1 + $0x64] sm:$0xf]
  %v121 = vld [vmem:[%s1 + $0x68] sm:$0xf]
  %v122 = vld [vmem:[%s1 + $0x6c] sm:$0xf]
  %v123 = vld [vmem:[%s1 + $0x70] sm:$0xf]
  %v124 = vld [vmem:[%s1 + $0x74] sm:$0xf]
  %v125 = vld [vmem:[%s1 + $0x78] sm:$0xf]
  %v126 = vld [vmem:[%s1 + $0x7c] sm:$0xf]
  %v127 = vld [vmem:[%s1 + $0x80] sm:$0xf]
  %v128 = vld [vmem:[%s1 + $0x84] sm:$0xf]
  %v129 = vld [vmem:[%s1 + $0x88] sm:$0xf]
  %v130 = vld [vmem:[%s1 + $0x8c] sm:$0xf]
  %v131 = vld [vmem:[%s1 + $0x90] sm:$0xf]
  %v132 = vld [vmem:[%s1 + $0x94] sm:$0xf]
  %v133 = vld [vmem:[%s1 + $0x98] sm:$0xf]
  %v134 = vld [vmem:[%s1 + $0x9c] sm:$0xf]
  %v135 = vld [vmem:[%s1 + $0xa0] sm:$0xf]
  %v136 = vld [vmem:[%s1 + $0xa4] sm:$0xf]
  %v137 = vld [vmem:[%s1 + $0xa8] sm:$0xf]
  %v138 = vld [vmem:[%s1 + $0xac] sm:$0xf]
  %v139 = vld [vmem:[%s1 + $0xb0] sm:$0xf]
  %v140 = vld [vmem:[%s1 + $0xb4] sm:$0xf]
  %v141 = vld [vmem:[%s1 + $0xb8] sm:$0xf]
  %v142 = vld [vmem:[%s1 + $0xbc] sm:$0xf]
  %v143 = vld [vmem:[%s1 + $0xc0] sm:$0xf]
  %v144 = vld [vmem:[%s1 + $0xc4] sm:$0xf]
  %v145 = vld [vmem:[%s1 + $0xc8] sm:$0xf]
  %v146 = vld [vmem:[%s1 + $0xcc] sm:$0xf]
  %v147 = vld [vmem:[%s1 + $0xd0] sm:$0xf]
  %v148 = vld [vmem:[%s1 + $0xd4] sm:$0xf]
  %v149 = vld [vmem:[%s1 + $0xd8] sm:$0xf]
  %v150 = vld [vmem:[%s1 + $0xdc] sm:$0xf]
  %v151 = vld [vmem:[%s1 + $0xe0] sm:$0xf]
  %v152 = vld [vmem:[%s1 + $0xe4] sm:$0xf]
  %v153 = vld [vmem:[%s1 + $0xe8] sm:$0xf]
  %v154 = vld [vmem:[%s1 + $0xec] sm:$0xf]
  %v155 = vld [vmem:[%s1 + $0xf0] sm:$0xf]
  %v156 = vld [vmem:[%s1 + $0xf4] sm:$0xf]
  %v157 = vld [vmem:[%s1 + $0xf8] sm:$0xf]
  %v158 = vld [vmem:[%s1 + $0xfc] sm:$0xf]
  %v159 = vld [vmem:[%s1 + $0x100] sm:$0xf]
  %v160 = vld [vmem:[%s1 + $0x104] sm:$0xf]
  %v161 = vld [vmem:[%s1 + $0x108] sm:$0xf]
  %v162 = vld [vmem:[%s1 + $0x10c] sm:$0xf]
  %v163 = vld [vmem:[%s1 + $0x110] sm:$0xf]
  %v164 = vld [vmem:[%s1 + $0x114] sm:$0xf]
  %v165 = vld [vmem:[%s1 + $0x118] sm:$0xf]
  %v166 = vld [vmem:[%s1 + $0x11c] sm:$0xf]
  %v167 = vld [vmem:[%s1 + $0x120] sm:$0xf]
  %v168 = vld [vmem:[%s1 + $0x124] sm:$0xf]
  %v169 = vld [vmem:[%s1 + $0x128] sm:$0xf]
  %v170 = vld [vmem:[%s1 + $0x12c] sm:$0xf]
  %v171 = vld [vmem:[%s1 + $0x130] sm:$0xf]
  %v172 = vld [vmem:[%s1 + $0x134] sm:$0xf]
  %v173 = vld [vmem:[%s1 + $0x138] sm:$0xf]
  %v174 = vld [vmem:[%s1 + $0x13c] sm:$0xf]
  %v175 = vld [vmem:[%s1 + $0x140] sm:$0xf]
  %v176 = vld [vmem:[%s1 + $0x144] sm:$0xf]
  %v177 = vld [vmem:[%s1 + $0x148] sm:$0xf]
  %v178 = vld [vmem:[%s1 + $0x14c] sm:$0xf]
  %v179 = vld [vmem:[%s1 + $0x150] sm:$0xf]
  %v180 = vld [vmem:[%s1 + $0x154] sm:$0xf]
  %v181 = vld [vmem:[%s1 + $0x158] sm:$0xf]
  %v182 = vld [vmem:[%s1 + $0x15c] sm:$0xf]
  %v183 = vld [vmem:[%s1 + $0x160] sm:$0xf]
  %v184 = vld [vmem:[%s1 + $0x164] sm:$0xf]
  %v185 = vld [vmem:[%s1 + $0x168] sm:$0xf]
  %v186 = vld [vmem:[%s1 + $0x16c] sm:$0xf]
  %v187 = vld [vmem:[%s1 + $0x170] sm:$0xf]
  %v188 = vld [vmem:[%s1 + $0x174] sm:$0xf]
  %v189 = vld [vmem:[%s1 + $0x178] sm:$0xf]
  %v190 = vld [vmem:[%s1 + $0x17c] sm:$0xf]
  %v191 = vld [vmem:[%s1 + $0x180] sm:$0xf]
  %v192 = vld [vmem:[%s1 + $0x184] sm:$0xf]
  %v193 = vld [vmem:[%s1 + $0x188] sm:$0xf]
  %v194 = vld [vmem:[%s1 + $0x18c] sm:$0xf]
  %v195 = vld [vmem:[%s1 + $0x190] sm:$0xf]
  %v196 = vld [vmem:[%s1 + $0x194] sm:$0xf]
  %v197 = vld [vmem:[%s1 + $0x198] sm:$0xf]
  %v198 = vld [vmem:[%s1 + $0x19c] sm:$0xf]
  %v199 = vld [vmem:[%s1 + $0x1a0] sm:$0xf]
  %v200 = vld [vmem:[%s1 + $0x1a4] sm:$0xf]
  %v201 = vld [vmem:[%s1 + $0x1a8] sm:$0xf]
  %v202 = vld [vmem:[%s1 + $0x1ac] sm:$0xf]
  %v203 = vld [vmem:[%s1 + $0x1b0] sm:$0xf]
  %v204 = vld [vmem:[%s1 + $0x1b4] sm:$0xf]
  %v205 = vld [vmem:[%s1 + $0x1b8] sm:$0xf]
  %v206 = vld [vmem:[%s1 + $0x1bc] sm:$0xf]
  %v207 = vld [vmem:[%s1 + $0x1c0] sm:$0xf]
  %v208 = vld [vmem:[%s1 + $0x1c4] sm:$0xf]
  %v209 = vld [vmem:[%s1 + $0x1c8] sm:$0xf]
  %v210 = vld [vmem:[%s1 + $0x1cc] sm:$0xf]
  %v211 = vld [vmem:[%s1 + $0x1d0] sm:$0xf]
  %v212 = vld [vmem:[%s1 + $0x1d4] sm:$0xf]
  %v213 = vld [vmem:[%s1 + $0x1d8] sm:$0xf]
  %v214 = vld [vmem:[%s1 + $0x1dc] sm:$0xf]
  %v215 = vld [vmem:[%s1 + $0x1e0] sm:$0xf]
  %v216 = vld [vmem:[%s1 + $0x1e4] sm:$0xf]
  %v217 = vld [vmem:[%s1 + $0x1e8] sm:$0xf]
  %v218 = vld [vmem:[%s1 + $0x1ec] sm:$0xf]
  %v219 = vld [vmem:[%s1 + $0x1f0] sm:$0xf]
  %v220 = vld [vmem:[%s1 + $0x1f4] sm:$0xf]
  %v221 = vld [vmem:[%s1 + $0x1f8] sm:$0xf]
  %v222 = vld [vmem:[%s1 + $0x1fc] sm:$0xf]
  %v223 = vld [vmem:[%s1 + $0x200] sm:$0xf]
  %v224 = vld [vmem:[%s1 + $0x204] sm:$0xf]
  %v225 = vld [vmem:[%s1 + $0x208] sm:$0xf]
  %v226 = vld [vmem:[%s1 + $0x20c] sm:$0xf]
  %v227 = vld [vmem:[%s1 + $0x210] sm:$0xf]
  %v228 = vld [vmem:[%s1 + $0x214] sm:$0xf]
  %v229 = vld [vmem:[%s1 + $0x218] sm:$0xf]
  %v230 = vld [vmem:[%s1 + $0x21c] sm:$0xf]
  %v231 = vld [vmem:[%s1 + $0x220] sm:$0xf]
  %v232 = vld [vmem:[%s1 + $0x224] sm:$0xf]
  %v233 = vld [vmem:[%s1 + $0x228] sm:$0xf]
  %v234 = vld [vmem:[%s1 + $0x22c] sm:$0xf]
  %v235 = vld [vmem:[%s1 + $0x230] sm:$0xf]
  %v236 = vld [vmem:[%s1 + $0x234] sm:$0xf]
  %v237 = vld [vmem:[%s1 + $0x238] sm:$0xf]
  %v238 = vld [vmem:[%s1 + $0x23c] sm:$0xf]
  %v239 = vld [vmem:[%s2] sm:$0x1]
  %v241 = vlaneseq
  %v242 = vshrl.u32 %v241, 7
  %v243 = vsub.s32 0, %v242
  %v244 = vrot.slane %v239, %v243
  %v326 = vunpack.c.l.b16 %v15
  %v327 = vunpack.c.h.b16 %v15
  %v328 = vunpack.c.l.b16 %v16
  %v329 = vunpack.c.h.b16 %v16
  %v330 = vunpack.c.l.b16 %v17
  %v331 = vunpack.c.h.b16 %v17
  %v332 = vunpack.c.l.b16 %v18
  %v333 = vunpack.c.h.b16 %v18
  %v334 = vunpack.c.l.b16 %v19
  %v335 = vunpack.c.l.b16 %v20
  %v336 = vunpack.c.h.b16 %v20
  %v337 = vunpack.c.l.b16 %v21
  %v338 = vunpack.c.h.b16 %v21
  %v339 = vunpack.c.l.b16 %v22
  %v340 = vunpack.c.h.b16 %v22
  %v341 = vunpack.c.l.b16 %v23
  %v342 = vunpack.c.h.b16 %v23
  %v343 = vunpack.c.l.b16 %v24
  %v344 = vunpack.c.l.b16 %v25
  %v345 = vunpack.c.h.b16 %v25
  %v346 = vunpack.c.l.b16 %v26
  %v347 = vunpack.c.h.b16 %v26
  %v348 = vunpack.c.l.b16 %v27
  %v349 = vunpack.c.h.b16 %v27
  %v350 = vunpack.c.l.b16 %v28
  %v351 = vunpack.c.h.b16 %v28
  %v352 = vunpack.c.l.b16 %v29
  %v353 = vunpack.c.l.b16 %v30
  %v354 = vunpack.c.h.b16 %v30
  %v355 = vunpack.c.l.b16 %v31
  %v356 = vunpack.c.h.b16 %v31
  %v357 = vunpack.c.l.b16 %v32
  %v358 = vunpack.c.h.b16 %v32
  %v359 = vunpack.c.l.b16 %v33
  %v360 = vunpack.c.h.b16 %v33
  %v361 = vunpack.c.l.b16 %v34
  %v362 = vunpack.c.l.b16 %v35
  %v363 = vunpack.c.h.b16 %v35
  %v364 = vunpack.c.l.b16 %v36
  %v365 = vunpack.c.h.b16 %v36
  %v366 = vunpack.c.l.b16 %v37
  %v367 = vunpack.c.h.b16 %v37
  %v368 = vunpack.c.l.b16 %v38
  %v369 = vunpack.c.h.b16 %v38
  %v370 = vunpack.c.l.b16 %v39
  %v371 = vunpack.c.l.b16 %v40
  %v372 = vunpack.c.h.b16 %v40
  %v373 = vunpack.c.l.b16 %v41
  %v374 = vunpack.c.h.b16 %v41
  %v375 = vunpack.c.l.b16 %v42
  %v376 = vunpack.c.h.b16 %v42
  %v377 = vunpack.c.l.b16 %v43
  %v378 = vunpack.c.h.b16 %v43
  %v379 = vunpack.c.l.b16 %v44
  %v380 = vunpack.c.l.b16 %v45
  %v381 = vunpack.c.h.b16 %v45
  %v382 = vunpack.c.l.b16 %v46
  %v383 = vunpack.c.h.b16 %v46
  %v384 = vunpack.c.l.b16 %v47
  %v385 = vunpack.c.h.b16 %v47
  %v386 = vunpack.c.l.b16 %v48
  %v387 = vunpack.c.h.b16 %v48
  %v388 = vunpack.c.l.b16 %v49
  %v389 = vunpack.c.l.b16 %v50
  %v390 = vunpack.c.h.b16 %v50
  %v391 = vunpack.c.l.b16 %v51
  %v392 = vunpack.c.h.b16 %v51
  %v393 = vunpack.c.l.b16 %v52
  %v394 = vunpack.c.h.b16 %v52
  %v395 = vunpack.c.l.b16 %v53
  %v396 = vunpack.c.h.b16 %v53
  %v397 = vunpack.c.l.b16 %v54
  %v398 = vunpack.c.l.b16 %v55
  %v399 = vunpack.c.h.b16 %v55
  %v400 = vunpack.c.l.b16 %v56
  %v401 = vunpack.c.h.b16 %v56
  %v402 = vunpack.c.l.b16 %v57
  %v403 = vunpack.c.h.b16 %v57
  %v404 = vunpack.c.l.b16 %v58
  %v405 = vunpack.c.h.b16 %v58
  %v406 = vunpack.c.l.b16 %v59
  %v407 = vunpack.c.l.b16 %v60
  %v408 = vunpack.c.h.b16 %v60
  %v409 = vunpack.c.l.b16 %v61
  %v410 = vunpack.c.h.b16 %v61
  %v411 = vunpack.c.l.b16 %v62
  %v412 = vunpack.c.h.b16 %v62
  %v413 = vunpack.c.l.b16 %v63
  %v414 = vunpack.c.h.b16 %v63
  %v415 = vunpack.c.l.b16 %v64
  %v416 = vunpack.c.l.b16 %v65
  %v417 = vunpack.c.h.b16 %v65
  %v418 = vunpack.c.l.b16 %v66
  %v419 = vunpack.c.h.b16 %v66
  %v420 = vunpack.c.l.b16 %v67
  %v421 = vunpack.c.h.b16 %v67
  %v422 = vunpack.c.l.b16 %v68
  %v423 = vunpack.c.h.b16 %v68
  %v424 = vunpack.c.l.b16 %v69
  %v425 = vunpack.c.l.b16 %v70
  %v426 = vunpack.c.h.b16 %v70
  %v427 = vunpack.c.l.b16 %v71
  %v428 = vunpack.c.h.b16 %v71
  %v429 = vunpack.c.l.b16 %v72
  %v430 = vunpack.c.h.b16 %v72
  %v431 = vunpack.c.l.b16 %v73
  %v432 = vunpack.c.h.b16 %v73
  %v433 = vunpack.c.l.b16 %v74
  %v434 = vunpack.c.l.b16 %v75
  %v435 = vunpack.c.h.b16 %v75
  %v436 = vunpack.c.l.b16 %v76
  %v437 = vunpack.c.h.b16 %v76
  %v438 = vunpack.c.l.b16 %v77
  %v439 = vunpack.c.h.b16 %v77
  %v440 = vunpack.c.l.b16 %v78
  %v441 = vunpack.c.h.b16 %v78
  %v442 = vunpack.c.l.b16 %v79
  %v443 = vunpack.c.l.b16 %v80
  %v444 = vunpack.c.h.b16 %v80
  %v445 = vunpack.c.l.b16 %v81
  %v446 = vunpack.c.h.b16 %v81
  %v447 = vunpack.c.l.b16 %v82
  %v448 = vunpack.c.h.b16 %v82
  %v449 = vunpack.c.l.b16 %v83
  %v450 = vunpack.c.h.b16 %v83
  %v451 = vunpack.c.l.b16 %v84
  %v452 = vunpack.c.l.b16 %v85
  %v453 = vunpack.c.h.b16 %v85
  %v454 = vunpack.c.l.b16 %v86
  %v455 = vunpack.c.h.b16 %v86
  %v456 = vunpack.c.l.b16 %v87
  %v457 = vunpack.c.h.b16 %v87
  %v458 = vunpack.c.l.b16 %v88
  %v459 = vunpack.c.h.b16 %v88
  %v460 = vunpack.c.l.b16 %v89
  %v461 = vunpack.c.l.b16 %v90
  %v462 = vunpack.c.h.b16 %v90
  %v463 = vunpack.c.l.b16 %v91
  %v464 = vunpack.c.h.b16 %v91
  %v465 = vunpack.c.l.b16 %v92
  %v466 = vunpack.c.h.b16 %v92
  %v467 = vunpack.c.l.b16 %v93
  %v468 = vunpack.c.h.b16 %v93
  %v469 = vunpack.c.l.b16 %v94
  %v470 = vpack.c.b16 %v335, %v326
  %v471 = vpack.c.b16 %v336, %v327
  %v472 = vpack.c.b16 %v337, %v328
  %v473 = vpack.c.b16 %v338, %v329
  %v474 = vpack.c.b16 %v339, %v330
  %v475 = vpack.c.b16 %v340, %v331
  %v476 = vpack.c.b16 %v341, %v332
  %v477 = vpack.c.b16 %v342, %v333
  %v478 = vpack.c.b16 %v343, %v334
  %v479 = vpack.c.b16 %v353, %v344
  %v480 = vpack.c.b16 %v354, %v345
  %v481 = vpack.c.b16 %v355, %v346
  %v482 = vpack.c.b16 %v356, %v347
  %v483 = vpack.c.b16 %v357, %v348
  %v484 = vpack.c.b16 %v358, %v349
  %v485 = vpack.c.b16 %v359, %v350
  %v486 = vpack.c.b16 %v360, %v351
  %v487 = vpack.c.b16 %v361, %v352
  %v488 = vpack.c.b16 %v371, %v362
  %v489 = vpack.c.b16 %v372, %v363
  %v490 = vpack.c.b16 %v373, %v364
  %v491 = vpack.c.b16 %v374, %v365
  %v492 = vpack.c.b16 %v375, %v366
  %v493 = vpack.c.b16 %v376, %v367
  %v494 = vpack.c.b16 %v377, %v368
  %v495 = vpack.c.b16 %v378, %v369
  %v496 = vpack.c.b16 %v379, %v370
  %v497 = vpack.c.b16 %v389, %v380
  %v498 = vpack.c.b16 %v390, %v381
  %v499 = vpack.c.b16 %v391, %v382
  %v500 = vpack.c.b16 %v392, %v383
  %v501 = vpack.c.b16 %v393, %v384
  %v502 = vpack.c.b16 %v394, %v385
  %v503 = vpack.c.b16 %v395, %v386
  %v504 = vpack.c.b16 %v396, %v387
  %v505 = vpack.c.b16 %v397, %v388
  %v506 = vpack.c.b16 %v407, %v398
  %v507 = vpack.c.b16 %v408, %v399
  %v508 = vpack.c.b16 %v409, %v400
  %v509 = vpack.c.b16 %v410, %v401
  %v510 = vpack.c.b16 %v411, %v402
  %v511 = vpack.c.b16 %v412, %v403
  %v512 = vpack.c.b16 %v413, %v404
  %v513 = vpack.c.b16 %v414, %v405
  %v514 = vpack.c.b16 %v415, %v406
  %v515 = vpack.c.b16 %v425, %v416
  %v516 = vpack.c.b16 %v426, %v417
  %v517 = vpack.c.b16 %v427, %v418
  %v518 = vpack.c.b16 %v428, %v419
  %v519 = vpack.c.b16 %v429, %v420
  %v520 = vpack.c.b16 %v430, %v421
  %v521 = vpack.c.b16 %v431, %v422
  %v522 = vpack.c.b16 %v432, %v423
  %v523 = vpack.c.b16 %v433, %v424
  %v524 = vpack.c.b16 %v443, %v434
  %v525 = vpack.c.b16 %v444, %v435
  %v526 = vpack.c.b16 %v445, %v436
  %v527 = vpack.c.b16 %v446, %v437
  %v528 = vpack.c.b16 %v447, %v438
  %v529 = vpack.c.b16 %v448, %v439
  %v530 = vpack.c.b16 %v449, %v440
  %v531 = vpack.c.b16 %v450, %v441
  %v532 = vpack.c.b16 %v451, %v442
  %v533 = vpack.c.b16 %v461, %v452
  %v534 = vpack.c.b16 %v462, %v453
  %v535 = vpack.c.b16 %v463, %v454
  %v536 = vpack.c.b16 %v464, %v455
  %v537 = vpack.c.b16 %v465, %v456
  %v538 = vpack.c.b16 %v466, %v457
  %v539 = vpack.c.b16 %v467, %v458
  %v540 = vpack.c.b16 %v468, %v459
  %v541 = vpack.c.b16 %v469, %v460
  %v758 = vunpack.c.l.b16 %v95
  %v759 = vunpack.c.l.b16 %v96
  %v760 = vunpack.c.l.b16 %v97
  %v761 = vunpack.c.l.b16 %v98
  %v762 = vunpack.c.l.b16 %v99
  %v763 = vunpack.c.l.b16 %v100
  %v764 = vunpack.c.l.b16 %v101
  %v765 = vunpack.c.l.b16 %v102
  %v766 = vunpack.c.l.b16 %v103
  %v767 = vunpack.c.l.b16 %v104
  %v768 = vunpack.c.l.b16 %v105
  %v769 = vunpack.c.l.b16 %v106
  %v770 = vunpack.c.l.b16 %v107
  %v771 = vunpack.c.l.b16 %v108
  %v772 = vunpack.c.l.b16 %v109
  %v773 = vunpack.c.l.b16 %v110
  %v774 = vunpack.c.l.b16 %v111
  %v775 = vunpack.c.l.b16 %v112
  %v776 = vunpack.c.l.b16 %v113
  %v777 = vunpack.c.l.b16 %v114
  %v778 = vunpack.c.l.b16 %v115
  %v779 = vunpack.c.l.b16 %v116
  %v780 = vunpack.c.l.b16 %v117
  %v781 = vunpack.c.l.b16 %v118
  %v782 = vunpack.c.l.b16 %v119
  %v783 = vunpack.c.l.b16 %v120
  %v784 = vunpack.c.l.b16 %v121
  %v785 = vunpack.c.l.b16 %v122
  %v786 = vunpack.c.l.b16 %v123
  %v787 = vunpack.c.l.b16 %v124
  %v788 = vunpack.c.l.b16 %v125
  %v789 = vunpack.c.l.b16 %v126
  %v790 = vunpack.c.l.b16 %v127
  %v791 = vunpack.c.l.b16 %v128
  %v792 = vunpack.c.l.b16 %v129
  %v793 = vunpack.c.l.b16 %v130
  %v794 = vunpack.c.l.b16 %v131
  %v795 = vunpack.c.l.b16 %v132
  %v796 = vunpack.c.l.b16 %v133
  %v797 = vunpack.c.l.b16 %v134
  %v798 = vunpack.c.l.b16 %v135
  %v799 = vunpack.c.l.b16 %v136
  %v800 = vunpack.c.l.b16 %v137
  %v801 = vunpack.c.l.b16 %v138
  %v802 = vunpack.c.l.b16 %v139
  %v803 = vunpack.c.l.b16 %v140
  %v804 = vunpack.c.l.b16 %v141
  %v805 = vunpack.c.l.b16 %v142
  %v806 = vunpack.c.l.b16 %v143
  %v807 = vunpack.c.l.b16 %v144
  %v808 = vunpack.c.l.b16 %v145
  %v809 = vunpack.c.l.b16 %v146
  %v810 = vunpack.c.l.b16 %v147
  %v811 = vunpack.c.l.b16 %v148
  %v812 = vunpack.c.l.b16 %v149
  %v813 = vunpack.c.l.b16 %v150
  %v814 = vunpack.c.l.b16 %v151
  %v815 = vunpack.c.l.b16 %v152
  %v816 = vunpack.c.l.b16 %v153
  %v817 = vunpack.c.l.b16 %v154
  %v818 = vunpack.c.l.b16 %v155
  %v819 = vunpack.c.l.b16 %v156
  %v820 = vunpack.c.l.b16 %v157
  %v821 = vunpack.c.l.b16 %v158
  %v822 = vunpack.c.l.b16 %v159
  %v823 = vunpack.c.l.b16 %v160
  %v824 = vunpack.c.l.b16 %v161
  %v825 = vunpack.c.l.b16 %v162
  %v826 = vunpack.c.l.b16 %v163
  %v827 = vunpack.c.l.b16 %v164
  %v828 = vunpack.c.l.b16 %v165
  %v829 = vunpack.c.l.b16 %v166
  %v830 = vunpack.c.l.b16 %v167
  %v831 = vunpack.c.l.b16 %v168
  %v832 = vunpack.c.l.b16 %v169
  %v833 = vunpack.c.l.b16 %v170
  %v834 = vunpack.c.l.b16 %v171
  %v835 = vunpack.c.l.b16 %v172
  %v836 = vunpack.c.l.b16 %v173
  %v837 = vunpack.c.l.b16 %v174
  %v838 = vunpack.c.l.b16 %v175
  %v839 = vunpack.c.l.b16 %v176
  %v840 = vunpack.c.l.b16 %v177
  %v841 = vunpack.c.l.b16 %v178
  %v842 = vunpack.c.l.b16 %v179
  %v843 = vunpack.c.l.b16 %v180
  %v844 = vunpack.c.l.b16 %v181
  %v845 = vunpack.c.l.b16 %v182
  %v846 = vunpack.c.l.b16 %v183
  %v847 = vunpack.c.l.b16 %v184
  %v848 = vunpack.c.l.b16 %v185
  %v849 = vunpack.c.l.b16 %v186
  %v850 = vunpack.c.l.b16 %v187
  %v851 = vunpack.c.l.b16 %v188
  %v852 = vunpack.c.l.b16 %v189
  %v853 = vunpack.c.l.b16 %v190
  %v854 = vunpack.c.l.b16 %v191
  %v855 = vunpack.c.l.b16 %v192
  %v856 = vunpack.c.l.b16 %v193
  %v857 = vunpack.c.l.b16 %v194
  %v858 = vunpack.c.l.b16 %v195
  %v859 = vunpack.c.l.b16 %v196
  %v860 = vunpack.c.l.b16 %v197
  %v861 = vunpack.c.l.b16 %v198
  %v862 = vunpack.c.l.b16 %v199
  %v863 = vunpack.c.l.b16 %v200
  %v864 = vunpack.c.l.b16 %v201
  %v865 = vunpack.c.l.b16 %v202
  %v866 = vunpack.c.l.b16 %v203
  %v867 = vunpack.c.l.b16 %v204
  %v868 = vunpack.c.l.b16 %v205
  %v869 = vunpack.c.l.b16 %v206
  %v870 = vunpack.c.l.b16 %v207
  %v871 = vunpack.c.l.b16 %v208
  %v872 = vunpack.c.l.b16 %v209
  %v873 = vunpack.c.l.b16 %v210
  %v874 = vunpack.c.l.b16 %v211
  %v875 = vunpack.c.l.b16 %v212
  %v876 = vunpack.c.l.b16 %v213
  %v877 = vunpack.c.l.b16 %v214
  %v878 = vunpack.c.l.b16 %v215
  %v879 = vunpack.c.l.b16 %v216
  %v880 = vunpack.c.l.b16 %v217
  %v881 = vunpack.c.l.b16 %v218
  %v882 = vunpack.c.l.b16 %v219
  %v883 = vunpack.c.l.b16 %v220
  %v884 = vunpack.c.l.b16 %v221
  %v885 = vunpack.c.l.b16 %v222
  %v886 = vunpack.c.l.b16 %v223
  %v887 = vunpack.c.l.b16 %v224
  %v888 = vunpack.c.l.b16 %v225
  %v889 = vunpack.c.l.b16 %v226
  %v890 = vunpack.c.l.b16 %v227
  %v891 = vunpack.c.l.b16 %v228
  %v892 = vunpack.c.l.b16 %v229
  %v893 = vunpack.c.l.b16 %v230
  %v894 = vunpack.c.l.b16 %v231
  %v895 = vunpack.c.l.b16 %v232
  %v896 = vunpack.c.l.b16 %v233
  %v897 = vunpack.c.l.b16 %v234
  %v898 = vunpack.c.l.b16 %v235
  %v899 = vunpack.c.l.b16 %v236
  %v900 = vunpack.c.l.b16 %v237
  %v901 = vunpack.c.l.b16 %v238
  %v902 = vpack.c.b16 %v759, %v758
  %v903 = vpack.c.b16 %v761, %v760
  %v904 = vpack.c.b16 %v763, %v762
  %v905 = vpack.c.b16 %v765, %v764
  %v906 = vpack.c.b16 %v767, %v766
  %v907 = vpack.c.b16 %v769, %v768
  %v908 = vpack.c.b16 %v771, %v770
  %v909 = vpack.c.b16 %v773, %v772
  %v910 = vpack.c.b16 %v775, %v774
  %v911 = vpack.c.b16 %v777, %v776
  %v912 = vpack.c.b16 %v779, %v778
  %v913 = vpack.c.b16 %v781, %v780
  %v914 = vpack.c.b16 %v783, %v782
  %v915 = vpack.c.b16 %v785, %v784
  %v916 = vpack.c.b16 %v787, %v786
  %v917 = vpack.c.b16 %v789, %v788
  %v918 = vpack.c.b16 %v791, %v790
  %v919 = vpack.c.b16 %v793, %v792
  %v920 = vpack.c.b16 %v795, %v794
  %v921 = vpack.c.b16 %v797, %v796
  %v922 = vpack.c.b16 %v799, %v798
  %v923 = vpack.c.b16 %v801, %v800
  %v924 = vpack.c.b16 %v803, %v802
  %v925 = vpack.c.b16 %v805, %v804
  %v926 = vpack.c.b16 %v807, %v806
  %v927 = vpack.c.b16 %v809, %v808
  %v928 = vpack.c.b16 %v811, %v810
  %v929 = vpack.c.b16 %v813, %v812
  %v930 = vpack.c.b16 %v815, %v814
  %v931 = vpack.c.b16 %v817, %v816
  %v932 = vpack.c.b16 %v819, %v818
  %v933 = vpack.c.b16 %v821, %v820
  %v934 = vpack.c.b16 %v823, %v822
  %v935 = vpack.c.b16 %v825, %v824
  %v936 = vpack.c.b16 %v827, %v826
  %v937 = vpack.c.b16 %v829, %v828
  %v938 = vpack.c.b16 %v831, %v830
  %v939 = vpack.c.b16 %v833, %v832
  %v940 = vpack.c.b16 %v835, %v834
  %v941 = vpack.c.b16 %v837, %v836
  %v942 = vpack.c.b16 %v839, %v838
  %v943 = vpack.c.b16 %v841, %v840
  %v944 = vpack.c.b16 %v843, %v842
  %v945 = vpack.c.b16 %v845, %v844
  %v946 = vpack.c.b16 %v847, %v846
  %v947 = vpack.c.b16 %v849, %v848
  %v948 = vpack.c.b16 %v851, %v850
  %v949 = vpack.c.b16 %v853, %v852
  %v950 = vpack.c.b16 %v855, %v854
  %v951 = vpack.c.b16 %v857, %v856
  %v952 = vpack.c.b16 %v859, %v858
  %v953 = vpack.c.b16 %v861, %v860
  %v954 = vpack.c.b16 %v863, %v862
  %v955 = vpack.c.b16 %v865, %v864
  %v956 = vpack.c.b16 %v867, %v866
  %v957 = vpack.c.b16 %v869, %v868
  %v958 = vpack.c.b16 %v871, %v870
  %v959 = vpack.c.b16 %v873, %v872
  %v960 = vpack.c.b16 %v875, %v874
  %v961 = vpack.c.b16 %v877, %v876
  %v962 = vpack.c.b16 %v879, %v878
  %v963 = vpack.c.b16 %v881, %v880
  %v964 = vpack.c.b16 %v883, %v882
  %v965 = vpack.c.b16 %v885, %v884
  %v966 = vpack.c.b16 %v887, %v886
  %v967 = vpack.c.b16 %v889, %v888
  %v968 = vpack.c.b16 %v891, %v890
  %v969 = vpack.c.b16 %v893, %v892
  %v970 = vpack.c.b16 %v895, %v894
  %v971 = vpack.c.b16 %v897, %v896
  %v972 = vpack.c.b16 %v899, %v898
  %v973 = vpack.c.b16 %v901, %v900
  %1046 = vmatprep.subr.bf16.mxu0 0
  %1047 = vmatpush1.bf16.msra.mxu0 %v902
  %1048 = vmatprep.subr.bf16.mxu0 0
  %1049 = vmatpush1.bf16.msra.mxu0 %v903
  %1050 = vmatprep.subr.bf16.mxu0 0
  %1051 = vmatpush1.bf16.msra.mxu0 %v904
  %1052 = vmatprep.subr.bf16.mxu0 0
  %1053 = vmatpush1.bf16.msra.mxu0 %v905
  %1054 = vmatprep.subr.bf16.mxu0 0
  %1055 = vmatpush1.bf16.msra.mxu0 %v906
  %1056 = vmatprep.subr.bf16.mxu0 0
  %1057 = vmatpush1.bf16.msra.mxu0 %v907
  %1058 = vmatprep.subr.bf16.mxu0 0
  %1059 = vmatpush1.bf16.msra.mxu0 %v908
  %1060 = vmatprep.subr.bf16.mxu0 0
  %1061 = vmatpush1.bf16.msra.mxu0 %v909
  %1062 = vmatprep.subr.bf16.mxu0 0
  %1063 = vmatpush1.bf16.msra.mxu0 %v910
  %1064 = vmatprep.subr.bf16.mxu0 0
  %1065 = vmatpush1.bf16.msra.mxu0 %v911
  %1066 = vmatprep.subr.bf16.mxu0 0
  %1067 = vmatpush1.bf16.msra.mxu0 %v912
  %1068 = vmatprep.subr.bf16.mxu0 0
  %1069 = vmatpush1.bf16.msra.mxu0 %v913
  %1070 = vmatprep.subr.bf16.mxu0 0
  %1071 = vmatpush1.bf16.msra.mxu0 %v914
  %1072 = vmatprep.subr.bf16.mxu0 0
  %1073 = vmatpush1.bf16.msra.mxu0 %v915
  %1074 = vmatprep.subr.bf16.mxu0 0
  %1075 = vmatpush1.bf16.msra.mxu0 %v916
  %1076 = vmatprep.subr.bf16.mxu0 0
  %1077 = vmatpush1.bf16.msra.mxu0 %v917
  %1078 = vmatprep.mubr.bf16.mxu0 %v471
  %1079 = vmatmul.mubr.bf16.gmra.mrb[0].mxu0 %v470
  %v1080 = vpop.f32.mrb[0].mxu0
  %v1081 = vadd.f32 %v244, %v1080
  %v1082 = vpop.f32.mrb[0].mxu0
  %v1083 = vpop.f32.mrb[0].mxu0
  %v1084 = vadd.f32 %v244, %v1083
  %v1085 = vpop.f32.mrb[0].mxu0
  %1086 = vmatprep.mubr.bf16.mxu0 %v480
  %1087 = vmatmul.mubr.bf16.gmra.mrb[0].mxu0 %v479
  %v1088 = vpop.f32.mrb[0].mxu0
  %v1089 = vadd.f32 %v244, %v1088
  %v1090 = vpop.f32.mrb[0].mxu0
  %v1091 = vpop.f32.mrb[0].mxu0
  %v1092 = vadd.f32 %v244, %v1091
  %v1093 = vpop.f32.mrb[0].mxu0
  %1094 = vmatprep.mubr.bf16.mxu0 %v489
  %1095 = vmatmul.mubr.bf16.gmra.mrb[0].mxu0 %v488
  %v1096 = vpop.f32.mrb[0].mxu0
  %v1097 = vadd.f32 %v244, %v1096
  %v1098 = vpop.f32.mrb[0].mxu0
  %v1099 = vpop.f32.mrb[0].mxu0
  %v1100 = vadd.f32 %v244, %v1099
  %v1101 = vpop.f32.mrb[0].mxu0
  %1102 = vmatprep.mubr.bf16.mxu0 %v498
  %1103 = vmatmul.mubr.bf16.gmra.mrb[0].mxu0 %v497
  %v1104 = vpop.f32.mrb[0].mxu0
  %v1105 = vadd.f32 %v244, %v1104
  %v1106 = vpop.f32.mrb[0].mxu0
  %v1107 = vpop.f32.mrb[0].mxu0
  %v1108 = vadd.f32 %v244, %v1107
  %v1109 = vpop.f32.mrb[0].mxu0
  %1110 = vmatprep.mubr.bf16.mxu0 %v507
  %1111 = vmatmul.mubr.bf16.gmra.mrb[0].mxu0 %v506
  %v1112 = vpop.f32.mrb[0].mxu0
  %v1113 = vadd.f32 %v244, %v1112
  %v1114 = vpop.f32.mrb[0].mxu0
  %v1115 = vpop.f32.mrb[0].mxu0
  %v1116 = vadd.f32 %v244, %v1115
  %v1117 = vpop.f32.mrb[0].mxu0
  %1118 = vmatprep.mubr.bf16.mxu0 %v516
  %1119 = vmatmul.mubr.bf16.gmra.mrb[0].mxu0 %v515
  %v1120 = vpop.f32.mrb[0].mxu0
  %v1121 = vadd.f32 %v244, %v1120
  %v1122 = vpop.f32.mrb[0].mxu0
  %v1123 = vpop.f32.mrb[0].mxu0
  %v1124 = vadd.f32 %v244, %v1123
  %v1125 = vpop.f32.mrb[0].mxu0
  %1126 = vmatprep.mubr.bf16.mxu0 %v525
  %1127 = vmatmul.mubr.bf16.gmra.mrb[0].mxu0 %v524
  %v1128 = vpop.f32.mrb[0].mxu0
  %v1129 = vadd.f32 %v244, %v1128
  %v1130 = vpop.f32.mrb[0].mxu0
  %v1131 = vpop.f32.mrb[0].mxu0
  %v1132 = vadd.f32 %v244, %v1131
  %v1133 = vpop.f32.mrb[0].mxu0
  %1134 = vmatprep.mubr.bf16.mxu0 %v534
  %1135 = vmatmul.mubr.bf16.gmra.mrb[0].mxu0 %v533
  %v1136 = vpop.f32.mrb[0].mxu0
  %v1137 = vadd.f32 %v244, %v1136
  %v1138 = vpop.f32.mrb[0].mxu0
  %v1139 = vpop.f32.mrb[0].mxu0
  %v1140 = vadd.f32 %v244, %v1139
  %v1141 = vpop.f32.mrb[0].mxu0
  %1142 = vdwg.mxu0
  %1143 = vmatprep.subr.bf16.mxu0 0
  %1144 = vmatpush1.bf16.msra.mxu0 %v918
  %1145 = vmatprep.subr.bf16.mxu0 0
  %1146 = vmatpush1.bf16.msra.mxu0 %v919
  %1147 = vmatprep.subr.bf16.mxu0 0
  %1148 = vmatpush1.bf16.msra.mxu0 %v920
  %1149 = vmatprep.subr.bf16.mxu0 0
  %1150 = vmatpush1.bf16.msra.mxu0 %v921
  %1151 = vmatprep.subr.bf16.mxu0 0
  %1152 = vmatpush1.bf16.msra.mxu0 %v922
  %1153 = vmatprep.subr.bf16.mxu0 0
  %1154 = vmatpush1.bf16.msra.mxu0 %v923
  %1155 = vmatprep.subr.bf16.mxu0 0
  %1156 = vmatpush1.bf16.msra.mxu0 %v924
  %1157 = vmatprep.subr.bf16.mxu0 0
  %1158 = vmatpush1.bf16.msra.mxu0 %v925
  %1159 = vmatprep.subr.bf16.mxu0 0
  %1160 = vmatpush1.bf16.msra.mxu0 %v926
  %1161 = vmatprep.subr.bf16.mxu0 0
  %1162 = vmatpush1.bf16.msra.mxu0 %v927
  %1163 = vmatprep.subr.bf16.mxu0 0
  %1164 = vmatpush1.bf16.msra.mxu0 %v928
  %1165 = vmatprep.subr.bf16.mxu0 0
  %1166 = vmatpush1.bf16.msra.mxu0 %v929
  %1167 = vmatprep.subr.bf16.mxu0 0
  %1168 = vmatpush1.bf16.msra.mxu0 %v930
  %1169 = vmatprep.subr.bf16.mxu0 0
  %1170 = vmatpush1.bf16.msra.mxu0 %v931
  %1171 = vmatprep.subr.bf16.mxu0 0
  %1172 = vmatpush1.bf16.msra.mxu0 %v932
  %1173 = vmatprep.subr.bf16.mxu0 0
  %1174 = vmatpush1.bf16.msra.mxu0 %v933
  %1175 = vmatprep.mubr.bf16.mxu0 %v473
  %1176 = vmatmul.mubr.bf16.gmra.mrb[0].mxu0 %v472
  %v1177 = vpop.f32.mrb[0].mxu0
  %v1178 = vadd.f32 %v1081, %v1177
  %v1179 = vpop.f32.mrb[0].mxu0
  %v1180 = vpop.f32.mrb[0].mxu0
  %v1181 = vadd.f32 %v1084, %v1180
  %v1182 = vpop.f32.mrb[0].mxu0
  %1183 = vmatprep.mubr.bf16.mxu0 %v482
  %1184 = vmatmul.mubr.bf16.gmra.mrb[0].mxu0 %v481
  %v1185 = vpop.f32.mrb[0].mxu0
  %v1186 = vadd.f32 %v1089, %v1185
  %v1187 = vpop.f32.mrb[0].mxu0
  %v1188 = vpop.f32.mrb[0].mxu0
  %v1189 = vadd.f32 %v1092, %v1188
  %v1190 = vpop.f32.mrb[0].mxu0
  %1191 = vmatprep.mubr.bf16.mxu0 %v491
  %1192 = vmatmul.mubr.bf16.gmra.mrb[0].mxu0 %v490
  %v1193 = vpop.f32.mrb[0].mxu0
  %v1194 = vadd.f32 %v1097, %v1193
  %v1195 = vpop.f32.mrb[0].mxu0
  %v1196 = vpop.f32.mrb[0].mxu0
  %v1197 = vadd.f32 %v1100, %v1196
  %v1198 = vpop.f32.mrb[0].mxu0
  %1199 = vmatprep.mubr.bf16.mxu0 %v500
  %1200 = vmatmul.mubr.bf16.gmra.mrb[0].mxu0 %v499
  %v1201 = vpop.f32.mrb[0].mxu0
  %v1202 = vadd.f32 %v1105, %v1201
  %v1203 = vpop.f32.mrb[0].mxu0
  %v1204 = vpop.f32.mrb[0].mxu0
  %v1205 = vadd.f32 %v1108, %v1204
  %v1206 = vpop.f32.mrb[0].mxu0
  %1207 = vmatprep.mubr.bf16.mxu0 %v509
  %1208 = vmatmul.mubr.bf16.gmra.mrb[0].mxu0 %v508
  %v1209 = vpop.f32.mrb[0].mxu0
  %v1210 = vadd.f32 %v1113, %v1209
  %v1211 = vpop.f32.mrb[0].mxu0
  %v1212 = vpop.f32.mrb[0].mxu0
  %v1213 = vadd.f32 %v1116, %v1212
  %v1214 = vpop.f32.mrb[0].mxu0
  %1215 = vmatprep.mubr.bf16.mxu0 %v518
  %1216 = vmatmul.mubr.bf16.gmra.mrb[0].mxu0 %v517
  %v1217 = vpop.f32.mrb[0].mxu0
  %v1218 = vadd.f32 %v1121, %v1217
  %v1219 = vpop.f32.mrb[0].mxu0
  %v1220 = vpop.f32.mrb[0].mxu0
  %v1221 = vadd.f32 %v1124, %v1220
  %v1222 = vpop.f32.mrb[0].mxu0
  %1223 = vmatprep.mubr.bf16.mxu0 %v527
  %1224 = vmatmul.mubr.bf16.gmra.mrb[0].mxu0 %v526
  %v1225 = vpop.f32.mrb[0].mxu0
  %v1226 = vadd.f32 %v1129, %v1225
  %v1227 = vpop.f32.mrb[0].mxu0
  %v1228 = vpop.f32.mrb[0].mxu0
  %v1229 = vadd.f32 %v1132, %v1228
  %v1230 = vpop.f32.mrb[0].mxu0
  %1231 = vmatprep.mubr.bf16.mxu0 %v536
  %1232 = vmatmul.mubr.bf16.gmra.mrb[0].mxu0 %v535
  %v1233 = vpop.f32.mrb[0].mxu0
  %v1234 = vadd.f32 %v1137, %v1233
  %v1235 = vpop.f32.mrb[0].mxu0
  %v1236 = vpop.f32.mrb[0].mxu0
  %v1237 = vadd.f32 %v1140, %v1236
  %v1238 = vpop.f32.mrb[0].mxu0
  %1239 = vdwg.mxu0
  %1240 = vmatprep.subr.bf16.mxu0 0
  %1241 = vmatpush1.bf16.msra.mxu0 %v934
  %1242 = vmatprep.subr.bf16.mxu0 0
  %1243 = vmatpush1.bf16.msra.mxu0 %v935
  %1244 = vmatprep.subr.bf16.mxu0 0
  %1245 = vmatpush1.bf16.msra.mxu0 %v936
  %1246 = vmatprep.subr.bf16.mxu0 0
  %1247 = vmatpush1.bf16.msra.mxu0 %v937
  %1248 = vmatprep.subr.bf16.mxu0 0
  %1249 = vmatpush1.bf16.msra.mxu0 %v938
  %1250 = vmatprep.subr.bf16.mxu0 0
  %1251 = vmatpush1.bf16.msra.mxu0 %v939
  %1252 = vmatprep.subr.bf16.mxu0 0
  %1253 = vmatpush1.bf16.msra.mxu0 %v940
  %1254 = vmatprep.subr.bf16.mxu0 0
  %1255 = vmatpush1.bf16.msra.mxu0 %v941
  %1256 = vmatprep.subr.bf16.mxu0 0
  %1257 = vmatpush1.bf16.msra.mxu0 %v942
  %1258 = vmatprep.subr.bf16.mxu0 0
  %1259 = vmatpush1.bf16.msra.mxu0 %v943
  %1260 = vmatprep.subr.bf16.mxu0 0
  %1261 = vmatpush1.bf16.msra.mxu0 %v944
  %1262 = vmatprep.subr.bf16.mxu0 0
  %1263 = vmatpush1.bf16.msra.mxu0 %v945
  %1264 = vmatprep.subr.bf16.mxu0 0
  %1265 = vmatpush1.bf16.msra.mxu0 %v946
  %1266 = vmatprep.subr.bf16.mxu0 0
  %1267 = vmatpush1.bf16.msra.mxu0 %v947
  %1268 = vmatprep.subr.bf16.mxu0 0
  %1269 = vmatpush1.bf16.msra.mxu0 %v948
  %1270 = vmatprep.subr.bf16.mxu0 0
  %1271 = vmatpush1.bf16.msra.mxu0 %v949
  %1272 = vmatprep.mubr.bf16.mxu0 %v475
  %1273 = vmatmul.mubr.bf16.gmra.mrb[0].mxu0 %v474
  %v1274 = vpop.f32.mrb[0].mxu0
  %v1275 = vadd.f32 %v1178, %v1274
  %v1276 = vpop.f32.mrb[0].mxu0
  %v1277 = vpop.f32.mrb[0].mxu0
  %v1278 = vadd.f32 %v1181, %v1277
  %v1279 = vpop.f32.mrb[0].mxu0
  %1280 = vmatprep.mubr.bf16.mxu0 %v484
  %1281 = vmatmul.mubr.bf16.gmra.mrb[0].mxu0 %v483
  %v1282 = vpop.f32.mrb[0].mxu0
  %v1283 = vadd.f32 %v1186, %v1282
  %v1284 = vpop.f32.mrb[0].mxu0
  %v1285 = vpop.f32.mrb[0].mxu0
  %v1286 = vadd.f32 %v1189, %v1285
  %v1287 = vpop.f32.mrb[0].mxu0
  %1288 = vmatprep.mubr.bf16.mxu0 %v493
  %1289 = vmatmul.mubr.bf16.gmra.mrb[0].mxu0 %v492
  %v1290 = vpop.f32.mrb[0].mxu0
  %v1291 = vadd.f32 %v1194, %v1290
  %v1292 = vpop.f32.mrb[0].mxu0
  %v1293 = vpop.f32.mrb[0].mxu0
  %v1294 = vadd.f32 %v1197, %v1293
  %v1295 = vpop.f32.mrb[0].mxu0
  %1296 = vmatprep.mubr.bf16.mxu0 %v502
  %1297 = vmatmul.mubr.bf16.gmra.mrb[0].mxu0 %v501
  %v1298 = vpop.f32.mrb[0].mxu0
  %v1299 = vadd.f32 %v1202, %v1298
  %v1300 = vpop.f32.mrb[0].mxu0
  %v1301 = vpop.f32.mrb[0].mxu0
  %v1302 = vadd.f32 %v1205, %v1301
  %v1303 = vpop.f32.mrb[0].mxu0
  %1304 = vmatprep.mubr.bf16.mxu0 %v511
  %1305 = vmatmul.mubr.bf16.gmra.mrb[0].mxu0 %v510
  %v1306 = vpop.f32.mrb[0].mxu0
  %v1307 = vadd.f32 %v1210, %v1306
  %v1308 = vpop.f32.mrb[0].mxu0
  %v1309 = vpop.f32.mrb[0].mxu0
  %v1310 = vadd.f32 %v1213, %v1309
  %v1311 = vpop.f32.mrb[0].mxu0
  %1312 = vmatprep.mubr.bf16.mxu0 %v520
  %1313 = vmatmul.mubr.bf16.gmra.mrb[0].mxu0 %v519
  %v1314 = vpop.f32.mrb[0].mxu0
  %v1315 = vadd.f32 %v1218, %v1314
  %v1316 = vpop.f32.mrb[0].mxu0
  %v1317 = vpop.f32.mrb[0].mxu0
  %v1318 = vadd.f32 %v1221, %v1317
  %v1319 = vpop.f32.mrb[0].mxu0
  %1320 = vmatprep.mubr.bf16.mxu0 %v529
  %1321 = vmatmul.mubr.bf16.gmra.mrb[0].mxu0 %v528
  %v1322 = vpop.f32.mrb[0].mxu0
  %v1323 = vadd.f32 %v1226, %v1322
  %v1324 = vpop.f32.mrb[0].mxu0
  %v1325 = vpop.f32.mrb[0].mxu0
  %v1326 = vadd.f32 %v1229, %v1325
  %v1327 = vpop.f32.mrb[0].mxu0
  %1328 = vmatprep.mubr.bf16.mxu0 %v538
  %1329 = vmatmul.mubr.bf16.gmra.mrb[0].mxu0 %v537
  %v1330 = vpop.f32.mrb[0].mxu0
  %v1331 = vadd.f32 %v1234, %v1330
  %v1332 = vpop.f32.mrb[0].mxu0
  %v1333 = vpop.f32.mrb[0].mxu0
  %v1334 = vadd.f32 %v1237, %v1333
  %v1335 = vpop.f32.mrb[0].mxu0
  %1336 = vdwg.mxu0
  %1337 = vmatprep.subr.bf16.mxu0 0
  %1338 = vmatpush1.bf16.msra.mxu0 %v950
  %1339 = vmatprep.subr.bf16.mxu0 0
  %1340 = vmatpush1.bf16.msra.mxu0 %v951
  %1341 = vmatprep.subr.bf16.mxu0 0
  %1342 = vmatpush1.bf16.msra.mxu0 %v952
  %1343 = vmatprep.subr.bf16.mxu0 0
  %1344 = vmatpush1.bf16.msra.mxu0 %v953
  %1345 = vmatprep.subr.bf16.mxu0 0
  %1346 = vmatpush1.bf16.msra.mxu0 %v954
  %1347 = vmatprep.subr.bf16.mxu0 0
  %1348 = vmatpush1.bf16.msra.mxu0 %v955
  %1349 = vmatprep.subr.bf16.mxu0 0
  %1350 = vmatpush1.bf16.msra.mxu0 %v956
  %1351 = vmatprep.subr.bf16.mxu0 0
  %1352 = vmatpush1.bf16.msra.mxu0 %v957
  %1353 = vmatprep.subr.bf16.mxu0 0
  %1354 = vmatpush1.bf16.msra.mxu0 %v958
  %1355 = vmatprep.subr.bf16.mxu0 0
  %1356 = vmatpush1.bf16.msra.mxu0 %v959
  %1357 = vmatprep.subr.bf16.mxu0 0
  %1358 = vmatpush1.bf16.msra.mxu0 %v960
  %1359 = vmatprep.subr.bf16.mxu0 0
  %1360 = vmatpush1.bf16.msra.mxu0 %v961
  %1361 = vmatprep.subr.bf16.mxu0 0
  %1362 = vmatpush1.bf16.msra.mxu0 %v962
  %1363 = vmatprep.subr.bf16.mxu0 0
  %1364 = vmatpush1.bf16.msra.mxu0 %v963
  %1365 = vmatprep.subr.bf16.mxu0 0
  %1366 = vmatpush1.bf16.msra.mxu0 %v964
  %1367 = vmatprep.subr.bf16.mxu0 0
  %1368 = vmatpush1.bf16.msra.mxu0 %v965
  %1369 = vmatprep.mubr.bf16.mxu0 %v477
  %1370 = vmatmul.mubr.bf16.gmra.mrb[0].mxu0 %v476
  %v1371 = vpop.f32.mrb[0].mxu0
  %v1372 = vadd.f32 %v1275, %v1371
  %v1373 = vpop.f32.mrb[0].mxu0
  %v1374 = vpop.f32.mrb[0].mxu0
  %v1375 = vadd.f32 %v1278, %v1374
  %v1376 = vpop.f32.mrb[0].mxu0
  %1377 = vmatprep.mubr.bf16.mxu0 %v486
  %1378 = vmatmul.mubr.bf16.gmra.mrb[0].mxu0 %v485
  %v1379 = vpop.f32.mrb[0].mxu0
  %v1380 = vadd.f32 %v1283, %v1379
  %v1381 = vpop.f32.mrb[0].mxu0
  %v1382 = vpop.f32.mrb[0].mxu0
  %v1383 = vadd.f32 %v1286, %v1382
  %v1384 = vpop.f32.mrb[0].mxu0
  %1385 = vmatprep.mubr.bf16.mxu0 %v495
  %1386 = vmatmul.mubr.bf16.gmra.mrb[0].mxu0 %v494
  %v1387 = vpop.f32.mrb[0].mxu0
  %v1388 = vadd.f32 %v1291, %v1387
  %v1389 = vpop.f32.mrb[0].mxu0
  %v1390 = vpop.f32.mrb[0].mxu0
  %v1391 = vadd.f32 %v1294, %v1390
  %v1392 = vpop.f32.mrb[0].mxu0
  %1393 = vmatprep.mubr.bf16.mxu0 %v504
  %1394 = vmatmul.mubr.bf16.gmra.mrb[0].mxu0 %v503
  %v1395 = vpop.f32.mrb[0].mxu0
  %v1396 = vadd.f32 %v1299, %v1395
  %v1397 = vpop.f32.mrb[0].mxu0
  %v1398 = vpop.f32.mrb[0].mxu0
  %v1399 = vadd.f32 %v1302, %v1398
  %v1400 = vpop.f32.mrb[0].mxu0
  %1401 = vmatprep.mubr.bf16.mxu0 %v513
  %1402 = vmatmul.mubr.bf16.gmra.mrb[0].mxu0 %v512
  %v1403 = vpop.f32.mrb[0].mxu0
  %v1404 = vadd.f32 %v1307, %v1403
  %v1405 = vpop.f32.mrb[0].mxu0
  %v1406 = vpop.f32.mrb[0].mxu0
  %v1407 = vadd.f32 %v1310, %v1406
  %v1408 = vpop.f32.mrb[0].mxu0
  %1409 = vmatprep.mubr.bf16.mxu0 %v522
  %1410 = vmatmul.mubr.bf16.gmra.mrb[0].mxu0 %v521
  %v1411 = vpop.f32.mrb[0].mxu0
  %v1412 = vadd.f32 %v1315, %v1411
  %v1413 = vpop.f32.mrb[0].mxu0
  %v1414 = vpop.f32.mrb[0].mxu0
  %v1415 = vadd.f32 %v1318, %v1414
  %v1416 = vpop.f32.mrb[0].mxu0
  %1417 = vmatprep.mubr.bf16.mxu0 %v531
  %1418 = vmatmul.mubr.bf16.gmra.mrb[0].mxu0 %v530
  %v1419 = vpop.f32.mrb[0].mxu0
  %v1420 = vadd.f32 %v1323, %v1419
  %v1421 = vpop.f32.mrb[0].mxu0
  %v1422 = vpop.f32.mrb[0].mxu0
  %v1423 = vadd.f32 %v1326, %v1422
  %v1424 = vpop.f32.mrb[0].mxu0
  %1425 = vmatprep.mubr.bf16.mxu0 %v540
  %1426 = vmatmul.mubr.bf16.gmra.mrb[0].mxu0 %v539
  %v1427 = vpop.f32.mrb[0].mxu0
  %v1428 = vadd.f32 %v1331, %v1427
  %v1429 = vpop.f32.mrb[0].mxu0
  %v1430 = vpop.f32.mrb[0].mxu0
  %v1431 = vadd.f32 %v1334, %v1430
  %v1432 = vpop.f32.mrb[0].mxu0
  %1433 = vdwg.mxu0
  %1434 = vmatprep.subr.bf16.mxu0 0
  %1435 = vmatpush1.bf16.msra.mxu0 %v966
  %1436 = vmatprep.subr.bf16.mxu0 0
  %1437 = vmatpush1.bf16.msra.mxu0 %v967
  %1438 = vmatprep.subr.bf16.mxu0 0
  %1439 = vmatpush1.bf16.msra.mxu0 %v968
  %1440 = vmatprep.subr.bf16.mxu0 0
  %1441 = vmatpush1.bf16.msra.mxu0 %v969
  %1442 = vmatprep.subr.bf16.mxu0 0
  %1443 = vmatpush1.bf16.msra.mxu0 %v970
  %1444 = vmatprep.subr.bf16.mxu0 0
  %1445 = vmatpush1.bf16.msra.mxu0 %v971
  %1446 = vmatprep.subr.bf16.mxu0 0
  %1447 = vmatpush1.bf16.msra.mxu0 %v972
  %1448 = vmatprep.subr.bf16.mxu0 0
  %1449 = vmatpush1.bf16.msra.mxu0 %v973
  %1450 = vmatprep.subr.bf16.mxu0 0
  %1451 = vmatpush1.bf16.msra.mxu0 0
  %1452 = vmatprep.subr.bf16.mxu0 0
  %1453 = vmatpush1.bf16.msra.mxu0 0
  %1454 = vmatprep.subr.bf16.mxu0 0
  %1455 = vmatpush1.bf16.msra.mxu0 0
  %1456 = vmatprep.subr.bf16.mxu0 0
  %1457 = vmatpush1.bf16.msra.mxu0 0
  %1458 = vmatprep.subr.bf16.mxu0 0
  %1459 = vmatpush1.bf16.msra.mxu0 0
  %1460 = vmatprep.subr.bf16.mxu0 0
  %1461 = vmatpush1.bf16.msra.mxu0 0
  %1462 = vmatprep.subr.bf16.mxu0 0
  %1463 = vmatpush1.bf16.msra.mxu0 0
  %1464 = vmatprep.subr.bf16.mxu0 0
  %1465 = vmatpush1.bf16.msra.mxu0 0
  %1466 = vmatprep.mubr.bf16.mxu0 0
  %1467 = vmatmul.mubr.bf16.gmra.mrb[0].mxu0 %v478
  %v1468 = vpop.f32.mrb[0].mxu0
  %v1469 = vadd.f32 %v1372, %v1468
  %v1470 = vpop.f32.mrb[0].mxu0
  %v1471 = vpop.f32.mrb[0].mxu0
  %v1472 = vadd.f32 %v1375, %v1471
  %v1473 = vpop.f32.mrb[0].mxu0
  %1474 = vmatprep.mubr.bf16.mxu0 0
  %1475 = vmatmul.mubr.bf16.gmra.mrb[0].mxu0 %v487
  %v1476 = vpop.f32.mrb[0].mxu0
  %v1477 = vadd.f32 %v1380, %v1476
  %v1478 = vpop.f32.mrb[0].mxu0
  %v1479 = vpop.f32.mrb[0].mxu0
  %v1480 = vadd.f32 %v1383, %v1479
  %v1481 = vpop.f32.mrb[0].mxu0
  %1482 = vmatprep.mubr.bf16.mxu0 0
  %1483 = vmatmul.mubr.bf16.gmra.mrb[0].mxu0 %v496
  %v1484 = vpop.f32.mrb[0].mxu0
  %v1485 = vadd.f32 %v1388, %v1484
  %v1486 = vpop.f32.mrb[0].mxu0
  %v1487 = vpop.f32.mrb[0].mxu0
  %v1488 = vadd.f32 %v1391, %v1487
  %v1489 = vpop.f32.mrb[0].mxu0
  %1490 = vmatprep.mubr.bf16.mxu0 0
  %1491 = vmatmul.mubr.bf16.gmra.mrb[0].mxu0 %v505
  %v1492 = vpop.f32.mrb[0].mxu0
  %v1493 = vadd.f32 %v1396, %v1492
  %v1494 = vpop.f32.mrb[0].mxu0
  %v1495 = vpop.f32.mrb[0].mxu0
  %v1496 = vadd.f32 %v1399, %v1495
  %v1497 = vpop.f32.mrb[0].mxu0
  %1498 = vmatprep.mubr.bf16.mxu0 0
  %1499 = vmatmul.mubr.bf16.gmra.mrb[0].mxu0 %v514
  %v1500 = vpop.f32.mrb[0].mxu0
  %v1501 = vadd.f32 %v1404, %v1500
  %v1502 = vpop.f32.mrb[0].mxu0
  %v1503 = vpop.f32.mrb[0].mxu0
  %v1504 = vadd.f32 %v1407, %v1503
  %v1505 = vpop.f32.mrb[0].mxu0
  %1506 = vmatprep.mubr.bf16.mxu0 0
  %1507 = vmatmul.mubr.bf16.gmra.mrb[0].mxu0 %v523
  %v1508 = vpop.f32.mrb[0].mxu0
  %v1509 = vadd.f32 %v1412, %v1508
  %v1510 = vpop.f32.mrb[0].mxu0
  %v1511 = vpop.f32.mrb[0].mxu0
  %v1512 = vadd.f32 %v1415, %v1511
  %v1513 = vpop.f32.mrb[0].mxu0
  %1514 = vmatprep.mubr.bf16.mxu0 0
  %1515 = vmatmul.mubr.bf16.gmra.mrb[0].mxu0 %v532
  %v1516 = vpop.f32.mrb[0].mxu0
  %v1517 = vadd.f32 %v1420, %v1516
  %v1518 = vpop.f32.mrb[0].mxu0
  %v1519 = vpop.f32.mrb[0].mxu0
  %v1520 = vadd.f32 %v1423, %v1519
  %v1521 = vpop.f32.mrb[0].mxu0
  %1522 = vmatprep.mubr.bf16.mxu0 0
  %1523 = vmatmul.mubr.bf16.gmra.mrb[0].mxu0 %v541
  %v1524 = vpop.f32.mrb[0].mxu0
  %v1525 = vadd.f32 %v1428, %v1524
  %v1526 = vpop.f32.mrb[0].mxu0
  %v1527 = vpop.f32.mrb[0].mxu0
  %v1528 = vadd.f32 %v1431, %v1527
  %v1529 = vpop.f32.mrb[0].mxu0
  %1530 = vdwg.mxu0
  %v1531 = vmax.f32 %v1469, 0.0
  %v1532 = vmax.f32 %v1472, 0.0
  %v1533 = vmax.f32 %v1477, 0.0
  %v1534 = vmax.f32 %v1480, 0.0
  %v1535 = vmax.f32 %v1485, 0.0
  %v1536 = vmax.f32 %v1488, 0.0
  %v1537 = vmax.f32 %v1493, 0.0
  %v1538 = vmax.f32 %v1496, 0.0
  %v1539 = vmax.f32 %v1501, 0.0
  %v1540 = vmax.f32 %v1504, 0.0
  %v1541 = vmax.f32 %v1509, 0.0
  %v1542 = vmax.f32 %v1512, 0.0
  %v1543 = vmax.f32 %v1517, 0.0
  %v1544 = vmax.f32 %v1520, 0.0
  %v1545 = vmax.f32 %v1525, 0.0
  %v1546 = vmax.f32 %v1528, 0.0
  %v1547 = vpack.c.bf16 %v1532, %v1531
  %v1548 = vpack.c.bf16 %v1534, %v1533
  %v1549 = vpack.c.bf16 %v1536, %v1535
  %v1550 = vpack.c.bf16 %v1538, %v1537
  %v1551 = vpack.c.bf16 %v1540, %v1539
  %v1552 = vpack.c.bf16 %v1542, %v1541
  %v1553 = vpack.c.bf16 %v1544, %v1543
  %v1554 = vpack.c.bf16 %v1546, %v1545
  %v1563 = vunpack.c.l.b16 %v1547
  %v1564 = vunpack.c.h.b16 %v1547
  %v1565 = vunpack.c.l.b16 %v1548
  %v1566 = vunpack.c.h.b16 %v1548
  %v1567 = vunpack.c.l.b16 %v1549
  %v1568 = vunpack.c.h.b16 %v1549
  %v1569 = vunpack.c.l.b16 %v1550
  %v1570 = vunpack.c.h.b16 %v1550
  %v1571 = vunpack.c.l.b16 %v1551
  %v1572 = vunpack.c.h.b16 %v1551
  %v1573 = vunpack.c.l.b16 %v1552
  %v1574 = vunpack.c.h.b16 %v1552
  %v1575 = vunpack.c.l.b16 %v1553
  %v1576 = vunpack.c.h.b16 %v1553
  %v1577 = vunpack.c.l.b16 %v1554
  %v1578 = vunpack.c.h.b16 %v1554
  %v1579 = vpack.c.b16 %v1563, %v1563
  %v1580 = vpack.c.b16 %v1564, %v1564
  %v1581 = vpack.c.b16 %v1565, %v1565
  %v1582 = vpack.c.b16 %v1566, %v1566
  %v1583 = vpack.c.b16 %v1567, %v1567
  %v1584 = vpack.c.b16 %v1568, %v1568
  %v1585 = vpack.c.b16 %v1569, %v1569
  %v1586 = vpack.c.b16 %v1570, %v1570
  %v1587 = vpack.c.b16 %v1571, %v1571
  %v1588 = vpack.c.b16 %v1572, %v1572
  %v1589 = vpack.c.b16 %v1573, %v1573
  %v1590 = vpack.c.b16 %v1574, %v1574
  %v1591 = vpack.c.b16 %v1575, %v1575
  %v1592 = vpack.c.b16 %v1576, %v1576
  %v1593 = vpack.c.b16 %v1577, %v1577
  %v1594 = vpack.c.b16 %v1578, %v1578
  %1611 = vst [vmem:[%s3] sm:$0xf] %v1579
  %1612 = vst [vmem:[%s3 + $0x4] sm:$0xf] %v1580
  %1613 = vst [vmem:[%s3 + $0x8] sm:$0xf] %v1581
  %1614 = vst [vmem:[%s3 + $0xc] sm:$0xf] %v1582
  %1615 = vst [vmem:[%s3 + $0x10] sm:$0xf] %v1583
  %1616 = vst [vmem:[%s3 + $0x14] sm:$0xf] %v1584
  %1617 = vst [vmem:[%s3 + $0x18] sm:$0xf] %v1585
  %1618 = vst [vmem:[%s3 + $0x1c] sm:$0xf] %v1586
  %1619 = vst [vmem:[%s3 + $0x20] sm:$0xf] %v1587
  %1620 = vst [vmem:[%s3 + $0x24] sm:$0xf] %v1588
  %1621 = vst [vmem:[%s3 + $0x28] sm:$0xf] %v1589
  %1622 = vst [vmem:[%s3 + $0x2c] sm:$0xf] %v1590
  %1623 = vst [vmem:[%s3 + $0x30] sm:$0xf] %v1591
  %1624 = vst [vmem:[%s3 + $0x34] sm:$0xf] %v1592
  %1625 = vst [vmem:[%s3 + $0x38] sm:$0xf] %v1593
  %1626 = vst [vmem:[%s3 + $0x3c] sm:$0xf] %v1594
  // Predicated region
  $region14: #{a_call__.4} parent=0 // pred_check
    _
  $region15: #{a_call__.4} parent=0 // pred_check_branch
    %1628 = sbr.rel (0) target = $region17
  $region16: #{a_call__.4} parent=0 // pred_region
    _
  $region17: #{a_call__.4} parent=0 // pred_fallthru
    _
  // Predicated region
  $region18: #{a_call__.4} parent=0 // pred_check
    _
  $region19: #{a_call__.4} parent=0 // pred_check_branch
    %1630 = sbr.rel (0) target = $region21
  $region20: #{a_call__.4} parent=0 // pred_region
    _
  $region21: #{a_call__.4} parent=0 // pred_fallthru
    _

// kernel: a_call__.5
$region0: #{a_call__.5}
  #allocation0 [shape = 'u32[]', space=smem, size = 0x4, offset = 0x4, fixed_abs, tag = 'smem constant byte address 0x4 - core index']
  #allocation1 [shape = 'u32[144,128]{1,0:T(1,128)}', space=vmem, size = 0x12000, scoped, tag = 'internal scratch']
  %s0 = inlined_call_operand.vmem [shape: bf16[32,1152], index: 0, kind: input, shape index: {}]
  %s1 = inlined_call_operand.vmem [shape: bf16[1152,128], index: 1, kind: input, shape index: {}]
  %s2 = inlined_call_operand.vmem [shape: f32[1,128], index: 2, kind: input, shape index: {}]
  %s3 = inlined_call_operand.vmem [shape: bf16[128,128], index: 3, kind: input, shape index: {}]
  %s4 = inlined_call_operand.vmem [shape: f32[1,128], index: 4, kind: input, shape index: {}]
  %s5 = inlined_call_operand.hbm [shape: f32[32,128], index: 5, kind: output, shape index: {}]
  %s6 = sld [smem:[#allocation0]]
  $region30: #{a_call__.5} parent=0
    _
  %s8 = ssub.s32 1, %s6
  %s9 = scalar_select 0, %s8, %s6
  $region1: #{a_call__.5} parent=0
    #allocation2 [shape = 'u8[16384]{0}', space=vmem, size = 0x4000, scoped, tag = 'output window, operand 0, single buffered']
    #allocation3 [shape = 's32[1]{0}', space=sflag, size = 0x4, scoped, tag = 'scoped memory for a_call__.5']
    %10 = vsyncpa [#allocation3], 0
    // Predicated region
    $region2: #{a_call__.5} parent=1 // pred_check
      _
    $region3: #{a_call__.5} parent=1 // pred_check_branch
      %12 = sbr.rel (0) target = $region5
    $region4: #{a_call__.5} parent=1 // pred_region
      _
    $region5: #{a_call__.5} parent=1 // pred_fallthru
      _
    // Predicated region
    $region6: #{a_call__.5} parent=1 // pred_check
      _
    $region7: #{a_call__.5} parent=1 // pred_check_branch
      %14 = sbr.rel (0) target = $region9
    $region8: #{a_call__.5} parent=1 // pred_region
      _
    $region9: #{a_call__.5} parent=1 // pred_fallthru
      _
    // Predicated region
    $region10: #{a_call__.5} parent=1 // pred_check
      _
    $region11: #{a_call__.5} parent=1 // pred_check_branch
      %16 = sbr.rel (0) target = $region13
    $region12: #{a_call__.5} parent=1 // pred_region
      _
    $region13: #{a_call__.5} parent=1 // pred_fallthru
      _
    // Predicated region
    $region14: #{a_call__.5} parent=1 // pred_check
      _
    $region15: #{a_call__.5} parent=1 // pred_check_branch
      %18 = sbr.rel (0) target = $region17
    $region16: #{a_call__.5} parent=1 // pred_region
      _
    $region17: #{a_call__.5} parent=1 // pred_fallthru
      _
    // Predicated region
    $region18: #{a_call__.5} parent=1 // pred_check
      _
    $region19: #{a_call__.5} parent=1 // pred_check_branch
      %20 = sbr.rel (0) target = $region21
    $region20: #{a_call__.5} parent=1 // pred_region
      _
    $region21: #{a_call__.5} parent=1 // pred_fallthru
      _
    %v22 = vld [vmem:[%s0] sm:$0xff]
    %v23 = vld [vmem:[%s0 + $0x8] sm:$0xff]
    %v24 = vld [vmem:[%s0 + $0x10] sm:$0xff]
    %v25 = vld [vmem:[%s0 + $0x18] sm:$0xff]
    %v26 = vld [vmem:[%s0 + $0x20] sm:$0xf]
    %v27 = vld [vmem:[%s0 + $0x24] sm:$0xff]
    %v28 = vld [vmem:[%s0 + $0x2c] sm:$0xff]
    %v29 = vld [vmem:[%s0 + $0x34] sm:$0xff]
    %v30 = vld [vmem:[%s0 + $0x3c] sm:$0xff]
    %v31 = vld [vmem:[%s0 + $0x44] sm:$0xf]
    %v32 = vld [vmem:[%s0 + $0x48] sm:$0xff]
    %v33 = vld [vmem:[%s0 + $0x50] sm:$0xff]
    %v34 = vld [vmem:[%s0 + $0x58] sm:$0xff]
    %v35 = vld [vmem:[%s0 + $0x60] sm:$0xff]
    %v36 = vld [vmem:[%s0 + $0x68] sm:$0xf]
    %v37 = vld [vmem:[%s0 + $0x6c] sm:$0xff]
    %v38 = vld [vmem:[%s0 + $0x74] sm:$0xff]
    %v39 = vld [vmem:[%s0 + $0x7c] sm:$0xff]
    %v40 = vld [vmem:[%s0 + $0x84] sm:$0xff]
    %v41 = vld [vmem:[%s0 + $0x8c] sm:$0xf]
    %v42 = vld [vmem:[%s1] sm:$0xf]
    %v43 = vld [vmem:[%s1 + $0x4] sm:$0xf]
    %v44 = vld [vmem:[%s1 + $0x8] sm:$0xf]
    %v45 = vld [vmem:[%s1 + $0xc] sm:$0xf]
    %v46 = vld [vmem:[%s1 + $0x10] sm:$0xf]
    %v47 = vld [vmem:[%s1 + $0x14] sm:$0xf]
    %v48 = vld [vmem:[%s1 + $0x18] sm:$0xf]
    %v49 = vld [vmem:[%s1 + $0x1c] sm:$0xf]
    %v50 = vld [vmem:[%s1 + $0x20] sm:$0xf]
    %v51 = vld [vmem:[%s1 + $0x24] sm:$0xf]
    %v52 = vld [vmem:[%s1 + $0x28] sm:$0xf]
    %v53 = vld [vmem:[%s1 + $0x2c] sm:$0xf]
    %v54 = vld [vmem:[%s1 + $0x30] sm:$0xf]
    %v55 = vld [vmem:[%s1 + $0x34] sm:$0xf]
    %v56 = vld [vmem:[%s1 + $0x38] sm:$0xf]
    %v57 = vld [vmem:[%s1 + $0x3c] sm:$0xf]
    %v58 = vld [vmem:[%s1 + $0x40] sm:$0xf]
    %v59 = vld [vmem:[%s1 + $0x44] sm:$0xf]
    %v60 = vld [vmem:[%s1 + $0x48] sm:$0xf]
    %v61 = vld [vmem:[%s1 + $0x4c] sm:$0xf]
    %v62 = vld [vmem:[%s1 + $0x50] sm:$0xf]
    %v63 = vld [vmem:[%s1 + $0x54] sm:$0xf]
    %v64 = vld [vmem:[%s1 + $0x58] sm:$0xf]
    %v65 = vld [vmem:[%s1 + $0x5c] sm:$0xf]
    %v66 = vld [vmem:[%s1 + $0x60] sm:$0xf]
    %v67 = vld [vmem:[%s1 + $0x64] sm:$0xf]
    %v68 = vld [vmem:[%s1 + $0x68] sm:$0xf]
    %v69 = vld [vmem:[%s1 + $0x6c] sm:$0xf]
    %v70 = vld [vmem:[%s1 + $0x70] sm:$0xf]
    %v71 = vld [vmem:[%s1 + $0x74] sm:$0xf]
    %v72 = vld [vmem:[%s1 + $0x78] sm:$0xf]
    %v73 = vld [vmem:[%s1 + $0x7c] sm:$0xf]
    %v74 = vld [vmem:[%s1 + $0x80] sm:$0xf]
    %v75 = vld [vmem:[%s1 + $0x84] sm:$0xf]
    %v76 = vld [vmem:[%s1 + $0x88] sm:$0xf]
    %v77 = vld [vmem:[%s1 + $0x8c] sm:$0xf]
    %v78 = vld [vmem:[%s1 + $0x90] sm:$0xf]
    %v79 = vld [vmem:[%s1 + $0x94] sm:$0xf]
    %v80 = vld [vmem:[%s1 + $0x98] sm:$0xf]
    %v81 = vld [vmem:[%s1 + $0x9c] sm:$0xf]
    %v82 = vld [vmem:[%s1 + $0xa0] sm:$0xf]
    %v83 = vld [vmem:[%s1 + $0xa4] sm:$0xf]
    %v84 = vld [vmem:[%s1 + $0xa8] sm:$0xf]
    %v85 = vld [vmem:[%s1 + $0xac] sm:$0xf]
    %v86 = vld [vmem:[%s1 + $0xb0] sm:$0xf]
    %v87 = vld [vmem:[%s1 + $0xb4] sm:$0xf]
    %v88 = vld [vmem:[%s1 + $0xb8] sm:$0xf]
    %v89 = vld [vmem:[%s1 + $0xbc] sm:$0xf]
    %v90 = vld [vmem:[%s1 + $0xc0] sm:$0xf]
    %v91 = vld [vmem:[%s1 + $0xc4] sm:$0xf]
    %v92 = vld [vmem:[%s1 + $0xc8] sm:$0xf]
    %v93 = vld [vmem:[%s1 + $0xcc] sm:$0xf]
    %v94 = vld [vmem:[%s1 + $0xd0] sm:$0xf]
    %v95 = vld [vmem:[%s1 + $0xd4] sm:$0xf]
    %v96 = vld [vmem:[%s1 + $0xd8] sm:$0xf]
    %v97 = vld [vmem:[%s1 + $0xdc] sm:$0xf]
    %v98 = vld [vmem:[%s1 + $0xe0] sm:$0xf]
    %v99 = vld [vmem:[%s1 + $0xe4] sm:$0xf]
    %v100 = vld [vmem:[%s1 + $0xe8] sm:$0xf]
    %v101 = vld [vmem:[%s1 + $0xec] sm:$0xf]
    %v102 = vld [vmem:[%s1 + $0xf0] sm:$0xf]
    %v103 = vld [vmem:[%s1 + $0xf4] sm:$0xf]
    %v104 = vld [vmem:[%s1 + $0xf8] sm:$0xf]
    %v105 = vld [vmem:[%s1 + $0xfc] sm:$0xf]
    %v106 = vld [vmem:[%s1 + $0x100] sm:$0xf]
    %v107 = vld [vmem:[%s1 + $0x104] sm:$0xf]
    %v108 = vld [vmem:[%s1 + $0x108] sm:$0xf]
    %v109 = vld [vmem:[%s1 + $0x10c] sm:$0xf]
    %v110 = vld [vmem:[%s1 + $0x110] sm:$0xf]
    %v111 = vld [vmem:[%s1 + $0x114] sm:$0xf]
    %v112 = vld [vmem:[%s1 + $0x118] sm:$0xf]
    %v113 = vld [vmem:[%s1 + $0x11c] sm:$0xf]
    %v114 = vld [vmem:[%s1 + $0x120] sm:$0xf]
    %v115 = vld [vmem:[%s1 + $0x124] sm:$0xf]
    %v116 = vld [vmem:[%s1 + $0x128] sm:$0xf]
    %v117 = vld [vmem:[%s1 + $0x12c] sm:$0xf]
    %v118 = vld [vmem:[%s1 + $0x130] sm:$0xf]
    %v119 = vld [vmem:[%s1 + $0x134] sm:$0xf]
    %v120 = vld [vmem:[%s1 + $0x138] sm:$0xf]
    %v121 = vld [vmem:[%s1 + $0x13c] sm:$0xf]
    %v122 = vld [vmem:[%s1 + $0x140] sm:$0xf]
    %v123 = vld [vmem:[%s1 + $0x144] sm:$0xf]
    %v124 = vld [vmem:[%s1 + $0x148] sm:$0xf]
    %v125 = vld [vmem:[%s1 + $0x14c] sm:$0xf]
    %v126 = vld [vmem:[%s1 + $0x150] sm:$0xf]
    %v127 = vld [vmem:[%s1 + $0x154] sm:$0xf]
    %v128 = vld [vmem:[%s1 + $0x158] sm:$0xf]
    %v129 = vld [vmem:[%s1 + $0x15c] sm:$0xf]
    %v130 = vld [vmem:[%s1 + $0x160] sm:$0xf]
    %v131 = vld [vmem:[%s1 + $0x164] sm:$0xf]
    %v132 = vld [vmem:[%s1 + $0x168] sm:$0xf]
    %v133 = vld [vmem:[%s1 + $0x16c] sm:$0xf]
    %v134 = vld [vmem:[%s1 + $0x170] sm:$0xf]
    %v135 = vld [vmem:[%s1 + $0x174] sm:$0xf]
    %v136 = vld [vmem:[%s1 + $0x178] sm:$0xf]
    %v137 = vld [vmem:[%s1 + $0x17c] sm:$0xf]
    %v138 = vld [vmem:[%s1 + $0x180] sm:$0xf]
    %v139 = vld [vmem:[%s1 + $0x184] sm:$0xf]
    %v140 = vld [vmem:[%s1 + $0x188] sm:$0xf]
    %v141 = vld [vmem:[%s1 + $0x18c] sm:$0xf]
    %v142 = vld [vmem:[%s1 + $0x190] sm:$0xf]
    %v143 = vld [vmem:[%s1 + $0x194] sm:$0xf]
    %v144 = vld [vmem:[%s1 + $0x198] sm:$0xf]
    %v145 = vld [vmem:[%s1 + $0x19c] sm:$0xf]
    %v146 = vld [vmem:[%s1 + $0x1a0] sm:$0xf]
    %v147 = vld [vmem:[%s1 + $0x1a4] sm:$0xf]
    %v148 = vld [vmem:[%s1 + $0x1a8] sm:$0xf]
    %v149 = vld [vmem:[%s1 + $0x1ac] sm:$0xf]
    %v150 = vld [vmem:[%s1 + $0x1b0] sm:$0xf]
    %v151 = vld [vmem:[%s1 + $0x1b4] sm:$0xf]
    %v152 = vld [vmem:[%s1 + $0x1b8] sm:$0xf]
    %v153 = vld [vmem:[%s1 + $0x1bc] sm:$0xf]
    %v154 = vld [vmem:[%s1 + $0x1c0] sm:$0xf]
    %v155 = vld [vmem:[%s1 + $0x1c4] sm:$0xf]
    %v156 = vld [vmem:[%s1 + $0x1c8] sm:$0xf]
    %v157 = vld [vmem:[%s1 + $0x1cc] sm:$0xf]
    %v158 = vld [vmem:[%s1 + $0x1d0] sm:$0xf]
    %v159 = vld [vmem:[%s1 + $0x1d4] sm:$0xf]
    %v160 = vld [vmem:[%s1 + $0x1d8] sm:$0xf]
    %v161 = vld [vmem:[%s1 + $0x1dc] sm:$0xf]
    %v162 = vld [vmem:[%s1 + $0x1e0] sm:$0xf]
    %v163 = vld [vmem:[%s1 + $0x1e4] sm:$0xf]
    %v164 = vld [vmem:[%s1 + $0x1e8] sm:$0xf]
    %v165 = vld [vmem:[%s1 + $0x1ec] sm:$0xf]
    %v166 = vld [vmem:[%s1 + $0x1f0] sm:$0xf]
    %v167 = vld [vmem:[%s1 + $0x1f4] sm:$0xf]
    %v168 = vld [vmem:[%s1 + $0x1f8] sm:$0xf]
    %v169 = vld [vmem:[%s1 + $0x1fc] sm:$0xf]
    %v170 = vld [vmem:[%s1 + $0x200] sm:$0xf]
    %v171 = vld [vmem:[%s1 + $0x204] sm:$0xf]
    %v172 = vld [vmem:[%s1 + $0x208] sm:$0xf]
    %v173 = vld [vmem:[%s1 + $0x20c] sm:$0xf]
    %v174 = vld [vmem:[%s1 + $0x210] sm:$0xf]
    %v175 = vld [vmem:[%s1 + $0x214] sm:$0xf]
    %v176 = vld [vmem:[%s1 + $0x218] sm:$0xf]
    %v177 = vld [vmem:[%s1 + $0x21c] sm:$0xf]
    %v178 = vld [vmem:[%s1 + $0x220] sm:$0xf]
    %v179 = vld [vmem:[%s1 + $0x224] sm:$0xf]
    %v180 = vld [vmem:[%s1 + $0x228] sm:$0xf]
    %v181 = vld [vmem:[%s1 + $0x22c] sm:$0xf]
    %v182 = vld [vmem:[%s1 + $0x230] sm:$0xf]
    %v183 = vld [vmem:[%s1 + $0x234] sm:$0xf]
    %v184 = vld [vmem:[%s1 + $0x238] sm:$0xf]
    %v185 = vld [vmem:[%s1 + $0x23c] sm:$0xf]
    %v186 = vld [vmem:[%s2] sm:$0x1]
    %v188 = vlaneseq
    %v189 = vshrl.u32 %v188, 7
    %v190 = vsub.s32 0, %v189
    %v191 = vrot.slane %v186, %v190
    %v213 = vunpack.c.l.b16 %v22
    %v214 = vunpack.c.h.b16 %v22
    %v215 = vunpack.c.l.b16 %v23
    %v216 = vunpack.c.h.b16 %v23
    %v217 = vunpack.c.l.b16 %v24
    %v218 = vunpack.c.h.b16 %v24
    %v219 = vunpack.c.l.b16 %v25
    %v220 = vunpack.c.h.b16 %v25
    %v221 = vunpack.c.l.b16 %v26
    %v222 = vunpack.c.l.b16 %v27
    %v223 = vunpack.c.h.b16 %v27
    %v224 = vunpack.c.l.b16 %v28
    %v225 = vunpack.c.h.b16 %v28
    %v226 = vunpack.c.l.b16 %v29
    %v227 = vunpack.c.h.b16 %v29
    %v228 = vunpack.c.l.b16 %v30
    %v229 = vunpack.c.h.b16 %v30
    %v230 = vunpack.c.l.b16 %v31
    %v231 = vunpack.c.l.b16 %v32
    %v232 = vunpack.c.h.b16 %v32
    %v233 = vunpack.c.l.b16 %v33
    %v234 = vunpack.c.h.b16 %v33
    %v235 = vunpack.c.l.b16 %v34
    %v236 = vunpack.c.h.b16 %v34
    %v237 = vunpack.c.l.b16 %v35
    %v238 = vunpack.c.h.b16 %v35
    %v239 = vunpack.c.l.b16 %v36
    %v240 = vunpack.c.l.b16 %v37
    %v241 = vunpack.c.h.b16 %v37
    %v242 = vunpack.c.l.b16 %v38
    %v243 = vunpack.c.h.b16 %v38
    %v244 = vunpack.c.l.b16 %v39
    %v245 = vunpack.c.h.b16 %v39
    %v246 = vunpack.c.l.b16 %v40
    %v247 = vunpack.c.h.b16 %v40
    %v248 = vunpack.c.l.b16 %v41
    %v249 = vpack.c.b16 %v222, %v213
    %v250 = vpack.c.b16 %v223, %v214
    %v251 = vpack.c.b16 %v224, %v215
    %v252 = vpack.c.b16 %v225, %v216
    %v253 = vpack.c.b16 %v226, %v217
    %v254 = vpack.c.b16 %v227, %v218
    %v255 = vpack.c.b16 %v228, %v219
    %v256 = vpack.c.b16 %v229, %v220
    %v257 = vpack.c.b16 %v230, %v221
    %v258 = vpack.c.b16 %v240, %v231
    %v259 = vpack.c.b16 %v241, %v232
    %v260 = vpack.c.b16 %v242, %v233
    %v261 = vpack.c.b16 %v243, %v234
    %v262 = vpack.c.b16 %v244, %v235
    %v263 = vpack.c.b16 %v245, %v236
    %v264 = vpack.c.b16 %v246, %v237
    %v265 = vpack.c.b16 %v247, %v238
    %v266 = vpack.c.b16 %v248, %v239
    %v429 = vunpack.c.l.b16 %v42
    %v430 = vunpack.c.l.b16 %v43
    %v431 = vunpack.c.l.b16 %v44
    %v432 = vunpack.c.l.b16 %v45
    %v433 = vunpack.c.l.b16 %v46
    %v434 = vunpack.c.l.b16 %v47
    %v435 = vunpack.c.l.b16 %v48
    %v436 = vunpack.c.l.b16 %v49
    %v437 = vunpack.c.l.b16 %v50
    %v438 = vunpack.c.l.b16 %v51
    %v439 = vunpack.c.l.b16 %v52
    %v440 = vunpack.c.l.b16 %v53
    %v441 = vunpack.c.l.b16 %v54
    %v442 = vunpack.c.l.b16 %v55
    %v443 = vunpack.c.l.b16 %v56
    %v444 = vunpack.c.l.b16 %v57
    %v445 = vunpack.c.l.b16 %v58
    %v446 = vunpack.c.l.b16 %v59
    %v447 = vunpack.c.l.b16 %v60
    %v448 = vunpack.c.l.b16 %v61
    %v449 = vunpack.c.l.b16 %v62
    %v450 = vunpack.c.l.b16 %v63
    %v451 = vunpack.c.l.b16 %v64
    %v452 = vunpack.c.l.b16 %v65
    %v453 = vunpack.c.l.b16 %v66
    %v454 = vunpack.c.l.b16 %v67
    %v455 = vunpack.c.l.b16 %v68
    %v456 = vunpack.c.l.b16 %v69
    %v457 = vunpack.c.l.b16 %v70
    %v458 = vunpack.c.l.b16 %v71
    %v459 = vunpack.c.l.b16 %v72
    %v460 = vunpack.c.l.b16 %v73
    %v461 = vunpack.c.l.b16 %v74
    %v462 = vunpack.c.l.b16 %v75
    %v463 = vunpack.c.l.b16 %v76
    %v464 = vunpack.c.l.b16 %v77
    %v465 = vunpack.c.l.b16 %v78
    %v466 = vunpack.c.l.b16 %v79
    %v467 = vunpack.c.l.b16 %v80
    %v468 = vunpack.c.l.b16 %v81
    %v469 = vunpack.c.l.b16 %v82
    %v470 = vunpack.c.l.b16 %v83
    %v471 = vunpack.c.l.b16 %v84
    %v472 = vunpack.c.l.b16 %v85
    %v473 = vunpack.c.l.b16 %v86
    %v474 = vunpack.c.l.b16 %v87
    %v475 = vunpack.c.l.b16 %v88
    %v476 = vunpack.c.l.b16 %v89
    %v477 = vunpack.c.l.b16 %v90
    %v478 = vunpack.c.l.b16 %v91
    %v479 = vunpack.c.l.b16 %v92
    %v480 = vunpack.c.l.b16 %v93
    %v481 = vunpack.c.l.b16 %v94
    %v482 = vunpack.c.l.b16 %v95
    %v483 = vunpack.c.l.b16 %v96
    %v484 = vunpack.c.l.b16 %v97
    %v485 = vunpack.c.l.b16 %v98
    %v486 = vunpack.c.l.b16 %v99
    %v487 = vunpack.c.l.b16 %v100
    %v488 = vunpack.c.l.b16 %v101
    %v489 = vunpack.c.l.b16 %v102
    %v490 = vunpack.c.l.b16 %v103
    %v491 = vunpack.c.l.b16 %v104
    %v492 = vunpack.c.l.b16 %v105
    %v493 = vunpack.c.l.b16 %v106
    %v494 = vunpack.c.l.b16 %v107
    %v495 = vunpack.c.l.b16 %v108
    %v496 = vunpack.c.l.b16 %v109
    %v497 = vunpack.c.l.b16 %v110
    %v498 = vunpack.c.l.b16 %v111
    %v499 = vunpack.c.l.b16 %v112
    %v500 = vunpack.c.l.b16 %v113
    %v501 = vunpack.c.l.b16 %v114
    %v502 = vunpack.c.l.b16 %v115
    %v503 = vunpack.c.l.b16 %v116
    %v504 = vunpack.c.l.b16 %v117
    %v505 = vunpack.c.l.b16 %v118
    %v506 = vunpack.c.l.b16 %v119
    %v507 = vunpack.c.l.b16 %v120
    %v508 = vunpack.c.l.b16 %v121
    %v509 = vunpack.c.l.b16 %v122
    %v510 = vunpack.c.l.b16 %v123
    %v511 = vunpack.c.l.b16 %v124
    %v512 = vunpack.c.l.b16 %v125
    %v513 = vunpack.c.l.b16 %v126
    %v514 = vunpack.c.l.b16 %v127
    %v515 = vunpack.c.l.b16 %v128
    %v516 = vunpack.c.l.b16 %v129
    %v517 = vunpack.c.l.b16 %v130
    %v518 = vunpack.c.l.b16 %v131
    %v519 = vunpack.c.l.b16 %v132
    %v520 = vunpack.c.l.b16 %v133
    %v521 = vunpack.c.l.b16 %v134
    %v522 = vunpack.c.l.b16 %v135
    %v523 = vunpack.c.l.b16 %v136
    %v524 = vunpack.c.l.b16 %v137
    %v525 = vunpack.c.l.b16 %v138
    %v526 = vunpack.c.l.b16 %v139
    %v527 = vunpack.c.l.b16 %v140
    %v528 = vunpack.c.l.b16 %v141
    %v529 = vunpack.c.l.b16 %v142
    %v530 = vunpack.c.l.b16 %v143
    %v531 = vunpack.c.l.b16 %v144
    %v532 = vunpack.c.l.b16 %v145
    %v533 = vunpack.c.l.b16 %v146
    %v534 = vunpack.c.l.b16 %v147
    %v535 = vunpack.c.l.b16 %v148
    %v536 = vunpack.c.l.b16 %v149
    %v537 = vunpack.c.l.b16 %v150
    %v538 = vunpack.c.l.b16 %v151
    %v539 = vunpack.c.l.b16 %v152
    %v540 = vunpack.c.l.b16 %v153
    %v541 = vunpack.c.l.b16 %v154
    %v542 = vunpack.c.l.b16 %v155
    %v543 = vunpack.c.l.b16 %v156
    %v544 = vunpack.c.l.b16 %v157
    %v545 = vunpack.c.l.b16 %v158
    %v546 = vunpack.c.l.b16 %v159
    %v547 = vunpack.c.l.b16 %v160
    %v548 = vunpack.c.l.b16 %v161
    %v549 = vunpack.c.l.b16 %v162
    %v550 = vunpack.c.l.b16 %v163
    %v551 = vunpack.c.l.b16 %v164
    %v552 = vunpack.c.l.b16 %v165
    %v553 = vunpack.c.l.b16 %v166
    %v554 = vunpack.c.l.b16 %v167
    %v555 = vunpack.c.l.b16 %v168
    %v556 = vunpack.c.l.b16 %v169
    %v557 = vunpack.c.l.b16 %v170
    %v558 = vunpack.c.l.b16 %v171
    %v559 = vunpack.c.l.b16 %v172
    %v560 = vunpack.c.l.b16 %v173
    %v561 = vunpack.c.l.b16 %v174
    %v562 = vunpack.c.l.b16 %v175
    %v563 = vunpack.c.l.b16 %v176
    %v564 = vunpack.c.l.b16 %v177
    %v565 = vunpack.c.l.b16 %v178
    %v566 = vunpack.c.l.b16 %v179
    %v567 = vunpack.c.l.b16 %v180
    %v568 = vunpack.c.l.b16 %v181
    %v569 = vunpack.c.l.b16 %v182
    %v570 = vunpack.c.l.b16 %v183
    %v571 = vunpack.c.l.b16 %v184
    %v572 = vunpack.c.l.b16 %v185
    %v573 = vpack.c.b16 %v430, %v429
    %v574 = vpack.c.b16 %v432, %v431
    %v575 = vpack.c.b16 %v434, %v433
    %v576 = vpack.c.b16 %v436, %v435
    %v577 = vpack.c.b16 %v438, %v437
    %v578 = vpack.c.b16 %v440, %v439
    %v579 = vpack.c.b16 %v442, %v441
    %v580 = vpack.c.b16 %v444, %v443
    %v581 = vpack.c.b16 %v446, %v445
    %v582 = vpack.c.b16 %v448, %v447
    %v583 = vpack.c.b16 %v450, %v449
    %v584 = vpack.c.b16 %v452, %v451
    %v585 = vpack.c.b16 %v454, %v453
    %v586 = vpack.c.b16 %v456, %v455
    %v587 = vpack.c.b16 %v458, %v457
    %v588 = vpack.c.b16 %v460, %v459
    %v589 = vpack.c.b16 %v462, %v461
    %v590 = vpack.c.b16 %v464, %v463
    %v591 = vpack.c.b16 %v466, %v465
    %v592 = vpack.c.b16 %v468, %v467
    %v593 = vpack.c.b16 %v470, %v469
    %v594 = vpack.c.b16 %v472, %v471
    %v595 = vpack.c.b16 %v474, %v473
    %v596 = vpack.c.b16 %v476, %v475
    %v597 = vpack.c.b16 %v478, %v477
    %v598 = vpack.c.b16 %v480, %v479
    %v599 = vpack.c.b16 %v482, %v481
    %v600 = vpack.c.b16 %v484, %v483
    %v601 = vpack.c.b16 %v486, %v485
    %v602 = vpack.c.b16 %v488, %v487
    %v603 = vpack.c.b16 %v490, %v489
    %v604 = vpack.c.b16 %v492, %v491
    %v605 = vpack.c.b16 %v494, %v493
    %v606 = vpack.c.b16 %v496, %v495
    %v607 = vpack.c.b16 %v498, %v497
    %v608 = vpack.c.b16 %v500, %v499
    %v609 = vpack.c.b16 %v502, %v501
    %v610 = vpack.c.b16 %v504, %v503
    %v611 = vpack.c.b16 %v506, %v505
    %v612 = vpack.c.b16 %v508, %v507
    %v613 = vpack.c.b16 %v510, %v509
    %v614 = vpack.c.b16 %v512, %v511
    %v615 = vpack.c.b16 %v514, %v513
    %v616 = vpack.c.b16 %v516, %v515
    %v617 = vpack.c.b16 %v518, %v517
    %v618 = vpack.c.b16 %v520, %v519
    %v619 = vpack.c.b16 %v522, %v521
    %v620 = vpack.c.b16 %v524, %v523
    %v621 = vpack.c.b16 %v526, %v525
    %v622 = vpack.c.b16 %v528, %v527
    %v623 = vpack.c.b16 %v530, %v529
    %v624 = vpack.c.b16 %v532, %v531
    %v625 = vpack.c.b16 %v534, %v533
    %v626 = vpack.c.b16 %v536, %v535
    %v627 = vpack.c.b16 %v538, %v537
    %v628 = vpack.c.b16 %v540, %v539
    %v629 = vpack.c.b16 %v542, %v541
    %v630 = vpack.c.b16 %v544, %v543
    %v631 = vpack.c.b16 %v546, %v545
    %v632 = vpack.c.b16 %v548, %v547
    %v633 = vpack.c.b16 %v550, %v549
    %v634 = vpack.c.b16 %v552, %v551
    %v635 = vpack.c.b16 %v554, %v553
    %v636 = vpack.c.b16 %v556, %v555
    %v637 = vpack.c.b16 %v558, %v557
    %v638 = vpack.c.b16 %v560, %v559
    %v639 = vpack.c.b16 %v562, %v561
    %v640 = vpack.c.b16 %v564, %v563
    %v641 = vpack.c.b16 %v566, %v565
    %v642 = vpack.c.b16 %v568, %v567
    %v643 = vpack.c.b16 %v570, %v569
    %v644 = vpack.c.b16 %v572, %v571
    %717 = vmatprep.subr.bf16.mxu0 0
    %718 = vmatpush1.bf16.msra.mxu0 %v573
    %719 = vmatprep.subr.bf16.mxu0 0
    %720 = vmatpush1.bf16.msra.mxu0 %v574
    %721 = vmatprep.subr.bf16.mxu0 0
    %722 = vmatpush1.bf16.msra.mxu0 %v575
    %723 = vmatprep.subr.bf16.mxu0 0
    %724 = vmatpush1.bf16.msra.mxu0 %v576
    %725 = vmatprep.subr.bf16.mxu0 0
    %726 = vmatpush1.bf16.msra.mxu0 %v577
    %727 = vmatprep.subr.bf16.mxu0 0
    %728 = vmatpush1.bf16.msra.mxu0 %v578
    %729 = vmatprep.subr.bf16.mxu0 0
    %730 = vmatpush1.bf16.msra.mxu0 %v579
    %731 = vmatprep.subr.bf16.mxu0 0
    %732 = vmatpush1.bf16.msra.mxu0 %v580
    %733 = vmatprep.subr.bf16.mxu0 0
    %734 = vmatpush1.bf16.msra.mxu0 %v581
    %735 = vmatprep.subr.bf16.mxu0 0
    %736 = vmatpush1.bf16.msra.mxu0 %v582
    %737 = vmatprep.subr.bf16.mxu0 0
    %738 = vmatpush1.bf16.msra.mxu0 %v583
    %739 = vmatprep.subr.bf16.mxu0 0
    %740 = vmatpush1.bf16.msra.mxu0 %v584
    %741 = vmatprep.subr.bf16.mxu0 0
    %742 = vmatpush1.bf16.msra.mxu0 %v585
    %743 = vmatprep.subr.bf16.mxu0 0
    %744 = vmatpush1.bf16.msra.mxu0 %v586
    %745 = vmatprep.subr.bf16.mxu0 0
    %746 = vmatpush1.bf16.msra.mxu0 %v587
    %747 = vmatprep.subr.bf16.mxu0 0
    %748 = vmatpush1.bf16.msra.mxu0 %v588
    %749 = vmatprep.mubr.bf16.mxu0 %v250
    %750 = vmatmul.mubr.bf16.gmra.mrb[0].mxu0 %v249
    %v751 = vpop.f32.mrb[0].mxu0
    %v752 = vadd.f32 %v191, %v751
    %v753 = vpop.f32.mrb[0].mxu0
    %v754 = vpop.f32.mrb[0].mxu0
    %v755 = vadd.f32 %v191, %v754
    %v756 = vpop.f32.mrb[0].mxu0
    %757 = vmatprep.mubr.bf16.mxu0 %v259
    %758 = vmatmul.mubr.bf16.gmra.mrb[0].mxu0 %v258
    %v759 = vpop.f32.mrb[0].mxu0
    %v760 = vadd.f32 %v191, %v759
    %v761 = vpop.f32.mrb[0].mxu0
    %v762 = vpop.f32.mrb[0].mxu0
    %v763 = vadd.f32 %v191, %v762
    %v764 = vpop.f32.mrb[0].mxu0
    %765 = vdwg.mxu0
    %766 = vmatprep.subr.bf16.mxu0 0
    %767 = vmatpush1.bf16.msra.mxu0 %v589
    %768 = vmatprep.subr.bf16.mxu0 0
    %769 = vmatpush1.bf16.msra.mxu0 %v590
    %770 = vmatprep.subr.bf16.mxu0 0
    %771 = vmatpush1.bf16.msra.mxu0 %v591
    %772 = vmatprep.subr.bf16.mxu0 0
    %773 = vmatpush1.bf16.msra.mxu0 %v592
    %774 = vmatprep.subr.bf16.mxu0 0
    %775 = vmatpush1.bf16.msra.mxu0 %v593
    %776 = vmatprep.subr.bf16.mxu0 0
    %777 = vmatpush1.bf16.msra.mxu0 %v594
    %778 = vmatprep.subr.bf16.mxu0 0
    %779 = vmatpush1.bf16.msra.mxu0 %v595
    %780 = vmatprep.subr.bf16.mxu0 0
    %781 = vmatpush1.bf16.msra.mxu0 %v596
    %782 = vmatprep.subr.bf16.mxu0 0
    %783 = vmatpush1.bf16.msra.mxu0 %v597
    %784 = vmatprep.subr.bf16.mxu0 0
    %785 = vmatpush1.bf16.msra.mxu0 %v598
    %786 = vmatprep.subr.bf16.mxu0 0
    %787 = vmatpush1.bf16.msra.mxu0 %v599
    %788 = vmatprep.subr.bf16.mxu0 0
    %789 = vmatpush1.bf16.msra.mxu0 %v600
    %790 = vmatprep.subr.bf16.mxu0 0
    %791 = vmatpush1.bf16.msra.mxu0 %v601
    %792 = vmatprep.subr.bf16.mxu0 0
    %793 = vmatpush1.bf16.msra.mxu0 %v602
    %794 = vmatprep.subr.bf16.mxu0 0
    %795 = vmatpush1.bf16.msra.mxu0 %v603
    %796 = vmatprep.subr.bf16.mxu0 0
    %797 = vmatpush1.bf16.msra.mxu0 %v604
    %798 = vmatprep.mubr.bf16.mxu0 %v252
    %799 = vmatmul.mubr.bf16.gmra.mrb[0].mxu0 %v251
    %v800 = vpop.f32.mrb[0].mxu0
    %v801 = vadd.f32 %v752, %v800
    %v802 = vpop.f32.mrb[0].mxu0
    %v803 = vpop.f32.mrb[0].mxu0
    %v804 = vadd.f32 %v755, %v803
    %v805 = vpop.f32.mrb[0].mxu0
    %806 = vmatprep.mubr.bf16.mxu0 %v261
    %807 = vmatmul.mubr.bf16.gmra.mrb[0].mxu0 %v260
    %v808 = vpop.f32.mrb[0].mxu0
    %v809 = vadd.f32 %v760, %v808
    %v810 = vpop.f32.mrb[0].mxu0
    %v811 = vpop.f32.mrb[0].mxu0
    %v812 = vadd.f32 %v763, %v811
    %v813 = vpop.f32.mrb[0].mxu0
    %814 = vdwg.mxu0
    %815 = vmatprep.subr.bf16.mxu0 0
    %816 = vmatpush1.bf16.msra.mxu0 %v605
    %817 = vmatprep.subr.bf16.mxu0 0
    %818 = vmatpush1.bf16.msra.mxu0 %v606
    %819 = vmatprep.subr.bf16.mxu0 0
    %820 = vmatpush1.bf16.msra.mxu0 %v607
    %821 = vmatprep.subr.bf16.mxu0 0
    %822 = vmatpush1.bf16.msra.mxu0 %v608
    %823 = vmatprep.subr.bf16.mxu0 0
    %824 = vmatpush1.bf16.msra.mxu0 %v609
    %825 = vmatprep.subr.bf16.mxu0 0
    %826 = vmatpush1.bf16.msra.mxu0 %v610
    %827 = vmatprep.subr.bf16.mxu0 0
    %828 = vmatpush1.bf16.msra.mxu0 %v611
    %829 = vmatprep.subr.bf16.mxu0 0
    %830 = vmatpush1.bf16.msra.mxu0 %v612
    %831 = vmatprep.subr.bf16.mxu0 0
    %832 = vmatpush1.bf16.msra.mxu0 %v613
    %833 = vmatprep.subr.bf16.mxu0 0
    %834 = vmatpush1.bf16.msra.mxu0 %v614
    %835 = vmatprep.subr.bf16.mxu0 0
    %836 = vmatpush1.bf16.msra.mxu0 %v615
    %837 = vmatprep.subr.bf16.mxu0 0
    %838 = vmatpush1.bf16.msra.mxu0 %v616
    %839 = vmatprep.subr.bf16.mxu0 0
    %840 = vmatpush1.bf16.msra.mxu0 %v617
    %841 = vmatprep.subr.bf16.mxu0 0
    %842 = vmatpush1.bf16.msra.mxu0 %v618
    %843 = vmatprep.subr.bf16.mxu0 0
    %844 = vmatpush1.bf16.msra.mxu0 %v619
    %845 = vmatprep.subr.bf16.mxu0 0
    %846 = vmatpush1.bf16.msra.mxu0 %v620
    %847 = vmatprep.mubr.bf16.mxu0 %v254
    %848 = vmatmul.mubr.bf16.gmra.mrb[0].mxu0 %v253
    %v849 = vpop.f32.mrb[0].mxu0
    %v850 = vadd.f32 %v801, %v849
    %v851 = vpop.f32.mrb[0].mxu0
    %v852 = vpop.f32.mrb[0].mxu0
    %v853 = vadd.f32 %v804, %v852
    %v854 = vpop.f32.mrb[0].mxu0
    %855 = vmatprep.mubr.bf16.mxu0 %v263
    %856 = vmatmul.mubr.bf16.gmra.mrb[0].mxu0 %v262
    %v857 = vpop.f32.mrb[0].mxu0
    %v858 = vadd.f32 %v809, %v857
    %v859 = vpop.f32.mrb[0].mxu0
    %v860 = vpop.f32.mrb[0].mxu0
    %v861 = vadd.f32 %v812, %v860
    %v862 = vpop.f32.mrb[0].mxu0
    %863 = vdwg.mxu0
    %864 = vmatprep.subr.bf16.mxu0 0
    %865 = vmatpush1.bf16.msra.mxu0 %v621
    %866 = vmatprep.subr.bf16.mxu0 0
    %867 = vmatpush1.bf16.msra.mxu0 %v622
    %868 = vmatprep.subr.bf16.mxu0 0
    %869 = vmatpush1.bf16.msra.mxu0 %v623
    %870 = vmatprep.subr.bf16.mxu0 0
    %871 = vmatpush1.bf16.msra.mxu0 %v624
    %872 = vmatprep.subr.bf16.mxu0 0
    %873 = vmatpush1.bf16.msra.mxu0 %v625
    %874 = vmatprep.subr.bf16.mxu0 0
    %875 = vmatpush1.bf16.msra.mxu0 %v626
    %876 = vmatprep.subr.bf16.mxu0 0
    %877 = vmatpush1.bf16.msra.mxu0 %v627
    %878 = vmatprep.subr.bf16.mxu0 0
    %879 = vmatpush1.bf16.msra.mxu0 %v628
    %880 = vmatprep.subr.bf16.mxu0 0
    %881 = vmatpush1.bf16.msra.mxu0 %v629
    %882 = vmatprep.subr.bf16.mxu0 0
    %883 = vmatpush1.bf16.msra.mxu0 %v630
    %884 = vmatprep.subr.bf16.mxu0 0
    %885 = vmatpush1.bf16.msra.mxu0 %v631
    %886 = vmatprep.subr.bf16.mxu0 0
    %887 = vmatpush1.bf16.msra.mxu0 %v632
    %888 = vmatprep.subr.bf16.mxu0 0
    %889 = vmatpush1.bf16.msra.mxu0 %v633
    %890 = vmatprep.subr.bf16.mxu0 0
    %891 = vmatpush1.bf16.msra.mxu0 %v634
    %892 = vmatprep.subr.bf16.mxu0 0
    %893 = vmatpush1.bf16.msra.mxu0 %v635
    %894 = vmatprep.subr.bf16.mxu0 0
    %895 = vmatpush1.bf16.msra.mxu0 %v636
    %896 = vmatprep.mubr.bf16.mxu0 %v256
    %897 = vmatmul.mubr.bf16.gmra.mrb[0].mxu0 %v255
    %v898 = vpop.f32.mrb[0].mxu0
    %v899 = vadd.f32 %v850, %v898
    %v900 = vpop.f32.mrb[0].mxu0
    %v901 = vpop.f32.mrb[0].mxu0
    %v902 = vadd.f32 %v853, %v901
    %v903 = vpop.f32.mrb[0].mxu0
    %904 = vmatprep.mubr.bf16.mxu0 %v265
    %905 = vmatmul.mubr.bf16.gmra.mrb[0].mxu0 %v264
    %v906 = vpop.f32.mrb[0].mxu0
    %v907 = vadd.f32 %v858, %v906
    %v908 = vpop.f32.mrb[0].mxu0
    %v909 = vpop.f32.mrb[0].mxu0
    %v910 = vadd.f32 %v861, %v909
    %v911 = vpop.f32.mrb[0].mxu0
    %912 = vdwg.mxu0
    %913 = vmatprep.subr.bf16.mxu0 0
    %914 = vmatpush1.bf16.msra.mxu0 %v637
    %915 = vmatprep.subr.bf16.mxu0 0
    %916 = vmatpush1.bf16.msra.mxu0 %v638
    %917 = vmatprep.subr.bf16.mxu0 0
    %918 = vmatpush1.bf16.msra.mxu0 %v639
    %919 = vmatprep.subr.bf16.mxu0 0
    %920 = vmatpush1.bf16.msra.mxu0 %v640
    %921 = vmatprep.subr.bf16.mxu0 0
    %922 = vmatpush1.bf16.msra.mxu0 %v641
    %923 = vmatprep.subr.bf16.mxu0 0
    %924 = vmatpush1.bf16.msra.mxu0 %v642
    %925 = vmatprep.subr.bf16.mxu0 0
    %926 = vmatpush1.bf16.msra.mxu0 %v643
    %927 = vmatprep.subr.bf16.mxu0 0
    %928 = vmatpush1.bf16.msra.mxu0 %v644
    %929 = vmatprep.subr.bf16.mxu0 0
    %930 = vmatpush1.bf16.msra.mxu0 0
    %931 = vmatprep.subr.bf16.mxu0 0
    %932 = vmatpush1.bf16.msra.mxu0 0
    %933 = vmatprep.subr.bf16.mxu0 0
    %934 = vmatpush1.bf16.msra.mxu0 0
    %935 = vmatprep.subr.bf16.mxu0 0
    %936 = vmatpush1.bf16.msra.mxu0 0
    %937 = vmatprep.subr.bf16.mxu0 0
    %938 = vmatpush1.bf16.msra.mxu0 0
    %939 = vmatprep.subr.bf16.mxu0 0
    %940 = vmatpush1.bf16.msra.mxu0 0
    %941 = vmatprep.subr.bf16.mxu0 0
    %942 = vmatpush1.bf16.msra.mxu0 0
    %943 = vmatprep.subr.bf16.mxu0 0
    %944 = vmatpush1.bf16.msra.mxu0 0
    %945 = vmatprep.mubr.bf16.mxu0 0
    %946 = vmatmul.mubr.bf16.gmra.mrb[0].mxu0 %v257
    %v947 = vpop.f32.mrb[0].mxu0
    %v948 = vadd.f32 %v899, %v947
    %v949 = vpop.f32.mrb[0].mxu0
    %v950 = vpop.f32.mrb[0].mxu0
    %v951 = vadd.f32 %v902, %v950
    %v952 = vpop.f32.mrb[0].mxu0
    %953 = vmatprep.mubr.bf16.mxu0 0
    %954 = vmatmul.mubr.bf16.gmra.mrb[0].mxu0 %v266
    %v955 = vpop.f32.mrb[0].mxu0
    %v956 = vadd.f32 %v907, %v955
    %v957 = vpop.f32.mrb[0].mxu0
    %v958 = vpop.f32.mrb[0].mxu0
    %v959 = vadd.f32 %v910, %v958
    %v960 = vpop.f32.mrb[0].mxu0
    %961 = vdwg.mxu0
    %v962 = vmax.f32 %v948, 0.0
    %v963 = vmax.f32 %v951, 0.0
    %v964 = vmax.f32 %v956, 0.0
    %v965 = vmax.f32 %v959, 0.0
    %v966 = vpack.c.bf16 %v963, %v962
    %v967 = vpack.c.bf16 %v965, %v964
    %v968 = vld [vmem:[%s3] sm:$0xf]
    %v969 = vld [vmem:[%s3 + $0x4] sm:$0xf]
    %v970 = vld [vmem:[%s3 + $0x8] sm:$0xf]
    %v971 = vld [vmem:[%s3 + $0xc] sm:$0xf]
    %v972 = vld [vmem:[%s3 + $0x10] sm:$0xf]
    %v973 = vld [vmem:[%s3 + $0x14] sm:$0xf]
    %v974 = vld [vmem:[%s3 + $0x18] sm:$0xf]
    %v975 = vld [vmem:[%s3 + $0x1c] sm:$0xf]
    %v976 = vld [vmem:[%s3 + $0x20] sm:$0xf]
    %v977 = vld [vmem:[%s3 + $0x24] sm:$0xf]
    %v978 = vld [vmem:[%s3 + $0x28] sm:$0xf]
    %v979 = vld [vmem:[%s3 + $0x2c] sm:$0xf]
    %v980 = vld [vmem:[%s3 + $0x30] sm:$0xf]
    %v981 = vld [vmem:[%s3 + $0x34] sm:$0xf]
    %v982 = vld [vmem:[%s3 + $0x38] sm:$0xf]
    %v983 = vld [vmem:[%s3 + $0x3c] sm:$0xf]
    %v984 = vld [vmem:[%s4] sm:$0x1]
    %v986 = vlaneseq
    %v987 = vshrl.u32 %v986, 7
    %v988 = vsub.s32 0, %v987
    %v989 = vrot.slane %v984, %v988
    %v1007 = vunpack.c.l.b16 %v968
    %v1008 = vunpack.c.l.b16 %v969
    %v1009 = vunpack.c.l.b16 %v970
    %v1010 = vunpack.c.l.b16 %v971
    %v1011 = vunpack.c.l.b16 %v972
    %v1012 = vunpack.c.l.b16 %v973
    %v1013 = vunpack.c.l.b16 %v974
    %v1014 = vunpack.c.l.b16 %v975
    %v1015 = vunpack.c.l.b16 %v976
    %v1016 = vunpack.c.l.b16 %v977
    %v1017 = vunpack.c.l.b16 %v978
    %v1018 = vunpack.c.l.b16 %v979
    %v1019 = vunpack.c.l.b16 %v980
    %v1020 = vunpack.c.l.b16 %v981
    %v1021 = vunpack.c.l.b16 %v982
    %v1022 = vunpack.c.l.b16 %v983
    %v1023 = vpack.c.b16 %v1008, %v1007
    %v1024 = vpack.c.b16 %v1010, %v1009
    %v1025 = vpack.c.b16 %v1012, %v1011
    %v1026 = vpack.c.b16 %v1014, %v1013
    %v1027 = vpack.c.b16 %v1016, %v1015
    %v1028 = vpack.c.b16 %v1018, %v1017
    %v1029 = vpack.c.b16 %v1020, %v1019
    %v1030 = vpack.c.b16 %v1022, %v1021
    %1039 = vmatprep.subr.bf16.mxu0 0
    %1040 = vmatpush1.bf16.msra.mxu0 %v1023
    %1041 = vmatprep.subr.bf16.mxu0 0
    %1042 = vmatpush1.bf16.msra.mxu0 %v1024
    %1043 = vmatprep.subr.bf16.mxu0 0
    %1044 = vmatpush1.bf16.msra.mxu0 %v1025
    %1045 = vmatprep.subr.bf16.mxu0 0
    %1046 = vmatpush1.bf16.msra.mxu0 %v1026
    %1047 = vmatprep.subr.bf16.mxu0 0
    %1048 = vmatpush1.bf16.msra.mxu0 %v1027
    %1049 = vmatprep.subr.bf16.mxu0 0
    %1050 = vmatpush1.bf16.msra.mxu0 %v1028
    %1051 = vmatprep.subr.bf16.mxu0 0
    %1052 = vmatpush1.bf16.msra.mxu0 %v1029
    %1053 = vmatprep.subr.bf16.mxu0 0
    %1054 = vmatpush1.bf16.msra.mxu0 %v1030
    %1055 = vmatprep.subr.bf16.mxu0 0
    %1056 = vmatpush1.bf16.msra.mxu0 0
    %1057 = vmatprep.subr.bf16.mxu0 0
    %1058 = vmatpush1.bf16.msra.mxu0 0
    %1059 = vmatprep.subr.bf16.mxu0 0
    %1060 = vmatpush1.bf16.msra.mxu0 0
    %1061 = vmatprep.subr.bf16.mxu0 0
    %1062 = vmatpush1.bf16.msra.mxu0 0
    %1063 = vmatprep.subr.bf16.mxu0 0
    %1064 = vmatpush1.bf16.msra.mxu0 0
    %1065 = vmatprep.subr.bf16.mxu0 0
    %1066 = vmatpush1.bf16.msra.mxu0 0
    %1067 = vmatprep.subr.bf16.mxu0 0
    %1068 = vmatpush1.bf16.msra.mxu0 0
    %1069 = vmatprep.subr.bf16.mxu0 0
    %1070 = vmatpush1.bf16.msra.mxu0 0
    %1071 = vmatprep.mubr.bf16.mxu0 0
    %1072 = vmatmul.mubr.bf16.gmra.mrb[0].mxu0 %v966
    %v1073 = vpop.f32.mrb[0].mxu0
    %v1074 = vadd.f32 %v989, %v1073
    %v1075 = vpop.f32.mrb[0].mxu0
    %v1076 = vpop.f32.mrb[0].mxu0
    %v1077 = vadd.f32 %v989, %v1076
    %v1078 = vpop.f32.mrb[0].mxu0
    %1079 = vmatprep.mubr.bf16.mxu0 0
    %1080 = vmatmul.mubr.bf16.gmra.mrb[0].mxu0 %v967
    %v1081 = vpop.f32.mrb[0].mxu0
    %v1082 = vadd.f32 %v989, %v1081
    %v1083 = vpop.f32.mrb[0].mxu0
    %v1084 = vpop.f32.mrb[0].mxu0
    %v1085 = vadd.f32 %v989, %v1084
    %v1086 = vpop.f32.mrb[0].mxu0
    %1087 = vdwg.mxu0
    %v1088 = vmax.f32 %v1074, 0.0
    %v1089 = vmax.f32 %v1077, 0.0
    %v1090 = vmax.f32 %v1082, 0.0
    %v1091 = vmax.f32 %v1085, 0.0
    %1092 = vst [vmem:[#allocation2] sm:$0xff] %v1088
    %1093 = vst [vmem:[#allocation2 + $0x8] sm:$0xff] %v1089
    %1094 = vst [vmem:[#allocation2 + $0x10] sm:$0xff] %v1090
    %1095 = vst [vmem:[#allocation2 + $0x18] sm:$0xff] %v1091
    // Predicated region
    $region22: #{a_call__.5} parent=1 // pred_check
      _
    $region23: #{a_call__.5} parent=1 // pred_check_branch
      %1097 = sbr.rel (0) target = $region25
    $region24: #{a_call__.5} parent=1 // pred_region
      %s1099 = ssub.s32 512, 512
      %1100 = vsyncadd [#allocation3], %s1099
      %s1101 = sshll.u32 [#allocation2], 4
      %s1102 = int_to_ptr.vmem [resolvable:$true] %s1101
      %1107 = dma.vmem_to_hbm [thread:$0]  %s1102, 512, %s5, [#allocation3], 128, 128, 8
    $region25: #{a_call__.5} parent=1 // pred_fallthru
      _
    // Predicated region
    $region26: #{a_call__.5} parent=1 // pred_check
      _
    $region27: #{a_call__.5} parent=1 // pred_check_branch
      %1109 = sbr.rel (0) target = $region29
    $region28: #{a_call__.5} parent=1 // pred_region
      %1110 = dma.done [#allocation3], 512
    $region29: #{a_call__.5} parent=1 // pred_fallthru
      _
    %1111 = vsyncpa [#allocation3], 1

</llo_original>
